<compile_context>
chip_gen: v5e
topology: v5e:2x2
jax: 0.10.0
libtpu: 0.0.40
codegen_flags: <defaults>
</compile_context>

<pallas_src>
import math

import jax
import jax.numpy as jnp
from jax.experimental import pallas as pl
from jax.experimental.pallas import tpu as pltpu

# ---------------- configuration (small, consistent with the module) ----------
SRC_VOCAB = 16
TGT_VOCAB = 16
D_MODEL   = 32
NUM_LAYERS = 2
NUM_HEADS  = 4
D_FF       = 64
BATCH      = 2
SEQ        = 8
HEAD_DIM   = D_MODEL // NUM_HEADS
LN_EPS     = 1e-5
INV_SQRT_DH = 1.0 / math.sqrt(HEAD_DIM)

# Indices into the packed (N_VEC, L, 1, D) tensor of all D-wide bias/LN params.
(ENC_BO, ENC_B2, ENC_LN1G, ENC_LN1B, ENC_LN2G, ENC_LN2B,
 DEC_SA_BO, DEC_CA_BQ, DEC_CA_BO, DEC_B2,
 DEC_LN1G, DEC_LN1B, DEC_LN2G, DEC_LN2B, DEC_LN3G, DEC_LN3B) = range(16)
N_VEC = 16

# Indices into the packed (4, L, D, D) attention projection tensor.
ENC_WO, DEC_SA_WO, DEC_CA_WQ, DEC_CA_WO = range(4)

# Packed weight tensors fed to the fused kernel (order matters).
_WEIGHT_NAMES = ["qkv_w", "qkv_b", "attn_w", "ca_kv_w", "ca_kv_b",
                 "ffn_w1", "ffn_b1", "ffn_w2", "vec_d", "out_w", "out_b"]


# ---------------- in-kernel building blocks (trace-time helpers) -------------
def _softmax_lastdim(s):
    m = jnp.max(s, axis=-1, keepdims=True)
    p = jnp.exp(s - m)
    denom = jnp.sum(p, axis=-1, keepdims=True)
    return p * pl.reciprocal(denom, approx=True)


def _mha_core(q, k, v, wo, bo, bias):
    """q: (Sq, D) pre-scaled by 1/sqrt(head_dim), k/v: (Sk, D), wo: (D, D),
    bo: (1, D), bias: None or (Sq, Sk).

    Per-head attention with the output projection folded into the head loop:
       concat_h(o_h) @ wo == sum_h o_h @ wo[h*Dh:(h+1)*Dh, :]
    """
    acc = jnp.zeros((q.shape[0], D_MODEL), jnp.float32)
    for h in range(NUM_HEADS):
        sl = slice(h * HEAD_DIM, (h + 1) * HEAD_DIM)
        qh, kh, vh = q[:, sl], k[:, sl], v[:, sl]
        s = jax.lax.dot_general(qh, kh, (((1,), (1,)), ((), ())),
                                preferred_element_type=jnp.float32)
        if bias is not None:
            s = s + bias                      # masked_fill(-1e9) semantics
        p = _softmax_lastdim(s)
        oh = jnp.dot(p, vh, preferred_element_type=jnp.float32)
        acc = acc + jnp.dot(oh, wo[sl, :], preferred_element_type=jnp.float32)
    return acc + bo


def _self_attention(x, wqkv, bqkv, wo, bo, bias):
    qkv = jnp.dot(x, wqkv, preferred_element_type=jnp.float32) + bqkv  # (S, 3D)
    q = qkv[:, :D_MODEL] * INV_SQRT_DH
    k = qkv[:, D_MODEL:2 * D_MODEL]
    v = qkv[:, 2 * D_MODEL:]
    return _mha_core(q, k, v, wo, bo, bias)


def _cross_attention(x_q, x_kv, wq, bq, wkv, bkv, wo, bo, bias):
    q = (jnp.dot(x_q, wq, preferred_element_type=jnp.float32) + bq) * INV_SQRT_DH
    kv = jnp.dot(x_kv, wkv, preferred_element_type=jnp.float32) + bkv  # (Sk, 2D)
    k = kv[:, :D_MODEL]
    v = kv[:, D_MODEL:]
    return _mha_core(q, k, v, wo, bo, bias)


def _add_ln(x, res, g, b):
    y = x + res
    mu = jnp.mean(y, axis=-1, keepdims=True)
    var = jnp.mean(jnp.square(y - mu), axis=-1, keepdims=True)
    return (y - mu) * jax.lax.rsqrt(var + LN_EPS) * g + b


def _ffn(x, w1, b1, w2, b2):
    h = jnp.maximum(jnp.dot(x, w1, preferred_element_type=jnp.float32) + b1, 0.0)
    return jnp.dot(h, w2, preferred_element_type=jnp.float32) + b2


# ---------------- the single fused Pallas kernel -----------------------------
def _make_fused_kernel(use_src_mask, use_tgt_mask):
    def kernel(*refs):
        i = 0
        src_ref = refs[i]; i += 1          # (1, S_src, D)
        tgt_ref = refs[i]; i += 1          # (1, S_tgt, D)
        src_bias_ref = None
        tgt_bias_ref = None
        if use_src_mask:
            src_bias_ref = refs[i]; i += 1  # (1, S, S) additive bias
        if use_tgt_mask:
            tgt_bias_ref = refs[i]; i += 1
        out_ref = refs[-1]                  # (1, S_tgt, V)

        wrefs = refs[i:-1]
        (qkv_w, qkv_b, attn_w, ca_kv_w, ca_kv_b,
         ffn_w1, ffn_b1, ffn_w2, vec_d, out_w, out_b) = wrefs

        src_bias = src_bias_ref[0] if use_src_mask else None
        tgt_bias = tgt_bias_ref[0] if use_tgt_mask else None

        # ---------------- encoder stack ----------------
        x = src_ref[0]                                     # (S_src, D)
        for l in range(NUM_LAYERS):
            attn = _self_attention(x, qkv_w[0, l], qkv_b[0, l],
                                   attn_w[ENC_WO, l], vec_d[ENC_BO, l],
                                   src_bias)
            x = _add_ln(x, attn, vec_d[ENC_LN1G, l], vec_d[ENC_LN1B, l])
            ff = _ffn(x, ffn_w1[0, l], ffn_b1[0, l],
                      ffn_w2[0, l], vec_d[ENC_B2, l])
            x = _add_ln(x, ff, vec_d[ENC_LN2G, l], vec_d[ENC_LN2B, l])
        enc_out = x

        # ---------------- decoder stack ----------------
        y = tgt_ref[0]                                     # (S_tgt, D)
        for l in range(NUM_LAYERS):
            sa = _self_attention(y, qkv_w[1, l], qkv_b[1, l],
                                 attn_w[DEC_SA_WO, l], vec_d[DEC_SA_BO, l],
                                 tgt_bias)
            y = _add_ln(y, sa, vec_d[DEC_LN1G, l], vec_d[DEC_LN1B, l])
            ca = _cross_attention(y, enc_out,
                                  attn_w[DEC_CA_WQ, l], vec_d[DEC_CA_BQ, l],
                                  ca_kv_w[l], ca_kv_b[l],
                                  attn_w[DEC_CA_WO, l], vec_d[DEC_CA_BO, l],
                                  src_bias)
            y = _add_ln(y, ca, vec_d[DEC_LN2G, l], vec_d[DEC_LN2B, l])
            ff = _ffn(y, ffn_w1[1, l], ffn_b1[1, l],
                      ffn_w2[1, l], vec_d[DEC_B2, l])
            y = _add_ln(y, ff, vec_d[DEC_LN3G, l], vec_d[DEC_LN3B, l])

        logits = (jnp.dot(y, out_w[...], preferred_element_type=jnp.float32)
                  + out_b[...])
        out_ref[0] = logits
    return kernel


# ---------------- model glue (plain JAX around the fused kernel) -------------
def positional_encoding(seq_len, d_model):
    pos = jnp.arange(seq_len, dtype=jnp.float32)[:, None]
    div = jnp.exp(jnp.arange(0, d_model, 2, dtype=jnp.float32)
                  * (-math.log(10000.0) / d_model))
    pe = jnp.zeros((seq_len, d_model), jnp.float32)
    pe = pe.at[:, 0::2].set(jnp.sin(pos * div))
    pe = pe.at[:, 1::2].set(jnp.cos(pos * div))
    return pe


def transformer_forward(params, src, tgt, src_mask=None, tgt_mask=None):
    """src/tgt: (B, S) int32 token ids.  Masks (optional): (B, S, S), 1=keep."""
    B, S_src = src.shape
    _, S_tgt = tgt.shape

    # Embedding gather + sinusoidal PE (one plain-JAX op each); dropout = eval
    # identity.
    src_emb = (jnp.take(params["enc_emb"], src, axis=0)
               + positional_encoding(S_src, D_MODEL)[None])
    tgt_emb = (jnp.take(params["dec_emb"], tgt, axis=0)
               + positional_encoding(S_tgt, D_MODEL)[None])

    use_src_mask = src_mask is not None
    use_tgt_mask = tgt_mask is not None

    inputs = [src_emb, tgt_emb]
    in_specs = [
        pl.BlockSpec((1, S_src, D_MODEL), lambda b: (b, 0, 0)),
        pl.BlockSpec((1, S_tgt, D_MODEL), lambda b: (b, 0, 0)),
    ]
    if use_src_mask:
        # Square masks (S_src == S_tgt here); the same mask is reused for the
        # decoder cross-attention, matching the reference module's plumbing.
        src_bias = jnp.where(src_mask == 0, -1e9, 0.0).astype(jnp.float32)
        inputs.append(src_bias)
        in_specs.append(pl.BlockSpec((1,) + src_bias.shape[1:],
                                     lambda b: (b, 0, 0)))
    if use_tgt_mask:
        tgt_bias = jnp.where(tgt_mask == 0, -1e9, 0.0).astype(jnp.float32)
        inputs.append(tgt_bias)
        in_specs.append(pl.BlockSpec((1,) + tgt_bias.shape[1:],
                                     lambda b: (b, 0, 0)))

    for name in _WEIGHT_NAMES:
        wa = params[name]
        inputs.append(wa)
        # Full-block, constant index_map -> DMA'd once, VMEM-resident across
        # the whole grid.
        in_specs.append(pl.BlockSpec(wa.shape, lambda b, nd=wa.ndim: (0,) * nd))

    out = pl.pallas_call(
        _make_fused_kernel(use_src_mask, use_tgt_mask),
        out_shape=jax.ShapeDtypeStruct((B, S_tgt, TGT_VOCAB), jnp.float32),
        grid=(B,),
        in_specs=in_specs,
        out_specs=pl.BlockSpec((1, S_tgt, TGT_VOCAB), lambda b: (b, 0, 0)),
        compiler_params=pltpu.CompilerParams(
            dimension_semantics=("parallel",)),  # batch across TCs on v7x
    )(*inputs)
    return out


# ---------------- deterministic parameter initialization --------------------
def init_params(key):
    def normal(k, shape):
        return jax.random.normal(k, shape, jnp.float32) * 0.02

    keys = jax.random.split(key, 8)
    L, D, F = NUM_LAYERS, D_MODEL, D_FF
    zeros = lambda shape: jnp.zeros(shape, jnp.float32)

    # All D-wide biases / LayerNorm params packed into one tensor; LN gains = 1.
    vec_d = zeros((N_VEC, L, 1, D))
    for g_idx in (ENC_LN1G, ENC_LN2G, DEC_LN1G, DEC_LN2G, DEC_LN3G):
        vec_d = vec_d.at[g_idx].set(1.0)

    params = {
        "enc_emb": normal(keys[0], (SRC_VOCAB, D)),
        "dec_emb": normal(keys[1], (TGT_VOCAB, D)),
        # [0] = encoder self-attn, [1] = decoder self-attn.
        "qkv_w": normal(keys[2], (2, L, D, 3 * D)),
        "qkv_b": zeros((2, L, 1, 3 * D)),
        # [0]=enc W_o, [1]=dec self W_o, [2]=dec cross W_q, [3]=dec cross W_o.
        "attn_w": normal(keys[3], (4, L, D, D)),
        "ca_kv_w": normal(keys[4], (L, D, 2 * D)),
        "ca_kv_b": zeros((L, 1, 2 * D)),
        # [0] = encoder FFN, [1] = decoder FFN.
        "ffn_w1": normal(keys[5], (2, L, D, F)),
        "ffn_b1": zeros((2, L, 1, F)),
        "ffn_w2": normal(keys[6], (2, L, F, D)),
        "vec_d": vec_d,
        "out_w": normal(keys[7], (D, TGT_VOCAB)),
        "out_b": zeros((1, TGT_VOCAB)),
    }
    return params


# ---------------- main -------------------------------------------------------
if __name__ == "__main__":
    key = jax.random.PRNGKey(0)
    kp, ks, kt = jax.random.split(key, 3)
    params = init_params(kp)

    src = jax.random.randint(ks, (BATCH, SEQ), 0, SRC_VOCAB, dtype=jnp.int32)
    tgt = jax.random.randint(kt, (BATCH, SEQ), 0, TGT_VOCAB, dtype=jnp.int32)

    # forward is called with src_mask=None, tgt_mask=None (matches defaults).
    # TODO(synk): supply an explicit causal tgt_mask for autoregressive decoding.
    fwd = jax.jit(transformer_forward)
    out = fwd(params, src, tgt)
    out = jax.block_until_ready(out)

    assert out.shape == (BATCH, SEQ, TGT_VOCAB), out.shape
    assert bool(jnp.all(jnp.isfinite(out)))
    print("KERNEL_OK")
</pallas_src>

<mosaic_0001>
module attributes {stable_mosaic.version = 11 : i64} {
  func.func @kernel(%arg0: i32, %arg1: memref<1x8x32xf32, #tpu.memory_space<vmem>>, %arg2: memref<1x8x32xf32, #tpu.memory_space<vmem>>, %arg3: memref<2x2x32x96xf32, #tpu.memory_space<vmem>>, %arg4: memref<2x2x1x96xf32, #tpu.memory_space<vmem>>, %arg5: memref<4x2x32x32xf32, #tpu.memory_space<vmem>>, %arg6: memref<2x32x64xf32, #tpu.memory_space<vmem>>, %arg7: memref<2x1x64xf32, #tpu.memory_space<vmem>>, %arg8: memref<2x2x32x64xf32, #tpu.memory_space<vmem>>, %arg9: memref<2x2x1x64xf32, #tpu.memory_space<vmem>>, %arg10: memref<2x2x64x32xf32, #tpu.memory_space<vmem>>, %arg11: memref<16x2x1x32xf32, #tpu.memory_space<vmem>>, %arg12: memref<32x16xf32, #tpu.memory_space<vmem>>, %arg13: memref<1x16xf32, #tpu.memory_space<vmem>>, %arg14: memref<1x8x16xf32, #tpu.memory_space<vmem>>) attributes {dimension_semantics = [#tpu.dimension_semantics<parallel>], iteration_bounds = array<i64: 2>, scalar_prefetch = 0 : i64, scratch_operands = 0 : i64, tpu.core_type = #tpu.core_type<tc>, window_params = [{transform_indices = @transform_0, window_bounds = array<i64: 1, 8, 32>}, {transform_indices = @transform_1, window_bounds = array<i64: 1, 8, 32>}, {pipeline_mode = #tpu.pipeline_mode<synchronous>, transform_indices = @transform_2, window_bounds = array<i64: 2, 2, 32, 96>}, {pipeline_mode = #tpu.pipeline_mode<synchronous>, transform_indices = @transform_3, window_bounds = array<i64: 2, 2, 1, 96>}, {pipeline_mode = #tpu.pipeline_mode<synchronous>, transform_indices = @transform_4, window_bounds = array<i64: 4, 2, 32, 32>}, {pipeline_mode = #tpu.pipeline_mode<synchronous>, transform_indices = @transform_5, window_bounds = array<i64: 2, 32, 64>}, {pipeline_mode = #tpu.pipeline_mode<synchronous>, transform_indices = @transform_6, window_bounds = array<i64: 2, 1, 64>}, {pipeline_mode = #tpu.pipeline_mode<synchronous>, transform_indices = @transform_7, window_bounds = array<i64: 2, 2, 32, 64>}, {pipeline_mode = #tpu.pipeline_mode<synchronous>, transform_indices = @transform_8, window_bounds = array<i64: 2, 2, 1, 64>}, {pipeline_mode = #tpu.pipeline_mode<synchronous>, transform_indices = @transform_9, window_bounds = array<i64: 2, 2, 64, 32>}, {pipeline_mode = #tpu.pipeline_mode<synchronous>, transform_indices = @transform_10, window_bounds = array<i64: 16, 2, 1, 32>}, {pipeline_mode = #tpu.pipeline_mode<synchronous>, transform_indices = @transform_11, window_bounds = array<i64: 32, 16>}, {pipeline_mode = #tpu.pipeline_mode<synchronous>, transform_indices = @transform_12, window_bounds = array<i64: 1, 16>}, {transform_indices = @transform_13, window_bounds = array<i64: 1, 8, 16>}]} {
    %c0 = arith.constant 0 : index
    %c0_0 = arith.constant 0 : index
    %c0_1 = arith.constant 0 : index
    %0 = vector.load %arg1[%c0, %c0_0, %c0_1] : memref<1x8x32xf32, #tpu.memory_space<vmem>>, vector<1x8x32xf32>
    %1 = vector.shape_cast %0 : vector<1x8x32xf32> to vector<8x32xf32>
    %c0_2 = arith.constant 0 : index
    %c0_3 = arith.constant 0 : index
    %c0_4 = arith.constant 0 : index
    %c0_5 = arith.constant 0 : index
    %2 = vector.load %arg3[%c0_2, %c0_3, %c0_4, %c0_5] : memref<2x2x32x96xf32, #tpu.memory_space<vmem>>, vector<1x1x32x96xf32>
    %3 = vector.shape_cast %2 : vector<1x1x32x96xf32> to vector<32x96xf32>
    %c0_6 = arith.constant 0 : index
    %c0_7 = arith.constant 0 : index
    %c0_8 = arith.constant 0 : index
    %c0_9 = arith.constant 0 : index
    %4 = vector.load %arg4[%c0_6, %c0_7, %c0_8, %c0_9] : memref<2x2x1x96xf32, #tpu.memory_space<vmem>>, vector<1x1x1x96xf32>
    %5 = vector.shape_cast %4 : vector<1x1x1x96xf32> to vector<1x96xf32>
    %c0_10 = arith.constant 0 : index
    %c0_11 = arith.constant 0 : index
    %c0_12 = arith.constant 0 : index
    %c0_13 = arith.constant 0 : index
    %6 = vector.load %arg5[%c0_10, %c0_11, %c0_12, %c0_13] : memref<4x2x32x32xf32, #tpu.memory_space<vmem>>, vector<1x1x32x32xf32>
    %7 = vector.shape_cast %6 : vector<1x1x32x32xf32> to vector<32x32xf32>
    %c0_14 = arith.constant 0 : index
    %c0_15 = arith.constant 0 : index
    %c0_16 = arith.constant 0 : index
    %c0_17 = arith.constant 0 : index
    %8 = vector.load %arg11[%c0_14, %c0_15, %c0_16, %c0_17] : memref<16x2x1x32xf32, #tpu.memory_space<vmem>>, vector<1x1x1x32xf32>
    %9 = vector.shape_cast %8 : vector<1x1x1x32xf32> to vector<1x32xf32>
    %cst = arith.constant dense<0.000000e+00> : vector<8x96xf32>
    %10 = tpu.matmul %1, %3, %cst {dimension_numbers = #tpu.dot_dimension_numbers<[1], [0], [0], [1], [0, 0, 1, 1], [], []>} : vector<8x32xf32>, vector<32x96xf32>, vector<8x96xf32> -> vector<8x96xf32>
    %11 = vector.broadcast %5 : vector<1x96xf32> to vector<8x96xf32>
    %12 = arith.addf %10, %11 : vector<8x96xf32>
    %13 = vector.extract_strided_slice %12 {offsets = [0, 0], sizes = [8, 32], strides = [1, 1]} : vector<8x96xf32> to vector<8x32xf32>
    %cst_18 = arith.constant 0.353553385 : f32
    %14 = vector.broadcast %cst_18 : f32 to vector<8x32xf32>
    %15 = arith.mulf %13, %14 : vector<8x32xf32>
    %16 = vector.extract_strided_slice %12 {offsets = [0, 32], sizes = [8, 32], strides = [1, 1]} : vector<8x96xf32> to vector<8x32xf32>
    %17 = vector.extract_strided_slice %12 {offsets = [0, 64], sizes = [8, 32], strides = [1, 1]} : vector<8x96xf32> to vector<8x32xf32>
    %cst_19 = arith.constant 0.000000e+00 : f32
    %18 = vector.broadcast %cst_19 : f32 to vector<8x32xf32>
    %19 = vector.extract_strided_slice %15 {offsets = [0, 0], sizes = [8, 8], strides = [1, 1]} : vector<8x32xf32> to vector<8x8xf32>
    %20 = vector.extract_strided_slice %16 {offsets = [0, 0], sizes = [8, 8], strides = [1, 1]} : vector<8x32xf32> to vector<8x8xf32>
    %21 = vector.extract_strided_slice %17 {offsets = [0, 0], sizes = [8, 8], strides = [1, 1]} : vector<8x32xf32> to vector<8x8xf32>
    %cst_20 = arith.constant dense<0.000000e+00> : vector<8x8xf32>
    %22 = tpu.matmul %19, %20, %cst_20 {dimension_numbers = #tpu.dot_dimension_numbers<[1], [1], [0], [0], [0, 0, 1, 0], [], []>} : vector<8x8xf32>, vector<8x8xf32>, vector<8x8xf32> -> vector<8x8xf32>
    %cst_21 = arith.constant dense<0xFF800000> : vector<8xf32>
    %23 = vector.multi_reduction <maximumf>, %22, %cst_21 [1] : vector<8x8xf32> to vector<8xf32>
    %24 = vector.shape_cast %23 : vector<8xf32> to vector<8x1xf32>
    %25 = vector.broadcast %24 : vector<8x1xf32> to vector<8x8xf32>
    %26 = arith.subf %22, %25 : vector<8x8xf32>
    %27 = math.exp %26 : vector<8x8xf32>
    %cst_22 = arith.constant dense<0.000000e+00> : vector<8xf32>
    %28 = vector.multi_reduction <add>, %27, %cst_22 [1] : vector<8x8xf32> to vector<8xf32>
    %29 = vector.shape_cast %28 : vector<8xf32> to vector<8x1xf32>
    %30 = tpu.reciprocal %29 {approx = true} : vector<8x1xf32> -> vector<8x1xf32>
    %31 = vector.broadcast %30 : vector<8x1xf32> to vector<8x8xf32>
    %32 = arith.mulf %27, %31 : vector<8x8xf32>
    %cst_23 = arith.constant dense<0.000000e+00> : vector<8x8xf32>
    %33 = tpu.matmul %32, %21, %cst_23 {dimension_numbers = #tpu.dot_dimension_numbers<[1], [0], [0], [1], [0, 0, 1, 1], [], []>} : vector<8x8xf32>, vector<8x8xf32>, vector<8x8xf32> -> vector<8x8xf32>
    %34 = vector.extract_strided_slice %7 {offsets = [0, 0], sizes = [8, 32], strides = [1, 1]} : vector<32x32xf32> to vector<8x32xf32>
    %cst_24 = arith.constant dense<0.000000e+00> : vector<8x32xf32>
    %35 = tpu.matmul %33, %34, %cst_24 {dimension_numbers = #tpu.dot_dimension_numbers<[1], [0], [0], [1], [0, 0, 1, 1], [], []>} : vector<8x8xf32>, vector<8x32xf32>, vector<8x32xf32> -> vector<8x32xf32>
    %36 = arith.addf %18, %35 : vector<8x32xf32>
    %37 = vector.extract_strided_slice %15 {offsets = [0, 8], sizes = [8, 8], strides = [1, 1]} : vector<8x32xf32> to vector<8x8xf32>
    %38 = vector.extract_strided_slice %16 {offsets = [0, 8], sizes = [8, 8], strides = [1, 1]} : vector<8x32xf32> to vector<8x8xf32>
    %39 = vector.extract_strided_slice %17 {offsets = [0, 8], sizes = [8, 8], strides = [1, 1]} : vector<8x32xf32> to vector<8x8xf32>
    %cst_25 = arith.constant dense<0.000000e+00> : vector<8x8xf32>
    %40 = tpu.matmul %37, %38, %cst_25 {dimension_numbers = #tpu.dot_dimension_numbers<[1], [1], [0], [0], [0, 0, 1, 0], [], []>} : vector<8x8xf32>, vector<8x8xf32>, vector<8x8xf32> -> vector<8x8xf32>
    %cst_26 = arith.constant dense<0xFF800000> : vector<8xf32>
    %41 = vector.multi_reduction <maximumf>, %40, %cst_26 [1] : vector<8x8xf32> to vector<8xf32>
    %42 = vector.shape_cast %41 : vector<8xf32> to vector<8x1xf32>
    %43 = vector.broadcast %42 : vector<8x1xf32> to vector<8x8xf32>
    %44 = arith.subf %40, %43 : vector<8x8xf32>
    %45 = math.exp %44 : vector<8x8xf32>
    %cst_27 = arith.constant dense<0.000000e+00> : vector<8xf32>
    %46 = vector.multi_reduction <add>, %45, %cst_27 [1] : vector<8x8xf32> to vector<8xf32>
    %47 = vector.shape_cast %46 : vector<8xf32> to vector<8x1xf32>
    %48 = tpu.reciprocal %47 {approx = true} : vector<8x1xf32> -> vector<8x1xf32>
    %49 = vector.broadcast %48 : vector<8x1xf32> to vector<8x8xf32>
    %50 = arith.mulf %45, %49 : vector<8x8xf32>
    %cst_28 = arith.constant dense<0.000000e+00> : vector<8x8xf32>
    %51 = tpu.matmul %50, %39, %cst_28 {dimension_numbers = #tpu.dot_dimension_numbers<[1], [0], [0], [1], [0, 0, 1, 1], [], []>} : vector<8x8xf32>, vector<8x8xf32>, vector<8x8xf32> -> vector<8x8xf32>
    %52 = vector.extract_strided_slice %7 {offsets = [8, 0], sizes = [8, 32], strides = [1, 1]} : vector<32x32xf32> to vector<8x32xf32>
    %cst_29 = arith.constant dense<0.000000e+00> : vector<8x32xf32>
    %53 = tpu.matmul %51, %52, %cst_29 {dimension_numbers = #tpu.dot_dimension_numbers<[1], [0], [0], [1], [0, 0, 1, 1], [], []>} : vector<8x8xf32>, vector<8x32xf32>, vector<8x32xf32> -> vector<8x32xf32>
    %54 = arith.addf %36, %53 : vector<8x32xf32>
    %55 = vector.extract_strided_slice %15 {offsets = [0, 16], sizes = [8, 8], strides = [1, 1]} : vector<8x32xf32> to vector<8x8xf32>
    %56 = vector.extract_strided_slice %16 {offsets = [0, 16], sizes = [8, 8], strides = [1, 1]} : vector<8x32xf32> to vector<8x8xf32>
    %57 = vector.extract_strided_slice %17 {offsets = [0, 16], sizes = [8, 8], strides = [1, 1]} : vector<8x32xf32> to vector<8x8xf32>
    %cst_30 = arith.constant dense<0.000000e+00> : vector<8x8xf32>
    %58 = tpu.matmul %55, %56, %cst_30 {dimension_numbers = #tpu.dot_dimension_numbers<[1], [1], [0], [0], [0, 0, 1, 0], [], []>} : vector<8x8xf32>, vector<8x8xf32>, vector<8x8xf32> -> vector<8x8xf32>
    %cst_31 = arith.constant dense<0xFF800000> : vector<8xf32>
    %59 = vector.multi_reduction <maximumf>, %58, %cst_31 [1] : vector<8x8xf32> to vector<8xf32>
    %60 = vector.shape_cast %59 : vector<8xf32> to vector<8x1xf32>
    %61 = vector.broadcast %60 : vector<8x1xf32> to vector<8x8xf32>
    %62 = arith.subf %58, %61 : vector<8x8xf32>
    %63 = math.exp %62 : vector<8x8xf32>
    %cst_32 = arith.constant dense<0.000000e+00> : vector<8xf32>
    %64 = vector.multi_reduction <add>, %63, %cst_32 [1] : vector<8x8xf32> to vector<8xf32>
    %65 = vector.shape_cast %64 : vector<8xf32> to vector<8x1xf32>
    %66 = tpu.reciprocal %65 {approx = true} : vector<8x1xf32> -> vector<8x1xf32>
    %67 = vector.broadcast %66 : vector<8x1xf32> to vector<8x8xf32>
    %68 = arith.mulf %63, %67 : vector<8x8xf32>
    %cst_33 = arith.constant dense<0.000000e+00> : vector<8x8xf32>
    %69 = tpu.matmul %68, %57, %cst_33 {dimension_numbers = #tpu.dot_dimension_numbers<[1], [0], [0], [1], [0, 0, 1, 1], [], []>} : vector<8x8xf32>, vector<8x8xf32>, vector<8x8xf32> -> vector<8x8xf32>
    %70 = vector.extract_strided_slice %7 {offsets = [16, 0], sizes = [8, 32], strides = [1, 1]} : vector<32x32xf32> to vector<8x32xf32>
    %cst_34 = arith.constant dense<0.000000e+00> : vector<8x32xf32>
    %71 = tpu.matmul %69, %70, %cst_34 {dimension_numbers = #tpu.dot_dimension_numbers<[1], [0], [0], [1], [0, 0, 1, 1], [], []>} : vector<8x8xf32>, vector<8x32xf32>, vector<8x32xf32> -> vector<8x32xf32>
    %72 = arith.addf %54, %71 : vector<8x32xf32>
    %73 = vector.extract_strided_slice %15 {offsets = [0, 24], sizes = [8, 8], strides = [1, 1]} : vector<8x32xf32> to vector<8x8xf32>
    %74 = vector.extract_strided_slice %16 {offsets = [0, 24], sizes = [8, 8], strides = [1, 1]} : vector<8x32xf32> to vector<8x8xf32>
    %75 = vector.extract_strided_slice %17 {offsets = [0, 24], sizes = [8, 8], strides = [1, 1]} : vector<8x32xf32> to vector<8x8xf32>
    %cst_35 = arith.constant dense<0.000000e+00> : vector<8x8xf32>
    %76 = tpu.matmul %73, %74, %cst_35 {dimension_numbers = #tpu.dot_dimension_numbers<[1], [1], [0], [0], [0, 0, 1, 0], [], []>} : vector<8x8xf32>, vector<8x8xf32>, vector<8x8xf32> -> vector<8x8xf32>
    %cst_36 = arith.constant dense<0xFF800000> : vector<8xf32>
    %77 = vector.multi_reduction <maximumf>, %76, %cst_36 [1] : vector<8x8xf32> to vector<8xf32>
    %78 = vector.shape_cast %77 : vector<8xf32> to vector<8x1xf32>
    %79 = vector.broadcast %78 : vector<8x1xf32> to vector<8x8xf32>
    %80 = arith.subf %76, %79 : vector<8x8xf32>
    %81 = math.exp %80 : vector<8x8xf32>
    %cst_37 = arith.constant dense<0.000000e+00> : vector<8xf32>
    %82 = vector.multi_reduction <add>, %81, %cst_37 [1] : vector<8x8xf32> to vector<8xf32>
    %83 = vector.shape_cast %82 : vector<8xf32> to vector<8x1xf32>
    %84 = tpu.reciprocal %83 {approx = true} : vector<8x1xf32> -> vector<8x1xf32>
    %85 = vector.broadcast %84 : vector<8x1xf32> to vector<8x8xf32>
    %86 = arith.mulf %81, %85 : vector<8x8xf32>
    %cst_38 = arith.constant dense<0.000000e+00> : vector<8x8xf32>
    %87 = tpu.matmul %86, %75, %cst_38 {dimension_numbers = #tpu.dot_dimension_numbers<[1], [0], [0], [1], [0, 0, 1, 1], [], []>} : vector<8x8xf32>, vector<8x8xf32>, vector<8x8xf32> -> vector<8x8xf32>
    %88 = vector.extract_strided_slice %7 {offsets = [24, 0], sizes = [8, 32], strides = [1, 1]} : vector<32x32xf32> to vector<8x32xf32>
    %cst_39 = arith.constant dense<0.000000e+00> : vector<8x32xf32>
    %89 = tpu.matmul %87, %88, %cst_39 {dimension_numbers = #tpu.dot_dimension_numbers<[1], [0], [0], [1], [0, 0, 1, 1], [], []>} : vector<8x8xf32>, vector<8x32xf32>, vector<8x32xf32> -> vector<8x32xf32>
    %90 = arith.addf %72, %89 : vector<8x32xf32>
    %91 = vector.broadcast %9 : vector<1x32xf32> to vector<8x32xf32>
    %92 = arith.addf %90, %91 : vector<8x32xf32>
    %c2 = arith.constant 2 : index
    %c0_40 = arith.constant 0 : index
    %c0_41 = arith.constant 0 : index
    %c0_42 = arith.constant 0 : index
    %93 = vector.load %arg11[%c2, %c0_40, %c0_41, %c0_42] : memref<16x2x1x32xf32, #tpu.memory_space<vmem>>, vector<1x1x1x32xf32>
    %94 = vector.shape_cast %93 : vector<1x1x1x32xf32> to vector<1x32xf32>
    %c3 = arith.constant 3 : index
    %c0_43 = arith.constant 0 : index
    %c0_44 = arith.constant 0 : index
    %c0_45 = arith.constant 0 : index
    %95 = vector.load %arg11[%c3, %c0_43, %c0_44, %c0_45] : memref<16x2x1x32xf32, #tpu.memory_space<vmem>>, vector<1x1x1x32xf32>
    %96 = vector.shape_cast %95 : vector<1x1x1x32xf32> to vector<1x32xf32>
    %97 = arith.addf %1, %92 : vector<8x32xf32>
    %cst_46 = arith.constant dense<0.000000e+00> : vector<8xf32>
    %98 = vector.multi_reduction <add>, %97, %cst_46 [1] : vector<8x32xf32> to vector<8xf32>
    %99 = vector.shape_cast %98 : vector<8xf32> to vector<8x1xf32>
    %cst_47 = arith.constant 3.200000e+01 : f32
    %100 = vector.broadcast %cst_47 : f32 to vector<8x1xf32>
    %101 = arith.divf %99, %100 : vector<8x1xf32>
    %102 = vector.broadcast %101 : vector<8x1xf32> to vector<8x32xf32>
    %103 = arith.subf %97, %102 : vector<8x32xf32>
    %104 = arith.mulf %103, %103 : vector<8x32xf32>
    %cst_48 = arith.constant dense<0.000000e+00> : vector<8xf32>
    %105 = vector.multi_reduction <add>, %104, %cst_48 [1] : vector<8x32xf32> to vector<8xf32>
    %106 = vector.shape_cast %105 : vector<8xf32> to vector<8x1xf32>
    %cst_49 = arith.constant 3.200000e+01 : f32
    %107 = vector.broadcast %cst_49 : f32 to vector<8x1xf32>
    %108 = arith.divf %106, %107 : vector<8x1xf32>
    %109 = vector.broadcast %101 : vector<8x1xf32> to vector<8x32xf32>
    %110 = arith.subf %97, %109 : vector<8x32xf32>
    %cst_50 = arith.constant 9.99999974E-6 : f32
    %111 = vector.broadcast %cst_50 : f32 to vector<8x1xf32>
    %112 = arith.addf %108, %111 : vector<8x1xf32>
    %113 = math.rsqrt %112 : vector<8x1xf32>
    %114 = vector.broadcast %113 : vector<8x1xf32> to vector<8x32xf32>
    %115 = arith.mulf %110, %114 : vector<8x32xf32>
    %116 = vector.broadcast %94 : vector<1x32xf32> to vector<8x32xf32>
    %117 = arith.mulf %115, %116 : vector<8x32xf32>
    %118 = vector.broadcast %96 : vector<1x32xf32> to vector<8x32xf32>
    %119 = arith.addf %117, %118 : vector<8x32xf32>
    %c0_51 = arith.constant 0 : index
    %c0_52 = arith.constant 0 : index
    %c0_53 = arith.constant 0 : index
    %c0_54 = arith.constant 0 : index
    %120 = vector.load %arg8[%c0_51, %c0_52, %c0_53, %c0_54] : memref<2x2x32x64xf32, #tpu.memory_space<vmem>>, vector<1x1x32x64xf32>
    %121 = vector.shape_cast %120 : vector<1x1x32x64xf32> to vector<32x64xf32>
    %c0_55 = arith.constant 0 : index
    %c0_56 = arith.constant 0 : index
    %c0_57 = arith.constant 0 : index
    %c0_58 = arith.constant 0 : index
    %122 = vector.load %arg9[%c0_55, %c0_56, %c0_57, %c0_58] : memref<2x2x1x64xf32, #tpu.memory_space<vmem>>, vector<1x1x1x64xf32>
    %123 = vector.shape_cast %122 : vector<1x1x1x64xf32> to vector<1x64xf32>
    %c0_59 = arith.constant 0 : index
    %c0_60 = arith.constant 0 : index
    %c0_61 = arith.constant 0 : index
    %c0_62 = arith.constant 0 : index
    %124 = vector.load %arg10[%c0_59, %c0_60, %c0_61, %c0_62] : memref<2x2x64x32xf32, #tpu.memory_space<vmem>>, vector<1x1x64x32xf32>
    %125 = vector.shape_cast %124 : vector<1x1x64x32xf32> to vector<64x32xf32>
    %c1 = arith.constant 1 : index
    %c0_63 = arith.constant 0 : index
    %c0_64 = arith.constant 0 : index
    %c0_65 = arith.constant 0 : index
    %126 = vector.load %arg11[%c1, %c0_63, %c0_64, %c0_65] : memref<16x2x1x32xf32, #tpu.memory_space<vmem>>, vector<1x1x1x32xf32>
    %127 = vector.shape_cast %126 : vector<1x1x1x32xf32> to vector<1x32xf32>
    %cst_66 = arith.constant dense<0.000000e+00> : vector<8x64xf32>
    %128 = tpu.matmul %119, %121, %cst_66 {dimension_numbers = #tpu.dot_dimension_numbers<[1], [0], [0], [1], [0, 0, 1, 1], [], []>} : vector<8x32xf32>, vector<32x64xf32>, vector<8x64xf32> -> vector<8x64xf32>
    %129 = vector.broadcast %123 : vector<1x64xf32> to vector<8x64xf32>
    %130 = arith.addf %128, %129 : vector<8x64xf32>
    %cst_67 = arith.constant 0.000000e+00 : f32
    %131 = vector.broadcast %cst_67 : f32 to vector<8x64xf32>
    %132 = arith.maximumf %130, %131 : vector<8x64xf32>
    %cst_68 = arith.constant dense<0.000000e+00> : vector<8x32xf32>
    %133 = tpu.matmul %132, %125, %cst_68 {dimension_numbers = #tpu.dot_dimension_numbers<[1], [0], [0], [1], [0, 0, 1, 1], [], []>} : vector<8x64xf32>, vector<64x32xf32>, vector<8x32xf32> -> vector<8x32xf32>
    %134 = vector.broadcast %127 : vector<1x32xf32> to vector<8x32xf32>
    %135 = arith.addf %133, %134 : vector<8x32xf32>
    %c4 = arith.constant 4 : index
    %c0_69 = arith.constant 0 : index
    %c0_70 = arith.constant 0 : index
    %c0_71 = arith.constant 0 : index
    %136 = vector.load %arg11[%c4, %c0_69, %c0_70, %c0_71] : memref<16x2x1x32xf32, #tpu.memory_space<vmem>>, vector<1x1x1x32xf32>
    %137 = vector.shape_cast %136 : vector<1x1x1x32xf32> to vector<1x32xf32>
    %c5 = arith.constant 5 : index
    %c0_72 = arith.constant 0 : index
    %c0_73 = arith.constant 0 : index
    %c0_74 = arith.constant 0 : index
    %138 = vector.load %arg11[%c5, %c0_72, %c0_73, %c0_74] : memref<16x2x1x32xf32, #tpu.memory_space<vmem>>, vector<1x1x1x32xf32>
    %139 = vector.shape_cast %138 : vector<1x1x1x32xf32> to vector<1x32xf32>
    %140 = arith.addf %119, %135 : vector<8x32xf32>
    %cst_75 = arith.constant dense<0.000000e+00> : vector<8xf32>
    %141 = vector.multi_reduction <add>, %140, %cst_75 [1] : vector<8x32xf32> to vector<8xf32>
    %142 = vector.shape_cast %141 : vector<8xf32> to vector<8x1xf32>
    %cst_76 = arith.constant 3.200000e+01 : f32
    %143 = vector.broadcast %cst_76 : f32 to vector<8x1xf32>
    %144 = arith.divf %142, %143 : vector<8x1xf32>
    %145 = vector.broadcast %144 : vector<8x1xf32> to vector<8x32xf32>
    %146 = arith.subf %140, %145 : vector<8x32xf32>
    %147 = arith.mulf %146, %146 : vector<8x32xf32>
    %cst_77 = arith.constant dense<0.000000e+00> : vector<8xf32>
    %148 = vector.multi_reduction <add>, %147, %cst_77 [1] : vector<8x32xf32> to vector<8xf32>
    %149 = vector.shape_cast %148 : vector<8xf32> to vector<8x1xf32>
    %cst_78 = arith.constant 3.200000e+01 : f32
    %150 = vector.broadcast %cst_78 : f32 to vector<8x1xf32>
    %151 = arith.divf %149, %150 : vector<8x1xf32>
    %152 = vector.broadcast %144 : vector<8x1xf32> to vector<8x32xf32>
    %153 = arith.subf %140, %152 : vector<8x32xf32>
    %cst_79 = arith.constant 9.99999974E-6 : f32
    %154 = vector.broadcast %cst_79 : f32 to vector<8x1xf32>
    %155 = arith.addf %151, %154 : vector<8x1xf32>
    %156 = math.rsqrt %155 : vector<8x1xf32>
    %157 = vector.broadcast %156 : vector<8x1xf32> to vector<8x32xf32>
    %158 = arith.mulf %153, %157 : vector<8x32xf32>
    %159 = vector.broadcast %137 : vector<1x32xf32> to vector<8x32xf32>
    %160 = arith.mulf %158, %159 : vector<8x32xf32>
    %161 = vector.broadcast %139 : vector<1x32xf32> to vector<8x32xf32>
    %162 = arith.addf %160, %161 : vector<8x32xf32>
    %c0_80 = arith.constant 0 : index
    %c1_81 = arith.constant 1 : index
    %c0_82 = arith.constant 0 : index
    %c0_83 = arith.constant 0 : index
    %163 = vector.load %arg3[%c0_80, %c1_81, %c0_82, %c0_83] : memref<2x2x32x96xf32, #tpu.memory_space<vmem>>, vector<1x1x32x96xf32>
    %164 = vector.shape_cast %163 : vector<1x1x32x96xf32> to vector<32x96xf32>
    %c0_84 = arith.constant 0 : index
    %c1_85 = arith.constant 1 : index
    %c0_86 = arith.constant 0 : index
    %c0_87 = arith.constant 0 : index
    %165 = vector.load %arg4[%c0_84, %c1_85, %c0_86, %c0_87] : memref<2x2x1x96xf32, #tpu.memory_space<vmem>>, vector<1x1x1x96xf32>
    %166 = vector.shape_cast %165 : vector<1x1x1x96xf32> to vector<1x96xf32>
    %c0_88 = arith.constant 0 : index
    %c1_89 = arith.constant 1 : index
    %c0_90 = arith.constant 0 : index
    %c0_91 = arith.constant 0 : index
    %167 = vector.load %arg5[%c0_88, %c1_89, %c0_90, %c0_91] : memref<4x2x32x32xf32, #tpu.memory_space<vmem>>, vector<1x1x32x32xf32>
    %168 = vector.shape_cast %167 : vector<1x1x32x32xf32> to vector<32x32xf32>
    %c0_92 = arith.constant 0 : index
    %c1_93 = arith.constant 1 : index
    %c0_94 = arith.constant 0 : index
    %c0_95 = arith.constant 0 : index
    %169 = vector.load %arg11[%c0_92, %c1_93, %c0_94, %c0_95] : memref<16x2x1x32xf32, #tpu.memory_space<vmem>>, vector<1x1x1x32xf32>
    %170 = vector.shape_cast %169 : vector<1x1x1x32xf32> to vector<1x32xf32>
    %cst_96 = arith.constant dense<0.000000e+00> : vector<8x96xf32>
    %171 = tpu.matmul %162, %164, %cst_96 {dimension_numbers = #tpu.dot_dimension_numbers<[1], [0], [0], [1], [0, 0, 1, 1], [], []>} : vector<8x32xf32>, vector<32x96xf32>, vector<8x96xf32> -> vector<8x96xf32>
    %172 = vector.broadcast %166 : vector<1x96xf32> to vector<8x96xf32>
    %173 = arith.addf %171, %172 : vector<8x96xf32>
    %174 = vector.extract_strided_slice %173 {offsets = [0, 0], sizes = [8, 32], strides = [1, 1]} : vector<8x96xf32> to vector<8x32xf32>
    %cst_97 = arith.constant 0.353553385 : f32
    %175 = vector.broadcast %cst_97 : f32 to vector<8x32xf32>
    %176 = arith.mulf %174, %175 : vector<8x32xf32>
    %177 = vector.extract_strided_slice %173 {offsets = [0, 32], sizes = [8, 32], strides = [1, 1]} : vector<8x96xf32> to vector<8x32xf32>
    %178 = vector.extract_strided_slice %173 {offsets = [0, 64], sizes = [8, 32], strides = [1, 1]} : vector<8x96xf32> to vector<8x32xf32>
    %cst_98 = arith.constant 0.000000e+00 : f32
    %179 = vector.broadcast %cst_98 : f32 to vector<8x32xf32>
    %180 = vector.extract_strided_slice %176 {offsets = [0, 0], sizes = [8, 8], strides = [1, 1]} : vector<8x32xf32> to vector<8x8xf32>
    %181 = vector.extract_strided_slice %177 {offsets = [0, 0], sizes = [8, 8], strides = [1, 1]} : vector<8x32xf32> to vector<8x8xf32>
    %182 = vector.extract_strided_slice %178 {offsets = [0, 0], sizes = [8, 8], strides = [1, 1]} : vector<8x32xf32> to vector<8x8xf32>
    %cst_99 = arith.constant dense<0.000000e+00> : vector<8x8xf32>
    %183 = tpu.matmul %180, %181, %cst_99 {dimension_numbers = #tpu.dot_dimension_numbers<[1], [1], [0], [0], [0, 0, 1, 0], [], []>} : vector<8x8xf32>, vector<8x8xf32>, vector<8x8xf32> -> vector<8x8xf32>
    %cst_100 = arith.constant dense<0xFF800000> : vector<8xf32>
    %184 = vector.multi_reduction <maximumf>, %183, %cst_100 [1] : vector<8x8xf32> to vector<8xf32>
    %185 = vector.shape_cast %184 : vector<8xf32> to vector<8x1xf32>
    %186 = vector.broadcast %185 : vector<8x1xf32> to vector<8x8xf32>
    %187 = arith.subf %183, %186 : vector<8x8xf32>
    %188 = math.exp %187 : vector<8x8xf32>
    %cst_101 = arith.constant dense<0.000000e+00> : vector<8xf32>
    %189 = vector.multi_reduction <add>, %188, %cst_101 [1] : vector<8x8xf32> to vector<8xf32>
    %190 = vector.shape_cast %189 : vector<8xf32> to vector<8x1xf32>
    %191 = tpu.reciprocal %190 {approx = true} : vector<8x1xf32> -> vector<8x1xf32>
    %192 = vector.broadcast %191 : vector<8x1xf32> to vector<8x8xf32>
    %193 = arith.mulf %188, %192 : vector<8x8xf32>
    %cst_102 = arith.constant dense<0.000000e+00> : vector<8x8xf32>
    %194 = tpu.matmul %193, %182, %cst_102 {dimension_numbers = #tpu.dot_dimension_numbers<[1], [0], [0], [1], [0, 0, 1, 1], [], []>} : vector<8x8xf32>, vector<8x8xf32>, vector<8x8xf32> -> vector<8x8xf32>
    %195 = vector.extract_strided_slice %168 {offsets = [0, 0], sizes = [8, 32], strides = [1, 1]} : vector<32x32xf32> to vector<8x32xf32>
    %cst_103 = arith.constant dense<0.000000e+00> : vector<8x32xf32>
    %196 = tpu.matmul %194, %195, %cst_103 {dimension_numbers = #tpu.dot_dimension_numbers<[1], [0], [0], [1], [0, 0, 1, 1], [], []>} : vector<8x8xf32>, vector<8x32xf32>, vector<8x32xf32> -> vector<8x32xf32>
    %197 = arith.addf %179, %196 : vector<8x32xf32>
    %198 = vector.extract_strided_slice %176 {offsets = [0, 8], sizes = [8, 8], strides = [1, 1]} : vector<8x32xf32> to vector<8x8xf32>
    %199 = vector.extract_strided_slice %177 {offsets = [0, 8], sizes = [8, 8], strides = [1, 1]} : vector<8x32xf32> to vector<8x8xf32>
    %200 = vector.extract_strided_slice %178 {offsets = [0, 8], sizes = [8, 8], strides = [1, 1]} : vector<8x32xf32> to vector<8x8xf32>
    %cst_104 = arith.constant dense<0.000000e+00> : vector<8x8xf32>
    %201 = tpu.matmul %198, %199, %cst_104 {dimension_numbers = #tpu.dot_dimension_numbers<[1], [1], [0], [0], [0, 0, 1, 0], [], []>} : vector<8x8xf32>, vector<8x8xf32>, vector<8x8xf32> -> vector<8x8xf32>
    %cst_105 = arith.constant dense<0xFF800000> : vector<8xf32>
    %202 = vector.multi_reduction <maximumf>, %201, %cst_105 [1] : vector<8x8xf32> to vector<8xf32>
    %203 = vector.shape_cast %202 : vector<8xf32> to vector<8x1xf32>
    %204 = vector.broadcast %203 : vector<8x1xf32> to vector<8x8xf32>
    %205 = arith.subf %201, %204 : vector<8x8xf32>
    %206 = math.exp %205 : vector<8x8xf32>
    %cst_106 = arith.constant dense<0.000000e+00> : vector<8xf32>
    %207 = vector.multi_reduction <add>, %206, %cst_106 [1] : vector<8x8xf32> to vector<8xf32>
    %208 = vector.shape_cast %207 : vector<8xf32> to vector<8x1xf32>
    %209 = tpu.reciprocal %208 {approx = true} : vector<8x1xf32> -> vector<8x1xf32>
    %210 = vector.broadcast %209 : vector<8x1xf32> to vector<8x8xf32>
    %211 = arith.mulf %206, %210 : vector<8x8xf32>
    %cst_107 = arith.constant dense<0.000000e+00> : vector<8x8xf32>
    %212 = tpu.matmul %211, %200, %cst_107 {dimension_numbers = #tpu.dot_dimension_numbers<[1], [0], [0], [1], [0, 0, 1, 1], [], []>} : vector<8x8xf32>, vector<8x8xf32>, vector<8x8xf32> -> vector<8x8xf32>
    %213 = vector.extract_strided_slice %168 {offsets = [8, 0], sizes = [8, 32], strides = [1, 1]} : vector<32x32xf32> to vector<8x32xf32>
    %cst_108 = arith.constant dense<0.000000e+00> : vector<8x32xf32>
    %214 = tpu.matmul %212, %213, %cst_108 {dimension_numbers = #tpu.dot_dimension_numbers<[1], [0], [0], [1], [0, 0, 1, 1], [], []>} : vector<8x8xf32>, vector<8x32xf32>, vector<8x32xf32> -> vector<8x32xf32>
    %215 = arith.addf %197, %214 : vector<8x32xf32>
    %216 = vector.extract_strided_slice %176 {offsets = [0, 16], sizes = [8, 8], strides = [1, 1]} : vector<8x32xf32> to vector<8x8xf32>
    %217 = vector.extract_strided_slice %177 {offsets = [0, 16], sizes = [8, 8], strides = [1, 1]} : vector<8x32xf32> to vector<8x8xf32>
    %218 = vector.extract_strided_slice %178 {offsets = [0, 16], sizes = [8, 8], strides = [1, 1]} : vector<8x32xf32> to vector<8x8xf32>
    %cst_109 = arith.constant dense<0.000000e+00> : vector<8x8xf32>
    %219 = tpu.matmul %216, %217, %cst_109 {dimension_numbers = #tpu.dot_dimension_numbers<[1], [1], [0], [0], [0, 0, 1, 0], [], []>} : vector<8x8xf32>, vector<8x8xf32>, vector<8x8xf32> -> vector<8x8xf32>
    %cst_110 = arith.constant dense<0xFF800000> : vector<8xf32>
    %220 = vector.multi_reduction <maximumf>, %219, %cst_110 [1] : vector<8x8xf32> to vector<8xf32>
    %221 = vector.shape_cast %220 : vector<8xf32> to vector<8x1xf32>
    %222 = vector.broadcast %221 : vector<8x1xf32> to vector<8x8xf32>
    %223 = arith.subf %219, %222 : vector<8x8xf32>
    %224 = math.exp %223 : vector<8x8xf32>
    %cst_111 = arith.constant dense<0.000000e+00> : vector<8xf32>
    %225 = vector.multi_reduction <add>, %224, %cst_111 [1] : vector<8x8xf32> to vector<8xf32>
    %226 = vector.shape_cast %225 : vector<8xf32> to vector<8x1xf32>
    %227 = tpu.reciprocal %226 {approx = true} : vector<8x1xf32> -> vector<8x1xf32>
    %228 = vector.broadcast %227 : vector<8x1xf32> to vector<8x8xf32>
    %229 = arith.mulf %224, %228 : vector<8x8xf32>
    %cst_112 = arith.constant dense<0.000000e+00> : vector<8x8xf32>
    %230 = tpu.matmul %229, %218, %cst_112 {dimension_numbers = #tpu.dot_dimension_numbers<[1], [0], [0], [1], [0, 0, 1, 1], [], []>} : vector<8x8xf32>, vector<8x8xf32>, vector<8x8xf32> -> vector<8x8xf32>
    %231 = vector.extract_strided_slice %168 {offsets = [16, 0], sizes = [8, 32], strides = [1, 1]} : vector<32x32xf32> to vector<8x32xf32>
    %cst_113 = arith.constant dense<0.000000e+00> : vector<8x32xf32>
    %232 = tpu.matmul %230, %231, %cst_113 {dimension_numbers = #tpu.dot_dimension_numbers<[1], [0], [0], [1], [0, 0, 1, 1], [], []>} : vector<8x8xf32>, vector<8x32xf32>, vector<8x32xf32> -> vector<8x32xf32>
    %233 = arith.addf %215, %232 : vector<8x32xf32>
    %234 = vector.extract_strided_slice %176 {offsets = [0, 24], sizes = [8, 8], strides = [1, 1]} : vector<8x32xf32> to vector<8x8xf32>
    %235 = vector.extract_strided_slice %177 {offsets = [0, 24], sizes = [8, 8], strides = [1, 1]} : vector<8x32xf32> to vector<8x8xf32>
    %236 = vector.extract_strided_slice %178 {offsets = [0, 24], sizes = [8, 8], strides = [1, 1]} : vector<8x32xf32> to vector<8x8xf32>
    %cst_114 = arith.constant dense<0.000000e+00> : vector<8x8xf32>
    %237 = tpu.matmul %234, %235, %cst_114 {dimension_numbers = #tpu.dot_dimension_numbers<[1], [1], [0], [0], [0, 0, 1, 0], [], []>} : vector<8x8xf32>, vector<8x8xf32>, vector<8x8xf32> -> vector<8x8xf32>
    %cst_115 = arith.constant dense<0xFF800000> : vector<8xf32>
    %238 = vector.multi_reduction <maximumf>, %237, %cst_115 [1] : vector<8x8xf32> to vector<8xf32>
    %239 = vector.shape_cast %238 : vector<8xf32> to vector<8x1xf32>
    %240 = vector.broadcast %239 : vector<8x1xf32> to vector<8x8xf32>
    %241 = arith.subf %237, %240 : vector<8x8xf32>
    %242 = math.exp %241 : vector<8x8xf32>
    %cst_116 = arith.constant dense<0.000000e+00> : vector<8xf32>
    %243 = vector.multi_reduction <add>, %242, %cst_116 [1] : vector<8x8xf32> to vector<8xf32>
    %244 = vector.shape_cast %243 : vector<8xf32> to vector<8x1xf32>
    %245 = tpu.reciprocal %244 {approx = true} : vector<8x1xf32> -> vector<8x1xf32>
    %246 = vector.broadcast %245 : vector<8x1xf32> to vector<8x8xf32>
    %247 = arith.mulf %242, %246 : vector<8x8xf32>
    %cst_117 = arith.constant dense<0.000000e+00> : vector<8x8xf32>
    %248 = tpu.matmul %247, %236, %cst_117 {dimension_numbers = #tpu.dot_dimension_numbers<[1], [0], [0], [1], [0, 0, 1, 1], [], []>} : vector<8x8xf32>, vector<8x8xf32>, vector<8x8xf32> -> vector<8x8xf32>
    %249 = vector.extract_strided_slice %168 {offsets = [24, 0], sizes = [8, 32], strides = [1, 1]} : vector<32x32xf32> to vector<8x32xf32>
    %cst_118 = arith.constant dense<0.000000e+00> : vector<8x32xf32>
    %250 = tpu.matmul %248, %249, %cst_118 {dimension_numbers = #tpu.dot_dimension_numbers<[1], [0], [0], [1], [0, 0, 1, 1], [], []>} : vector<8x8xf32>, vector<8x32xf32>, vector<8x32xf32> -> vector<8x32xf32>
    %251 = arith.addf %233, %250 : vector<8x32xf32>
    %252 = vector.broadcast %170 : vector<1x32xf32> to vector<8x32xf32>
    %253 = arith.addf %251, %252 : vector<8x32xf32>
    %c2_119 = arith.constant 2 : index
    %c1_120 = arith.constant 1 : index
    %c0_121 = arith.constant 0 : index
    %c0_122 = arith.constant 0 : index
    %254 = vector.load %arg11[%c2_119, %c1_120, %c0_121, %c0_122] : memref<16x2x1x32xf32, #tpu.memory_space<vmem>>, vector<1x1x1x32xf32>
    %255 = vector.shape_cast %254 : vector<1x1x1x32xf32> to vector<1x32xf32>
    %c3_123 = arith.constant 3 : index
    %c1_124 = arith.constant 1 : index
    %c0_125 = arith.constant 0 : index
    %c0_126 = arith.constant 0 : index
    %256 = vector.load %arg11[%c3_123, %c1_124, %c0_125, %c0_126] : memref<16x2x1x32xf32, #tpu.memory_space<vmem>>, vector<1x1x1x32xf32>
    %257 = vector.shape_cast %256 : vector<1x1x1x32xf32> to vector<1x32xf32>
    %258 = arith.addf %162, %253 : vector<8x32xf32>
    %cst_127 = arith.constant dense<0.000000e+00> : vector<8xf32>
    %259 = vector.multi_reduction <add>, %258, %cst_127 [1] : vector<8x32xf32> to vector<8xf32>
    %260 = vector.shape_cast %259 : vector<8xf32> to vector<8x1xf32>
    %cst_128 = arith.constant 3.200000e+01 : f32
    %261 = vector.broadcast %cst_128 : f32 to vector<8x1xf32>
    %262 = arith.divf %260, %261 : vector<8x1xf32>
    %263 = vector.broadcast %262 : vector<8x1xf32> to vector<8x32xf32>
    %264 = arith.subf %258, %263 : vector<8x32xf32>
    %265 = arith.mulf %264, %264 : vector<8x32xf32>
    %cst_129 = arith.constant dense<0.000000e+00> : vector<8xf32>
    %266 = vector.multi_reduction <add>, %265, %cst_129 [1] : vector<8x32xf32> to vector<8xf32>
    %267 = vector.shape_cast %266 : vector<8xf32> to vector<8x1xf32>
    %cst_130 = arith.constant 3.200000e+01 : f32
    %268 = vector.broadcast %cst_130 : f32 to vector<8x1xf32>
    %269 = arith.divf %267, %268 : vector<8x1xf32>
    %270 = vector.broadcast %262 : vector<8x1xf32> to vector<8x32xf32>
    %271 = arith.subf %258, %270 : vector<8x32xf32>
    %cst_131 = arith.constant 9.99999974E-6 : f32
    %272 = vector.broadcast %cst_131 : f32 to vector<8x1xf32>
    %273 = arith.addf %269, %272 : vector<8x1xf32>
    %274 = math.rsqrt %273 : vector<8x1xf32>
    %275 = vector.broadcast %274 : vector<8x1xf32> to vector<8x32xf32>
    %276 = arith.mulf %271, %275 : vector<8x32xf32>
    %277 = vector.broadcast %255 : vector<1x32xf32> to vector<8x32xf32>
    %278 = arith.mulf %276, %277 : vector<8x32xf32>
    %279 = vector.broadcast %257 : vector<1x32xf32> to vector<8x32xf32>
    %280 = arith.addf %278, %279 : vector<8x32xf32>
    %c0_132 = arith.constant 0 : index
    %c1_133 = arith.constant 1 : index
    %c0_134 = arith.constant 0 : index
    %c0_135 = arith.constant 0 : index
    %281 = vector.load %arg8[%c0_132, %c1_133, %c0_134, %c0_135] : memref<2x2x32x64xf32, #tpu.memory_space<vmem>>, vector<1x1x32x64xf32>
    %282 = vector.shape_cast %281 : vector<1x1x32x64xf32> to vector<32x64xf32>
    %c0_136 = arith.constant 0 : index
    %c1_137 = arith.constant 1 : index
    %c0_138 = arith.constant 0 : index
    %c0_139 = arith.constant 0 : index
    %283 = vector.load %arg9[%c0_136, %c1_137, %c0_138, %c0_139] : memref<2x2x1x64xf32, #tpu.memory_space<vmem>>, vector<1x1x1x64xf32>
    %284 = vector.shape_cast %283 : vector<1x1x1x64xf32> to vector<1x64xf32>
    %c0_140 = arith.constant 0 : index
    %c1_141 = arith.constant 1 : index
    %c0_142 = arith.constant 0 : index
    %c0_143 = arith.constant 0 : index
    %285 = vector.load %arg10[%c0_140, %c1_141, %c0_142, %c0_143] : memref<2x2x64x32xf32, #tpu.memory_space<vmem>>, vector<1x1x64x32xf32>
    %286 = vector.shape_cast %285 : vector<1x1x64x32xf32> to vector<64x32xf32>
    %c1_144 = arith.constant 1 : index
    %c1_145 = arith.constant 1 : index
    %c0_146 = arith.constant 0 : index
    %c0_147 = arith.constant 0 : index
    %287 = vector.load %arg11[%c1_144, %c1_145, %c0_146, %c0_147] : memref<16x2x1x32xf32, #tpu.memory_space<vmem>>, vector<1x1x1x32xf32>
    %288 = vector.shape_cast %287 : vector<1x1x1x32xf32> to vector<1x32xf32>
    %cst_148 = arith.constant dense<0.000000e+00> : vector<8x64xf32>
    %289 = tpu.matmul %280, %282, %cst_148 {dimension_numbers = #tpu.dot_dimension_numbers<[1], [0], [0], [1], [0, 0, 1, 1], [], []>} : vector<8x32xf32>, vector<32x64xf32>, vector<8x64xf32> -> vector<8x64xf32>
    %290 = vector.broadcast %284 : vector<1x64xf32> to vector<8x64xf32>
    %291 = arith.addf %289, %290 : vector<8x64xf32>
    %cst_149 = arith.constant 0.000000e+00 : f32
    %292 = vector.broadcast %cst_149 : f32 to vector<8x64xf32>
    %293 = arith.maximumf %291, %292 : vector<8x64xf32>
    %cst_150 = arith.constant dense<0.000000e+00> : vector<8x32xf32>
    %294 = tpu.matmul %293, %286, %cst_150 {dimension_numbers = #tpu.dot_dimension_numbers<[1], [0], [0], [1], [0, 0, 1, 1], [], []>} : vector<8x64xf32>, vector<64x32xf32>, vector<8x32xf32> -> vector<8x32xf32>
    %295 = vector.broadcast %288 : vector<1x32xf32> to vector<8x32xf32>
    %296 = arith.addf %294, %295 : vector<8x32xf32>
    %c4_151 = arith.constant 4 : index
    %c1_152 = arith.constant 1 : index
    %c0_153 = arith.constant 0 : index
    %c0_154 = arith.constant 0 : index
    %297 = vector.load %arg11[%c4_151, %c1_152, %c0_153, %c0_154] : memref<16x2x1x32xf32, #tpu.memory_space<vmem>>, vector<1x1x1x32xf32>
    %298 = vector.shape_cast %297 : vector<1x1x1x32xf32> to vector<1x32xf32>
    %c5_155 = arith.constant 5 : index
    %c1_156 = arith.constant 1 : index
    %c0_157 = arith.constant 0 : index
    %c0_158 = arith.constant 0 : index
    %299 = vector.load %arg11[%c5_155, %c1_156, %c0_157, %c0_158] : memref<16x2x1x32xf32, #tpu.memory_space<vmem>>, vector<1x1x1x32xf32>
    %300 = vector.shape_cast %299 : vector<1x1x1x32xf32> to vector<1x32xf32>
    %301 = arith.addf %280, %296 : vector<8x32xf32>
    %cst_159 = arith.constant dense<0.000000e+00> : vector<8xf32>
    %302 = vector.multi_reduction <add>, %301, %cst_159 [1] : vector<8x32xf32> to vector<8xf32>
    %303 = vector.shape_cast %302 : vector<8xf32> to vector<8x1xf32>
    %cst_160 = arith.constant 3.200000e+01 : f32
    %304 = vector.broadcast %cst_160 : f32 to vector<8x1xf32>
    %305 = arith.divf %303, %304 : vector<8x1xf32>
    %306 = vector.broadcast %305 : vector<8x1xf32> to vector<8x32xf32>
    %307 = arith.subf %301, %306 : vector<8x32xf32>
    %308 = arith.mulf %307, %307 : vector<8x32xf32>
    %cst_161 = arith.constant dense<0.000000e+00> : vector<8xf32>
    %309 = vector.multi_reduction <add>, %308, %cst_161 [1] : vector<8x32xf32> to vector<8xf32>
    %310 = vector.shape_cast %309 : vector<8xf32> to vector<8x1xf32>
    %cst_162 = arith.constant 3.200000e+01 : f32
    %311 = vector.broadcast %cst_162 : f32 to vector<8x1xf32>
    %312 = arith.divf %310, %311 : vector<8x1xf32>
    %313 = vector.broadcast %305 : vector<8x1xf32> to vector<8x32xf32>
    %314 = arith.subf %301, %313 : vector<8x32xf32>
    %cst_163 = arith.constant 9.99999974E-6 : f32
    %315 = vector.broadcast %cst_163 : f32 to vector<8x1xf32>
    %316 = arith.addf %312, %315 : vector<8x1xf32>
    %317 = math.rsqrt %316 : vector<8x1xf32>
    %318 = vector.broadcast %317 : vector<8x1xf32> to vector<8x32xf32>
    %319 = arith.mulf %314, %318 : vector<8x32xf32>
    %320 = vector.broadcast %298 : vector<1x32xf32> to vector<8x32xf32>
    %321 = arith.mulf %319, %320 : vector<8x32xf32>
    %322 = vector.broadcast %300 : vector<1x32xf32> to vector<8x32xf32>
    %323 = arith.addf %321, %322 : vector<8x32xf32>
    %c0_164 = arith.constant 0 : index
    %c0_165 = arith.constant 0 : index
    %c0_166 = arith.constant 0 : index
    %324 = vector.load %arg2[%c0_164, %c0_165, %c0_166] : memref<1x8x32xf32, #tpu.memory_space<vmem>>, vector<1x8x32xf32>
    %325 = vector.shape_cast %324 : vector<1x8x32xf32> to vector<8x32xf32>
    %c1_167 = arith.constant 1 : index
    %c0_168 = arith.constant 0 : index
    %c0_169 = arith.constant 0 : index
    %c0_170 = arith.constant 0 : index
    %326 = vector.load %arg3[%c1_167, %c0_168, %c0_169, %c0_170] : memref<2x2x32x96xf32, #tpu.memory_space<vmem>>, vector<1x1x32x96xf32>
    %327 = vector.shape_cast %326 : vector<1x1x32x96xf32> to vector<32x96xf32>
    %c1_171 = arith.constant 1 : index
    %c0_172 = arith.constant 0 : index
    %c0_173 = arith.constant 0 : index
    %c0_174 = arith.constant 0 : index
    %328 = vector.load %arg4[%c1_171, %c0_172, %c0_173, %c0_174] : memref<2x2x1x96xf32, #tpu.memory_space<vmem>>, vector<1x1x1x96xf32>
    %329 = vector.shape_cast %328 : vector<1x1x1x96xf32> to vector<1x96xf32>
    %c1_175 = arith.constant 1 : index
    %c0_176 = arith.constant 0 : index
    %c0_177 = arith.constant 0 : index
    %c0_178 = arith.constant 0 : index
    %330 = vector.load %arg5[%c1_175, %c0_176, %c0_177, %c0_178] : memref<4x2x32x32xf32, #tpu.memory_space<vmem>>, vector<1x1x32x32xf32>
    %331 = vector.shape_cast %330 : vector<1x1x32x32xf32> to vector<32x32xf32>
    %c6 = arith.constant 6 : index
    %c0_179 = arith.constant 0 : index
    %c0_180 = arith.constant 0 : index
    %c0_181 = arith.constant 0 : index
    %332 = vector.load %arg11[%c6, %c0_179, %c0_180, %c0_181] : memref<16x2x1x32xf32, #tpu.memory_space<vmem>>, vector<1x1x1x32xf32>
    %333 = vector.shape_cast %332 : vector<1x1x1x32xf32> to vector<1x32xf32>
    %cst_182 = arith.constant dense<0.000000e+00> : vector<8x96xf32>
    %334 = tpu.matmul %325, %327, %cst_182 {dimension_numbers = #tpu.dot_dimension_numbers<[1], [0], [0], [1], [0, 0, 1, 1], [], []>} : vector<8x32xf32>, vector<32x96xf32>, vector<8x96xf32> -> vector<8x96xf32>
    %335 = vector.broadcast %329 : vector<1x96xf32> to vector<8x96xf32>
    %336 = arith.addf %334, %335 : vector<8x96xf32>
    %337 = vector.extract_strided_slice %336 {offsets = [0, 0], sizes = [8, 32], strides = [1, 1]} : vector<8x96xf32> to vector<8x32xf32>
    %cst_183 = arith.constant 0.353553385 : f32
    %338 = vector.broadcast %cst_183 : f32 to vector<8x32xf32>
    %339 = arith.mulf %337, %338 : vector<8x32xf32>
    %340 = vector.extract_strided_slice %336 {offsets = [0, 32], sizes = [8, 32], strides = [1, 1]} : vector<8x96xf32> to vector<8x32xf32>
    %341 = vector.extract_strided_slice %336 {offsets = [0, 64], sizes = [8, 32], strides = [1, 1]} : vector<8x96xf32> to vector<8x32xf32>
    %cst_184 = arith.constant 0.000000e+00 : f32
    %342 = vector.broadcast %cst_184 : f32 to vector<8x32xf32>
    %343 = vector.extract_strided_slice %339 {offsets = [0, 0], sizes = [8, 8], strides = [1, 1]} : vector<8x32xf32> to vector<8x8xf32>
    %344 = vector.extract_strided_slice %340 {offsets = [0, 0], sizes = [8, 8], strides = [1, 1]} : vector<8x32xf32> to vector<8x8xf32>
    %345 = vector.extract_strided_slice %341 {offsets = [0, 0], sizes = [8, 8], strides = [1, 1]} : vector<8x32xf32> to vector<8x8xf32>
    %cst_185 = arith.constant dense<0.000000e+00> : vector<8x8xf32>
    %346 = tpu.matmul %343, %344, %cst_185 {dimension_numbers = #tpu.dot_dimension_numbers<[1], [1], [0], [0], [0, 0, 1, 0], [], []>} : vector<8x8xf32>, vector<8x8xf32>, vector<8x8xf32> -> vector<8x8xf32>
    %cst_186 = arith.constant dense<0xFF800000> : vector<8xf32>
    %347 = vector.multi_reduction <maximumf>, %346, %cst_186 [1] : vector<8x8xf32> to vector<8xf32>
    %348 = vector.shape_cast %347 : vector<8xf32> to vector<8x1xf32>
    %349 = vector.broadcast %348 : vector<8x1xf32> to vector<8x8xf32>
    %350 = arith.subf %346, %349 : vector<8x8xf32>
    %351 = math.exp %350 : vector<8x8xf32>
    %cst_187 = arith.constant dense<0.000000e+00> : vector<8xf32>
    %352 = vector.multi_reduction <add>, %351, %cst_187 [1] : vector<8x8xf32> to vector<8xf32>
    %353 = vector.shape_cast %352 : vector<8xf32> to vector<8x1xf32>
    %354 = tpu.reciprocal %353 {approx = true} : vector<8x1xf32> -> vector<8x1xf32>
    %355 = vector.broadcast %354 : vector<8x1xf32> to vector<8x8xf32>
    %356 = arith.mulf %351, %355 : vector<8x8xf32>
    %cst_188 = arith.constant dense<0.000000e+00> : vector<8x8xf32>
    %357 = tpu.matmul %356, %345, %cst_188 {dimension_numbers = #tpu.dot_dimension_numbers<[1], [0], [0], [1], [0, 0, 1, 1], [], []>} : vector<8x8xf32>, vector<8x8xf32>, vector<8x8xf32> -> vector<8x8xf32>
    %358 = vector.extract_strided_slice %331 {offsets = [0, 0], sizes = [8, 32], strides = [1, 1]} : vector<32x32xf32> to vector<8x32xf32>
    %cst_189 = arith.constant dense<0.000000e+00> : vector<8x32xf32>
    %359 = tpu.matmul %357, %358, %cst_189 {dimension_numbers = #tpu.dot_dimension_numbers<[1], [0], [0], [1], [0, 0, 1, 1], [], []>} : vector<8x8xf32>, vector<8x32xf32>, vector<8x32xf32> -> vector<8x32xf32>
    %360 = arith.addf %342, %359 : vector<8x32xf32>
    %361 = vector.extract_strided_slice %339 {offsets = [0, 8], sizes = [8, 8], strides = [1, 1]} : vector<8x32xf32> to vector<8x8xf32>
    %362 = vector.extract_strided_slice %340 {offsets = [0, 8], sizes = [8, 8], strides = [1, 1]} : vector<8x32xf32> to vector<8x8xf32>
    %363 = vector.extract_strided_slice %341 {offsets = [0, 8], sizes = [8, 8], strides = [1, 1]} : vector<8x32xf32> to vector<8x8xf32>
    %cst_190 = arith.constant dense<0.000000e+00> : vector<8x8xf32>
    %364 = tpu.matmul %361, %362, %cst_190 {dimension_numbers = #tpu.dot_dimension_numbers<[1], [1], [0], [0], [0, 0, 1, 0], [], []>} : vector<8x8xf32>, vector<8x8xf32>, vector<8x8xf32> -> vector<8x8xf32>
    %cst_191 = arith.constant dense<0xFF800000> : vector<8xf32>
    %365 = vector.multi_reduction <maximumf>, %364, %cst_191 [1] : vector<8x8xf32> to vector<8xf32>
    %366 = vector.shape_cast %365 : vector<8xf32> to vector<8x1xf32>
    %367 = vector.broadcast %366 : vector<8x1xf32> to vector<8x8xf32>
    %368 = arith.subf %364, %367 : vector<8x8xf32>
    %369 = math.exp %368 : vector<8x8xf32>
    %cst_192 = arith.constant dense<0.000000e+00> : vector<8xf32>
    %370 = vector.multi_reduction <add>, %369, %cst_192 [1] : vector<8x8xf32> to vector<8xf32>
    %371 = vector.shape_cast %370 : vector<8xf32> to vector<8x1xf32>
    %372 = tpu.reciprocal %371 {approx = true} : vector<8x1xf32> -> vector<8x1xf32>
    %373 = vector.broadcast %372 : vector<8x1xf32> to vector<8x8xf32>
    %374 = arith.mulf %369, %373 : vector<8x8xf32>
    %cst_193 = arith.constant dense<0.000000e+00> : vector<8x8xf32>
    %375 = tpu.matmul %374, %363, %cst_193 {dimension_numbers = #tpu.dot_dimension_numbers<[1], [0], [0], [1], [0, 0, 1, 1], [], []>} : vector<8x8xf32>, vector<8x8xf32>, vector<8x8xf32> -> vector<8x8xf32>
    %376 = vector.extract_strided_slice %331 {offsets = [8, 0], sizes = [8, 32], strides = [1, 1]} : vector<32x32xf32> to vector<8x32xf32>
    %cst_194 = arith.constant dense<0.000000e+00> : vector<8x32xf32>
    %377 = tpu.matmul %375, %376, %cst_194 {dimension_numbers = #tpu.dot_dimension_numbers<[1], [0], [0], [1], [0, 0, 1, 1], [], []>} : vector<8x8xf32>, vector<8x32xf32>, vector<8x32xf32> -> vector<8x32xf32>
    %378 = arith.addf %360, %377 : vector<8x32xf32>
    %379 = vector.extract_strided_slice %339 {offsets = [0, 16], sizes = [8, 8], strides = [1, 1]} : vector<8x32xf32> to vector<8x8xf32>
    %380 = vector.extract_strided_slice %340 {offsets = [0, 16], sizes = [8, 8], strides = [1, 1]} : vector<8x32xf32> to vector<8x8xf32>
    %381 = vector.extract_strided_slice %341 {offsets = [0, 16], sizes = [8, 8], strides = [1, 1]} : vector<8x32xf32> to vector<8x8xf32>
    %cst_195 = arith.constant dense<0.000000e+00> : vector<8x8xf32>
    %382 = tpu.matmul %379, %380, %cst_195 {dimension_numbers = #tpu.dot_dimension_numbers<[1], [1], [0], [0], [0, 0, 1, 0], [], []>} : vector<8x8xf32>, vector<8x8xf32>, vector<8x8xf32> -> vector<8x8xf32>
    %cst_196 = arith.constant dense<0xFF800000> : vector<8xf32>
    %383 = vector.multi_reduction <maximumf>, %382, %cst_196 [1] : vector<8x8xf32> to vector<8xf32>
    %384 = vector.shape_cast %383 : vector<8xf32> to vector<8x1xf32>
    %385 = vector.broadcast %384 : vector<8x1xf32> to vector<8x8xf32>
    %386 = arith.subf %382, %385 : vector<8x8xf32>
    %387 = math.exp %386 : vector<8x8xf32>
    %cst_197 = arith.constant dense<0.000000e+00> : vector<8xf32>
    %388 = vector.multi_reduction <add>, %387, %cst_197 [1] : vector<8x8xf32> to vector<8xf32>
    %389 = vector.shape_cast %388 : vector<8xf32> to vector<8x1xf32>
    %390 = tpu.reciprocal %389 {approx = true} : vector<8x1xf32> -> vector<8x1xf32>
    %391 = vector.broadcast %390 : vector<8x1xf32> to vector<8x8xf32>
    %392 = arith.mulf %387, %391 : vector<8x8xf32>
    %cst_198 = arith.constant dense<0.000000e+00> : vector<8x8xf32>
    %393 = tpu.matmul %392, %381, %cst_198 {dimension_numbers = #tpu.dot_dimension_numbers<[1], [0], [0], [1], [0, 0, 1, 1], [], []>} : vector<8x8xf32>, vector<8x8xf32>, vector<8x8xf32> -> vector<8x8xf32>
    %394 = vector.extract_strided_slice %331 {offsets = [16, 0], sizes = [8, 32], strides = [1, 1]} : vector<32x32xf32> to vector<8x32xf32>
    %cst_199 = arith.constant dense<0.000000e+00> : vector<8x32xf32>
    %395 = tpu.matmul %393, %394, %cst_199 {dimension_numbers = #tpu.dot_dimension_numbers<[1], [0], [0], [1], [0, 0, 1, 1], [], []>} : vector<8x8xf32>, vector<8x32xf32>, vector<8x32xf32> -> vector<8x32xf32>
    %396 = arith.addf %378, %395 : vector<8x32xf32>
    %397 = vector.extract_strided_slice %339 {offsets = [0, 24], sizes = [8, 8], strides = [1, 1]} : vector<8x32xf32> to vector<8x8xf32>
    %398 = vector.extract_strided_slice %340 {offsets = [0, 24], sizes = [8, 8], strides = [1, 1]} : vector<8x32xf32> to vector<8x8xf32>
    %399 = vector.extract_strided_slice %341 {offsets = [0, 24], sizes = [8, 8], strides = [1, 1]} : vector<8x32xf32> to vector<8x8xf32>
    %cst_200 = arith.constant dense<0.000000e+00> : vector<8x8xf32>
    %400 = tpu.matmul %397, %398, %cst_200 {dimension_numbers = #tpu.dot_dimension_numbers<[1], [1], [0], [0], [0, 0, 1, 0], [], []>} : vector<8x8xf32>, vector<8x8xf32>, vector<8x8xf32> -> vector<8x8xf32>
    %cst_201 = arith.constant dense<0xFF800000> : vector<8xf32>
    %401 = vector.multi_reduction <maximumf>, %400, %cst_201 [1] : vector<8x8xf32> to vector<8xf32>
    %402 = vector.shape_cast %401 : vector<8xf32> to vector<8x1xf32>
    %403 = vector.broadcast %402 : vector<8x1xf32> to vector<8x8xf32>
    %404 = arith.subf %400, %403 : vector<8x8xf32>
    %405 = math.exp %404 : vector<8x8xf32>
    %cst_202 = arith.constant dense<0.000000e+00> : vector<8xf32>
    %406 = vector.multi_reduction <add>, %405, %cst_202 [1] : vector<8x8xf32> to vector<8xf32>
    %407 = vector.shape_cast %406 : vector<8xf32> to vector<8x1xf32>
    %408 = tpu.reciprocal %407 {approx = true} : vector<8x1xf32> -> vector<8x1xf32>
    %409 = vector.broadcast %408 : vector<8x1xf32> to vector<8x8xf32>
    %410 = arith.mulf %405, %409 : vector<8x8xf32>
    %cst_203 = arith.constant dense<0.000000e+00> : vector<8x8xf32>
    %411 = tpu.matmul %410, %399, %cst_203 {dimension_numbers = #tpu.dot_dimension_numbers<[1], [0], [0], [1], [0, 0, 1, 1], [], []>} : vector<8x8xf32>, vector<8x8xf32>, vector<8x8xf32> -> vector<8x8xf32>
    %412 = vector.extract_strided_slice %331 {offsets = [24, 0], sizes = [8, 32], strides = [1, 1]} : vector<32x32xf32> to vector<8x32xf32>
    %cst_204 = arith.constant dense<0.000000e+00> : vector<8x32xf32>
    %413 = tpu.matmul %411, %412, %cst_204 {dimension_numbers = #tpu.dot_dimension_numbers<[1], [0], [0], [1], [0, 0, 1, 1], [], []>} : vector<8x8xf32>, vector<8x32xf32>, vector<8x32xf32> -> vector<8x32xf32>
    %414 = arith.addf %396, %413 : vector<8x32xf32>
    %415 = vector.broadcast %333 : vector<1x32xf32> to vector<8x32xf32>
    %416 = arith.addf %414, %415 : vector<8x32xf32>
    %c10 = arith.constant 10 : index
    %c0_205 = arith.constant 0 : index
    %c0_206 = arith.constant 0 : index
    %c0_207 = arith.constant 0 : index
    %417 = vector.load %arg11[%c10, %c0_205, %c0_206, %c0_207] : memref<16x2x1x32xf32, #tpu.memory_space<vmem>>, vector<1x1x1x32xf32>
    %418 = vector.shape_cast %417 : vector<1x1x1x32xf32> to vector<1x32xf32>
    %c11 = arith.constant 11 : index
    %c0_208 = arith.constant 0 : index
    %c0_209 = arith.constant 0 : index
    %c0_210 = arith.constant 0 : index
    %419 = vector.load %arg11[%c11, %c0_208, %c0_209, %c0_210] : memref<16x2x1x32xf32, #tpu.memory_space<vmem>>, vector<1x1x1x32xf32>
    %420 = vector.shape_cast %419 : vector<1x1x1x32xf32> to vector<1x32xf32>
    %421 = arith.addf %325, %416 : vector<8x32xf32>
    %cst_211 = arith.constant dense<0.000000e+00> : vector<8xf32>
    %422 = vector.multi_reduction <add>, %421, %cst_211 [1] : vector<8x32xf32> to vector<8xf32>
    %423 = vector.shape_cast %422 : vector<8xf32> to vector<8x1xf32>
    %cst_212 = arith.constant 3.200000e+01 : f32
    %424 = vector.broadcast %cst_212 : f32 to vector<8x1xf32>
    %425 = arith.divf %423, %424 : vector<8x1xf32>
    %426 = vector.broadcast %425 : vector<8x1xf32> to vector<8x32xf32>
    %427 = arith.subf %421, %426 : vector<8x32xf32>
    %428 = arith.mulf %427, %427 : vector<8x32xf32>
    %cst_213 = arith.constant dense<0.000000e+00> : vector<8xf32>
    %429 = vector.multi_reduction <add>, %428, %cst_213 [1] : vector<8x32xf32> to vector<8xf32>
    %430 = vector.shape_cast %429 : vector<8xf32> to vector<8x1xf32>
    %cst_214 = arith.constant 3.200000e+01 : f32
    %431 = vector.broadcast %cst_214 : f32 to vector<8x1xf32>
    %432 = arith.divf %430, %431 : vector<8x1xf32>
    %433 = vector.broadcast %425 : vector<8x1xf32> to vector<8x32xf32>
    %434 = arith.subf %421, %433 : vector<8x32xf32>
    %cst_215 = arith.constant 9.99999974E-6 : f32
    %435 = vector.broadcast %cst_215 : f32 to vector<8x1xf32>
    %436 = arith.addf %432, %435 : vector<8x1xf32>
    %437 = math.rsqrt %436 : vector<8x1xf32>
    %438 = vector.broadcast %437 : vector<8x1xf32> to vector<8x32xf32>
    %439 = arith.mulf %434, %438 : vector<8x32xf32>
    %440 = vector.broadcast %418 : vector<1x32xf32> to vector<8x32xf32>
    %441 = arith.mulf %439, %440 : vector<8x32xf32>
    %442 = vector.broadcast %420 : vector<1x32xf32> to vector<8x32xf32>
    %443 = arith.addf %441, %442 : vector<8x32xf32>
    %c2_216 = arith.constant 2 : index
    %c0_217 = arith.constant 0 : index
    %c0_218 = arith.constant 0 : index
    %c0_219 = arith.constant 0 : index
    %444 = vector.load %arg5[%c2_216, %c0_217, %c0_218, %c0_219] : memref<4x2x32x32xf32, #tpu.memory_space<vmem>>, vector<1x1x32x32xf32>
    %445 = vector.shape_cast %444 : vector<1x1x32x32xf32> to vector<32x32xf32>
    %c7 = arith.constant 7 : index
    %c0_220 = arith.constant 0 : index
    %c0_221 = arith.constant 0 : index
    %c0_222 = arith.constant 0 : index
    %446 = vector.load %arg11[%c7, %c0_220, %c0_221, %c0_222] : memref<16x2x1x32xf32, #tpu.memory_space<vmem>>, vector<1x1x1x32xf32>
    %447 = vector.shape_cast %446 : vector<1x1x1x32xf32> to vector<1x32xf32>
    %c0_223 = arith.constant 0 : index
    %c0_224 = arith.constant 0 : index
    %c0_225 = arith.constant 0 : index
    %448 = vector.load %arg6[%c0_223, %c0_224, %c0_225] : memref<2x32x64xf32, #tpu.memory_space<vmem>>, vector<1x32x64xf32>
    %449 = vector.shape_cast %448 : vector<1x32x64xf32> to vector<32x64xf32>
    %c0_226 = arith.constant 0 : index
    %c0_227 = arith.constant 0 : index
    %c0_228 = arith.constant 0 : index
    %450 = vector.load %arg7[%c0_226, %c0_227, %c0_228] : memref<2x1x64xf32, #tpu.memory_space<vmem>>, vector<1x1x64xf32>
    %451 = vector.shape_cast %450 : vector<1x1x64xf32> to vector<1x64xf32>
    %c3_229 = arith.constant 3 : index
    %c0_230 = arith.constant 0 : index
    %c0_231 = arith.constant 0 : index
    %c0_232 = arith.constant 0 : index
    %452 = vector.load %arg5[%c3_229, %c0_230, %c0_231, %c0_232] : memref<4x2x32x32xf32, #tpu.memory_space<vmem>>, vector<1x1x32x32xf32>
    %453 = vector.shape_cast %452 : vector<1x1x32x32xf32> to vector<32x32xf32>
    %c8 = arith.constant 8 : index
    %c0_233 = arith.constant 0 : index
    %c0_234 = arith.constant 0 : index
    %c0_235 = arith.constant 0 : index
    %454 = vector.load %arg11[%c8, %c0_233, %c0_234, %c0_235] : memref<16x2x1x32xf32, #tpu.memory_space<vmem>>, vector<1x1x1x32xf32>
    %455 = vector.shape_cast %454 : vector<1x1x1x32xf32> to vector<1x32xf32>
    %cst_236 = arith.constant dense<0.000000e+00> : vector<8x32xf32>
    %456 = tpu.matmul %443, %445, %cst_236 {dimension_numbers = #tpu.dot_dimension_numbers<[1], [0], [0], [1], [0, 0, 1, 1], [], []>} : vector<8x32xf32>, vector<32x32xf32>, vector<8x32xf32> -> vector<8x32xf32>
    %457 = vector.broadcast %447 : vector<1x32xf32> to vector<8x32xf32>
    %458 = arith.addf %456, %457 : vector<8x32xf32>
    %cst_237 = arith.constant 0.353553385 : f32
    %459 = vector.broadcast %cst_237 : f32 to vector<8x32xf32>
    %460 = arith.mulf %458, %459 : vector<8x32xf32>
    %cst_238 = arith.constant dense<0.000000e+00> : vector<8x64xf32>
    %461 = tpu.matmul %323, %449, %cst_238 {dimension_numbers = #tpu.dot_dimension_numbers<[1], [0], [0], [1], [0, 0, 1, 1], [], []>} : vector<8x32xf32>, vector<32x64xf32>, vector<8x64xf32> -> vector<8x64xf32>
    %462 = vector.broadcast %451 : vector<1x64xf32> to vector<8x64xf32>
    %463 = arith.addf %461, %462 : vector<8x64xf32>
    %464 = vector.extract_strided_slice %463 {offsets = [0, 0], sizes = [8, 32], strides = [1, 1]} : vector<8x64xf32> to vector<8x32xf32>
    %465 = vector.extract_strided_slice %463 {offsets = [0, 32], sizes = [8, 32], strides = [1, 1]} : vector<8x64xf32> to vector<8x32xf32>
    %cst_239 = arith.constant 0.000000e+00 : f32
    %466 = vector.broadcast %cst_239 : f32 to vector<8x32xf32>
    %467 = vector.extract_strided_slice %460 {offsets = [0, 0], sizes = [8, 8], strides = [1, 1]} : vector<8x32xf32> to vector<8x8xf32>
    %468 = vector.extract_strided_slice %464 {offsets = [0, 0], sizes = [8, 8], strides = [1, 1]} : vector<8x32xf32> to vector<8x8xf32>
    %469 = vector.extract_strided_slice %465 {offsets = [0, 0], sizes = [8, 8], strides = [1, 1]} : vector<8x32xf32> to vector<8x8xf32>
    %cst_240 = arith.constant dense<0.000000e+00> : vector<8x8xf32>
    %470 = tpu.matmul %467, %468, %cst_240 {dimension_numbers = #tpu.dot_dimension_numbers<[1], [1], [0], [0], [0, 0, 1, 0], [], []>} : vector<8x8xf32>, vector<8x8xf32>, vector<8x8xf32> -> vector<8x8xf32>
    %cst_241 = arith.constant dense<0xFF800000> : vector<8xf32>
    %471 = vector.multi_reduction <maximumf>, %470, %cst_241 [1] : vector<8x8xf32> to vector<8xf32>
    %472 = vector.shape_cast %471 : vector<8xf32> to vector<8x1xf32>
    %473 = vector.broadcast %472 : vector<8x1xf32> to vector<8x8xf32>
    %474 = arith.subf %470, %473 : vector<8x8xf32>
    %475 = math.exp %474 : vector<8x8xf32>
    %cst_242 = arith.constant dense<0.000000e+00> : vector<8xf32>
    %476 = vector.multi_reduction <add>, %475, %cst_242 [1] : vector<8x8xf32> to vector<8xf32>
    %477 = vector.shape_cast %476 : vector<8xf32> to vector<8x1xf32>
    %478 = tpu.reciprocal %477 {approx = true} : vector<8x1xf32> -> vector<8x1xf32>
    %479 = vector.broadcast %478 : vector<8x1xf32> to vector<8x8xf32>
    %480 = arith.mulf %475, %479 : vector<8x8xf32>
    %cst_243 = arith.constant dense<0.000000e+00> : vector<8x8xf32>
    %481 = tpu.matmul %480, %469, %cst_243 {dimension_numbers = #tpu.dot_dimension_numbers<[1], [0], [0], [1], [0, 0, 1, 1], [], []>} : vector<8x8xf32>, vector<8x8xf32>, vector<8x8xf32> -> vector<8x8xf32>
    %482 = vector.extract_strided_slice %453 {offsets = [0, 0], sizes = [8, 32], strides = [1, 1]} : vector<32x32xf32> to vector<8x32xf32>
    %cst_244 = arith.constant dense<0.000000e+00> : vector<8x32xf32>
    %483 = tpu.matmul %481, %482, %cst_244 {dimension_numbers = #tpu.dot_dimension_numbers<[1], [0], [0], [1], [0, 0, 1, 1], [], []>} : vector<8x8xf32>, vector<8x32xf32>, vector<8x32xf32> -> vector<8x32xf32>
    %484 = arith.addf %466, %483 : vector<8x32xf32>
    %485 = vector.extract_strided_slice %460 {offsets = [0, 8], sizes = [8, 8], strides = [1, 1]} : vector<8x32xf32> to vector<8x8xf32>
    %486 = vector.extract_strided_slice %464 {offsets = [0, 8], sizes = [8, 8], strides = [1, 1]} : vector<8x32xf32> to vector<8x8xf32>
    %487 = vector.extract_strided_slice %465 {offsets = [0, 8], sizes = [8, 8], strides = [1, 1]} : vector<8x32xf32> to vector<8x8xf32>
    %cst_245 = arith.constant dense<0.000000e+00> : vector<8x8xf32>
    %488 = tpu.matmul %485, %486, %cst_245 {dimension_numbers = #tpu.dot_dimension_numbers<[1], [1], [0], [0], [0, 0, 1, 0], [], []>} : vector<8x8xf32>, vector<8x8xf32>, vector<8x8xf32> -> vector<8x8xf32>
    %cst_246 = arith.constant dense<0xFF800000> : vector<8xf32>
    %489 = vector.multi_reduction <maximumf>, %488, %cst_246 [1] : vector<8x8xf32> to vector<8xf32>
    %490 = vector.shape_cast %489 : vector<8xf32> to vector<8x1xf32>
    %491 = vector.broadcast %490 : vector<8x1xf32> to vector<8x8xf32>
    %492 = arith.subf %488, %491 : vector<8x8xf32>
    %493 = math.exp %492 : vector<8x8xf32>
    %cst_247 = arith.constant dense<0.000000e+00> : vector<8xf32>
    %494 = vector.multi_reduction <add>, %493, %cst_247 [1] : vector<8x8xf32> to vector<8xf32>
    %495 = vector.shape_cast %494 : vector<8xf32> to vector<8x1xf32>
    %496 = tpu.reciprocal %495 {approx = true} : vector<8x1xf32> -> vector<8x1xf32>
    %497 = vector.broadcast %496 : vector<8x1xf32> to vector<8x8xf32>
    %498 = arith.mulf %493, %497 : vector<8x8xf32>
    %cst_248 = arith.constant dense<0.000000e+00> : vector<8x8xf32>
    %499 = tpu.matmul %498, %487, %cst_248 {dimension_numbers = #tpu.dot_dimension_numbers<[1], [0], [0], [1], [0, 0, 1, 1], [], []>} : vector<8x8xf32>, vector<8x8xf32>, vector<8x8xf32> -> vector<8x8xf32>
    %500 = vector.extract_strided_slice %453 {offsets = [8, 0], sizes = [8, 32], strides = [1, 1]} : vector<32x32xf32> to vector<8x32xf32>
    %cst_249 = arith.constant dense<0.000000e+00> : vector<8x32xf32>
    %501 = tpu.matmul %499, %500, %cst_249 {dimension_numbers = #tpu.dot_dimension_numbers<[1], [0], [0], [1], [0, 0, 1, 1], [], []>} : vector<8x8xf32>, vector<8x32xf32>, vector<8x32xf32> -> vector<8x32xf32>
    %502 = arith.addf %484, %501 : vector<8x32xf32>
    %503 = vector.extract_strided_slice %460 {offsets = [0, 16], sizes = [8, 8], strides = [1, 1]} : vector<8x32xf32> to vector<8x8xf32>
    %504 = vector.extract_strided_slice %464 {offsets = [0, 16], sizes = [8, 8], strides = [1, 1]} : vector<8x32xf32> to vector<8x8xf32>
    %505 = vector.extract_strided_slice %465 {offsets = [0, 16], sizes = [8, 8], strides = [1, 1]} : vector<8x32xf32> to vector<8x8xf32>
    %cst_250 = arith.constant dense<0.000000e+00> : vector<8x8xf32>
    %506 = tpu.matmul %503, %504, %cst_250 {dimension_numbers = #tpu.dot_dimension_numbers<[1], [1], [0], [0], [0, 0, 1, 0], [], []>} : vector<8x8xf32>, vector<8x8xf32>, vector<8x8xf32> -> vector<8x8xf32>
    %cst_251 = arith.constant dense<0xFF800000> : vector<8xf32>
    %507 = vector.multi_reduction <maximumf>, %506, %cst_251 [1] : vector<8x8xf32> to vector<8xf32>
    %508 = vector.shape_cast %507 : vector<8xf32> to vector<8x1xf32>
    %509 = vector.broadcast %508 : vector<8x1xf32> to vector<8x8xf32>
    %510 = arith.subf %506, %509 : vector<8x8xf32>
    %511 = math.exp %510 : vector<8x8xf32>
    %cst_252 = arith.constant dense<0.000000e+00> : vector<8xf32>
    %512 = vector.multi_reduction <add>, %511, %cst_252 [1] : vector<8x8xf32> to vector<8xf32>
    %513 = vector.shape_cast %512 : vector<8xf32> to vector<8x1xf32>
    %514 = tpu.reciprocal %513 {approx = true} : vector<8x1xf32> -> vector<8x1xf32>
    %515 = vector.broadcast %514 : vector<8x1xf32> to vector<8x8xf32>
    %516 = arith.mulf %511, %515 : vector<8x8xf32>
    %cst_253 = arith.constant dense<0.000000e+00> : vector<8x8xf32>
    %517 = tpu.matmul %516, %505, %cst_253 {dimension_numbers = #tpu.dot_dimension_numbers<[1], [0], [0], [1], [0, 0, 1, 1], [], []>} : vector<8x8xf32>, vector<8x8xf32>, vector<8x8xf32> -> vector<8x8xf32>
    %518 = vector.extract_strided_slice %453 {offsets = [16, 0], sizes = [8, 32], strides = [1, 1]} : vector<32x32xf32> to vector<8x32xf32>
    %cst_254 = arith.constant dense<0.000000e+00> : vector<8x32xf32>
    %519 = tpu.matmul %517, %518, %cst_254 {dimension_numbers = #tpu.dot_dimension_numbers<[1], [0], [0], [1], [0, 0, 1, 1], [], []>} : vector<8x8xf32>, vector<8x32xf32>, vector<8x32xf32> -> vector<8x32xf32>
    %520 = arith.addf %502, %519 : vector<8x32xf32>
    %521 = vector.extract_strided_slice %460 {offsets = [0, 24], sizes = [8, 8], strides = [1, 1]} : vector<8x32xf32> to vector<8x8xf32>
    %522 = vector.extract_strided_slice %464 {offsets = [0, 24], sizes = [8, 8], strides = [1, 1]} : vector<8x32xf32> to vector<8x8xf32>
    %523 = vector.extract_strided_slice %465 {offsets = [0, 24], sizes = [8, 8], strides = [1, 1]} : vector<8x32xf32> to vector<8x8xf32>
    %cst_255 = arith.constant dense<0.000000e+00> : vector<8x8xf32>
    %524 = tpu.matmul %521, %522, %cst_255 {dimension_numbers = #tpu.dot_dimension_numbers<[1], [1], [0], [0], [0, 0, 1, 0], [], []>} : vector<8x8xf32>, vector<8x8xf32>, vector<8x8xf32> -> vector<8x8xf32>
    %cst_256 = arith.constant dense<0xFF800000> : vector<8xf32>
    %525 = vector.multi_reduction <maximumf>, %524, %cst_256 [1] : vector<8x8xf32> to vector<8xf32>
    %526 = vector.shape_cast %525 : vector<8xf32> to vector<8x1xf32>
    %527 = vector.broadcast %526 : vector<8x1xf32> to vector<8x8xf32>
    %528 = arith.subf %524, %527 : vector<8x8xf32>
    %529 = math.exp %528 : vector<8x8xf32>
    %cst_257 = arith.constant dense<0.000000e+00> : vector<8xf32>
    %530 = vector.multi_reduction <add>, %529, %cst_257 [1] : vector<8x8xf32> to vector<8xf32>
    %531 = vector.shape_cast %530 : vector<8xf32> to vector<8x1xf32>
    %532 = tpu.reciprocal %531 {approx = true} : vector<8x1xf32> -> vector<8x1xf32>
    %533 = vector.broadcast %532 : vector<8x1xf32> to vector<8x8xf32>
    %534 = arith.mulf %529, %533 : vector<8x8xf32>
    %cst_258 = arith.constant dense<0.000000e+00> : vector<8x8xf32>
    %535 = tpu.matmul %534, %523, %cst_258 {dimension_numbers = #tpu.dot_dimension_numbers<[1], [0], [0], [1], [0, 0, 1, 1], [], []>} : vector<8x8xf32>, vector<8x8xf32>, vector<8x8xf32> -> vector<8x8xf32>
    %536 = vector.extract_strided_slice %453 {offsets = [24, 0], sizes = [8, 32], strides = [1, 1]} : vector<32x32xf32> to vector<8x32xf32>
    %cst_259 = arith.constant dense<0.000000e+00> : vector<8x32xf32>
    %537 = tpu.matmul %535, %536, %cst_259 {dimension_numbers = #tpu.dot_dimension_numbers<[1], [0], [0], [1], [0, 0, 1, 1], [], []>} : vector<8x8xf32>, vector<8x32xf32>, vector<8x32xf32> -> vector<8x32xf32>
    %538 = arith.addf %520, %537 : vector<8x32xf32>
    %539 = vector.broadcast %455 : vector<1x32xf32> to vector<8x32xf32>
    %540 = arith.addf %538, %539 : vector<8x32xf32>
    %c12 = arith.constant 12 : index
    %c0_260 = arith.constant 0 : index
    %c0_261 = arith.constant 0 : index
    %c0_262 = arith.constant 0 : index
    %541 = vector.load %arg11[%c12, %c0_260, %c0_261, %c0_262] : memref<16x2x1x32xf32, #tpu.memory_space<vmem>>, vector<1x1x1x32xf32>
    %542 = vector.shape_cast %541 : vector<1x1x1x32xf32> to vector<1x32xf32>
    %c13 = arith.constant 13 : index
    %c0_263 = arith.constant 0 : index
    %c0_264 = arith.constant 0 : index
    %c0_265 = arith.constant 0 : index
    %543 = vector.load %arg11[%c13, %c0_263, %c0_264, %c0_265] : memref<16x2x1x32xf32, #tpu.memory_space<vmem>>, vector<1x1x1x32xf32>
    %544 = vector.shape_cast %543 : vector<1x1x1x32xf32> to vector<1x32xf32>
    %545 = arith.addf %443, %540 : vector<8x32xf32>
    %cst_266 = arith.constant dense<0.000000e+00> : vector<8xf32>
    %546 = vector.multi_reduction <add>, %545, %cst_266 [1] : vector<8x32xf32> to vector<8xf32>
    %547 = vector.shape_cast %546 : vector<8xf32> to vector<8x1xf32>
    %cst_267 = arith.constant 3.200000e+01 : f32
    %548 = vector.broadcast %cst_267 : f32 to vector<8x1xf32>
    %549 = arith.divf %547, %548 : vector<8x1xf32>
    %550 = vector.broadcast %549 : vector<8x1xf32> to vector<8x32xf32>
    %551 = arith.subf %545, %550 : vector<8x32xf32>
    %552 = arith.mulf %551, %551 : vector<8x32xf32>
    %cst_268 = arith.constant dense<0.000000e+00> : vector<8xf32>
    %553 = vector.multi_reduction <add>, %552, %cst_268 [1] : vector<8x32xf32> to vector<8xf32>
    %554 = vector.shape_cast %553 : vector<8xf32> to vector<8x1xf32>
    %cst_269 = arith.constant 3.200000e+01 : f32
    %555 = vector.broadcast %cst_269 : f32 to vector<8x1xf32>
    %556 = arith.divf %554, %555 : vector<8x1xf32>
    %557 = vector.broadcast %549 : vector<8x1xf32> to vector<8x32xf32>
    %558 = arith.subf %545, %557 : vector<8x32xf32>
    %cst_270 = arith.constant 9.99999974E-6 : f32
    %559 = vector.broadcast %cst_270 : f32 to vector<8x1xf32>
    %560 = arith.addf %556, %559 : vector<8x1xf32>
    %561 = math.rsqrt %560 : vector<8x1xf32>
    %562 = vector.broadcast %561 : vector<8x1xf32> to vector<8x32xf32>
    %563 = arith.mulf %558, %562 : vector<8x32xf32>
    %564 = vector.broadcast %542 : vector<1x32xf32> to vector<8x32xf32>
    %565 = arith.mulf %563, %564 : vector<8x32xf32>
    %566 = vector.broadcast %544 : vector<1x32xf32> to vector<8x32xf32>
    %567 = arith.addf %565, %566 : vector<8x32xf32>
    %c1_271 = arith.constant 1 : index
    %c0_272 = arith.constant 0 : index
    %c0_273 = arith.constant 0 : index
    %c0_274 = arith.constant 0 : index
    %568 = vector.load %arg8[%c1_271, %c0_272, %c0_273, %c0_274] : memref<2x2x32x64xf32, #tpu.memory_space<vmem>>, vector<1x1x32x64xf32>
    %569 = vector.shape_cast %568 : vector<1x1x32x64xf32> to vector<32x64xf32>
    %c1_275 = arith.constant 1 : index
    %c0_276 = arith.constant 0 : index
    %c0_277 = arith.constant 0 : index
    %c0_278 = arith.constant 0 : index
    %570 = vector.load %arg9[%c1_275, %c0_276, %c0_277, %c0_278] : memref<2x2x1x64xf32, #tpu.memory_space<vmem>>, vector<1x1x1x64xf32>
    %571 = vector.shape_cast %570 : vector<1x1x1x64xf32> to vector<1x64xf32>
    %c1_279 = arith.constant 1 : index
    %c0_280 = arith.constant 0 : index
    %c0_281 = arith.constant 0 : index
    %c0_282 = arith.constant 0 : index
    %572 = vector.load %arg10[%c1_279, %c0_280, %c0_281, %c0_282] : memref<2x2x64x32xf32, #tpu.memory_space<vmem>>, vector<1x1x64x32xf32>
    %573 = vector.shape_cast %572 : vector<1x1x64x32xf32> to vector<64x32xf32>
    %c9 = arith.constant 9 : index
    %c0_283 = arith.constant 0 : index
    %c0_284 = arith.constant 0 : index
    %c0_285 = arith.constant 0 : index
    %574 = vector.load %arg11[%c9, %c0_283, %c0_284, %c0_285] : memref<16x2x1x32xf32, #tpu.memory_space<vmem>>, vector<1x1x1x32xf32>
    %575 = vector.shape_cast %574 : vector<1x1x1x32xf32> to vector<1x32xf32>
    %cst_286 = arith.constant dense<0.000000e+00> : vector<8x64xf32>
    %576 = tpu.matmul %567, %569, %cst_286 {dimension_numbers = #tpu.dot_dimension_numbers<[1], [0], [0], [1], [0, 0, 1, 1], [], []>} : vector<8x32xf32>, vector<32x64xf32>, vector<8x64xf32> -> vector<8x64xf32>
    %577 = vector.broadcast %571 : vector<1x64xf32> to vector<8x64xf32>
    %578 = arith.addf %576, %577 : vector<8x64xf32>
    %cst_287 = arith.constant 0.000000e+00 : f32
    %579 = vector.broadcast %cst_287 : f32 to vector<8x64xf32>
    %580 = arith.maximumf %578, %579 : vector<8x64xf32>
    %cst_288 = arith.constant dense<0.000000e+00> : vector<8x32xf32>
    %581 = tpu.matmul %580, %573, %cst_288 {dimension_numbers = #tpu.dot_dimension_numbers<[1], [0], [0], [1], [0, 0, 1, 1], [], []>} : vector<8x64xf32>, vector<64x32xf32>, vector<8x32xf32> -> vector<8x32xf32>
    %582 = vector.broadcast %575 : vector<1x32xf32> to vector<8x32xf32>
    %583 = arith.addf %581, %582 : vector<8x32xf32>
    %c14 = arith.constant 14 : index
    %c0_289 = arith.constant 0 : index
    %c0_290 = arith.constant 0 : index
    %c0_291 = arith.constant 0 : index
    %584 = vector.load %arg11[%c14, %c0_289, %c0_290, %c0_291] : memref<16x2x1x32xf32, #tpu.memory_space<vmem>>, vector<1x1x1x32xf32>
    %585 = vector.shape_cast %584 : vector<1x1x1x32xf32> to vector<1x32xf32>
    %c15 = arith.constant 15 : index
    %c0_292 = arith.constant 0 : index
    %c0_293 = arith.constant 0 : index
    %c0_294 = arith.constant 0 : index
    %586 = vector.load %arg11[%c15, %c0_292, %c0_293, %c0_294] : memref<16x2x1x32xf32, #tpu.memory_space<vmem>>, vector<1x1x1x32xf32>
    %587 = vector.shape_cast %586 : vector<1x1x1x32xf32> to vector<1x32xf32>
    %588 = arith.addf %567, %583 : vector<8x32xf32>
    %cst_295 = arith.constant dense<0.000000e+00> : vector<8xf32>
    %589 = vector.multi_reduction <add>, %588, %cst_295 [1] : vector<8x32xf32> to vector<8xf32>
    %590 = vector.shape_cast %589 : vector<8xf32> to vector<8x1xf32>
    %cst_296 = arith.constant 3.200000e+01 : f32
    %591 = vector.broadcast %cst_296 : f32 to vector<8x1xf32>
    %592 = arith.divf %590, %591 : vector<8x1xf32>
    %593 = vector.broadcast %592 : vector<8x1xf32> to vector<8x32xf32>
    %594 = arith.subf %588, %593 : vector<8x32xf32>
    %595 = arith.mulf %594, %594 : vector<8x32xf32>
    %cst_297 = arith.constant dense<0.000000e+00> : vector<8xf32>
    %596 = vector.multi_reduction <add>, %595, %cst_297 [1] : vector<8x32xf32> to vector<8xf32>
    %597 = vector.shape_cast %596 : vector<8xf32> to vector<8x1xf32>
    %cst_298 = arith.constant 3.200000e+01 : f32
    %598 = vector.broadcast %cst_298 : f32 to vector<8x1xf32>
    %599 = arith.divf %597, %598 : vector<8x1xf32>
    %600 = vector.broadcast %592 : vector<8x1xf32> to vector<8x32xf32>
    %601 = arith.subf %588, %600 : vector<8x32xf32>
    %cst_299 = arith.constant 9.99999974E-6 : f32
    %602 = vector.broadcast %cst_299 : f32 to vector<8x1xf32>
    %603 = arith.addf %599, %602 : vector<8x1xf32>
    %604 = math.rsqrt %603 : vector<8x1xf32>
    %605 = vector.broadcast %604 : vector<8x1xf32> to vector<8x32xf32>
    %606 = arith.mulf %601, %605 : vector<8x32xf32>
    %607 = vector.broadcast %585 : vector<1x32xf32> to vector<8x32xf32>
    %608 = arith.mulf %606, %607 : vector<8x32xf32>
    %609 = vector.broadcast %587 : vector<1x32xf32> to vector<8x32xf32>
    %610 = arith.addf %608, %609 : vector<8x32xf32>
    %c1_300 = arith.constant 1 : index
    %c1_301 = arith.constant 1 : index
    %c0_302 = arith.constant 0 : index
    %c0_303 = arith.constant 0 : index
    %611 = vector.load %arg3[%c1_300, %c1_301, %c0_302, %c0_303] : memref<2x2x32x96xf32, #tpu.memory_space<vmem>>, vector<1x1x32x96xf32>
    %612 = vector.shape_cast %611 : vector<1x1x32x96xf32> to vector<32x96xf32>
    %c1_304 = arith.constant 1 : index
    %c1_305 = arith.constant 1 : index
    %c0_306 = arith.constant 0 : index
    %c0_307 = arith.constant 0 : index
    %613 = vector.load %arg4[%c1_304, %c1_305, %c0_306, %c0_307] : memref<2x2x1x96xf32, #tpu.memory_space<vmem>>, vector<1x1x1x96xf32>
    %614 = vector.shape_cast %613 : vector<1x1x1x96xf32> to vector<1x96xf32>
    %c1_308 = arith.constant 1 : index
    %c1_309 = arith.constant 1 : index
    %c0_310 = arith.constant 0 : index
    %c0_311 = arith.constant 0 : index
    %615 = vector.load %arg5[%c1_308, %c1_309, %c0_310, %c0_311] : memref<4x2x32x32xf32, #tpu.memory_space<vmem>>, vector<1x1x32x32xf32>
    %616 = vector.shape_cast %615 : vector<1x1x32x32xf32> to vector<32x32xf32>
    %c6_312 = arith.constant 6 : index
    %c1_313 = arith.constant 1 : index
    %c0_314 = arith.constant 0 : index
    %c0_315 = arith.constant 0 : index
    %617 = vector.load %arg11[%c6_312, %c1_313, %c0_314, %c0_315] : memref<16x2x1x32xf32, #tpu.memory_space<vmem>>, vector<1x1x1x32xf32>
    %618 = vector.shape_cast %617 : vector<1x1x1x32xf32> to vector<1x32xf32>
    %cst_316 = arith.constant dense<0.000000e+00> : vector<8x96xf32>
    %619 = tpu.matmul %610, %612, %cst_316 {dimension_numbers = #tpu.dot_dimension_numbers<[1], [0], [0], [1], [0, 0, 1, 1], [], []>} : vector<8x32xf32>, vector<32x96xf32>, vector<8x96xf32> -> vector<8x96xf32>
    %620 = vector.broadcast %614 : vector<1x96xf32> to vector<8x96xf32>
    %621 = arith.addf %619, %620 : vector<8x96xf32>
    %622 = vector.extract_strided_slice %621 {offsets = [0, 0], sizes = [8, 32], strides = [1, 1]} : vector<8x96xf32> to vector<8x32xf32>
    %cst_317 = arith.constant 0.353553385 : f32
    %623 = vector.broadcast %cst_317 : f32 to vector<8x32xf32>
    %624 = arith.mulf %622, %623 : vector<8x32xf32>
    %625 = vector.extract_strided_slice %621 {offsets = [0, 32], sizes = [8, 32], strides = [1, 1]} : vector<8x96xf32> to vector<8x32xf32>
    %626 = vector.extract_strided_slice %621 {offsets = [0, 64], sizes = [8, 32], strides = [1, 1]} : vector<8x96xf32> to vector<8x32xf32>
    %cst_318 = arith.constant 0.000000e+00 : f32
    %627 = vector.broadcast %cst_318 : f32 to vector<8x32xf32>
    %628 = vector.extract_strided_slice %624 {offsets = [0, 0], sizes = [8, 8], strides = [1, 1]} : vector<8x32xf32> to vector<8x8xf32>
    %629 = vector.extract_strided_slice %625 {offsets = [0, 0], sizes = [8, 8], strides = [1, 1]} : vector<8x32xf32> to vector<8x8xf32>
    %630 = vector.extract_strided_slice %626 {offsets = [0, 0], sizes = [8, 8], strides = [1, 1]} : vector<8x32xf32> to vector<8x8xf32>
    %cst_319 = arith.constant dense<0.000000e+00> : vector<8x8xf32>
    %631 = tpu.matmul %628, %629, %cst_319 {dimension_numbers = #tpu.dot_dimension_numbers<[1], [1], [0], [0], [0, 0, 1, 0], [], []>} : vector<8x8xf32>, vector<8x8xf32>, vector<8x8xf32> -> vector<8x8xf32>
    %cst_320 = arith.constant dense<0xFF800000> : vector<8xf32>
    %632 = vector.multi_reduction <maximumf>, %631, %cst_320 [1] : vector<8x8xf32> to vector<8xf32>
    %633 = vector.shape_cast %632 : vector<8xf32> to vector<8x1xf32>
    %634 = vector.broadcast %633 : vector<8x1xf32> to vector<8x8xf32>
    %635 = arith.subf %631, %634 : vector<8x8xf32>
    %636 = math.exp %635 : vector<8x8xf32>
    %cst_321 = arith.constant dense<0.000000e+00> : vector<8xf32>
    %637 = vector.multi_reduction <add>, %636, %cst_321 [1] : vector<8x8xf32> to vector<8xf32>
    %638 = vector.shape_cast %637 : vector<8xf32> to vector<8x1xf32>
    %639 = tpu.reciprocal %638 {approx = true} : vector<8x1xf32> -> vector<8x1xf32>
    %640 = vector.broadcast %639 : vector<8x1xf32> to vector<8x8xf32>
    %641 = arith.mulf %636, %640 : vector<8x8xf32>
    %cst_322 = arith.constant dense<0.000000e+00> : vector<8x8xf32>
    %642 = tpu.matmul %641, %630, %cst_322 {dimension_numbers = #tpu.dot_dimension_numbers<[1], [0], [0], [1], [0, 0, 1, 1], [], []>} : vector<8x8xf32>, vector<8x8xf32>, vector<8x8xf32> -> vector<8x8xf32>
    %643 = vector.extract_strided_slice %616 {offsets = [0, 0], sizes = [8, 32], strides = [1, 1]} : vector<32x32xf32> to vector<8x32xf32>
    %cst_323 = arith.constant dense<0.000000e+00> : vector<8x32xf32>
    %644 = tpu.matmul %642, %643, %cst_323 {dimension_numbers = #tpu.dot_dimension_numbers<[1], [0], [0], [1], [0, 0, 1, 1], [], []>} : vector<8x8xf32>, vector<8x32xf32>, vector<8x32xf32> -> vector<8x32xf32>
    %645 = arith.addf %627, %644 : vector<8x32xf32>
    %646 = vector.extract_strided_slice %624 {offsets = [0, 8], sizes = [8, 8], strides = [1, 1]} : vector<8x32xf32> to vector<8x8xf32>
    %647 = vector.extract_strided_slice %625 {offsets = [0, 8], sizes = [8, 8], strides = [1, 1]} : vector<8x32xf32> to vector<8x8xf32>
    %648 = vector.extract_strided_slice %626 {offsets = [0, 8], sizes = [8, 8], strides = [1, 1]} : vector<8x32xf32> to vector<8x8xf32>
    %cst_324 = arith.constant dense<0.000000e+00> : vector<8x8xf32>
    %649 = tpu.matmul %646, %647, %cst_324 {dimension_numbers = #tpu.dot_dimension_numbers<[1], [1], [0], [0], [0, 0, 1, 0], [], []>} : vector<8x8xf32>, vector<8x8xf32>, vector<8x8xf32> -> vector<8x8xf32>
    %cst_325 = arith.constant dense<0xFF800000> : vector<8xf32>
    %650 = vector.multi_reduction <maximumf>, %649, %cst_325 [1] : vector<8x8xf32> to vector<8xf32>
    %651 = vector.shape_cast %650 : vector<8xf32> to vector<8x1xf32>
    %652 = vector.broadcast %651 : vector<8x1xf32> to vector<8x8xf32>
    %653 = arith.subf %649, %652 : vector<8x8xf32>
    %654 = math.exp %653 : vector<8x8xf32>
    %cst_326 = arith.constant dense<0.000000e+00> : vector<8xf32>
    %655 = vector.multi_reduction <add>, %654, %cst_326 [1] : vector<8x8xf32> to vector<8xf32>
    %656 = vector.shape_cast %655 : vector<8xf32> to vector<8x1xf32>
    %657 = tpu.reciprocal %656 {approx = true} : vector<8x1xf32> -> vector<8x1xf32>
    %658 = vector.broadcast %657 : vector<8x1xf32> to vector<8x8xf32>
    %659 = arith.mulf %654, %658 : vector<8x8xf32>
    %cst_327 = arith.constant dense<0.000000e+00> : vector<8x8xf32>
    %660 = tpu.matmul %659, %648, %cst_327 {dimension_numbers = #tpu.dot_dimension_numbers<[1], [0], [0], [1], [0, 0, 1, 1], [], []>} : vector<8x8xf32>, vector<8x8xf32>, vector<8x8xf32> -> vector<8x8xf32>
    %661 = vector.extract_strided_slice %616 {offsets = [8, 0], sizes = [8, 32], strides = [1, 1]} : vector<32x32xf32> to vector<8x32xf32>
    %cst_328 = arith.constant dense<0.000000e+00> : vector<8x32xf32>
    %662 = tpu.matmul %660, %661, %cst_328 {dimension_numbers = #tpu.dot_dimension_numbers<[1], [0], [0], [1], [0, 0, 1, 1], [], []>} : vector<8x8xf32>, vector<8x32xf32>, vector<8x32xf32> -> vector<8x32xf32>
    %663 = arith.addf %645, %662 : vector<8x32xf32>
    %664 = vector.extract_strided_slice %624 {offsets = [0, 16], sizes = [8, 8], strides = [1, 1]} : vector<8x32xf32> to vector<8x8xf32>
    %665 = vector.extract_strided_slice %625 {offsets = [0, 16], sizes = [8, 8], strides = [1, 1]} : vector<8x32xf32> to vector<8x8xf32>
    %666 = vector.extract_strided_slice %626 {offsets = [0, 16], sizes = [8, 8], strides = [1, 1]} : vector<8x32xf32> to vector<8x8xf32>
    %cst_329 = arith.constant dense<0.000000e+00> : vector<8x8xf32>
    %667 = tpu.matmul %664, %665, %cst_329 {dimension_numbers = #tpu.dot_dimension_numbers<[1], [1], [0], [0], [0, 0, 1, 0], [], []>} : vector<8x8xf32>, vector<8x8xf32>, vector<8x8xf32> -> vector<8x8xf32>
    %cst_330 = arith.constant dense<0xFF800000> : vector<8xf32>
    %668 = vector.multi_reduction <maximumf>, %667, %cst_330 [1] : vector<8x8xf32> to vector<8xf32>
    %669 = vector.shape_cast %668 : vector<8xf32> to vector<8x1xf32>
    %670 = vector.broadcast %669 : vector<8x1xf32> to vector<8x8xf32>
    %671 = arith.subf %667, %670 : vector<8x8xf32>
    %672 = math.exp %671 : vector<8x8xf32>
    %cst_331 = arith.constant dense<0.000000e+00> : vector<8xf32>
    %673 = vector.multi_reduction <add>, %672, %cst_331 [1] : vector<8x8xf32> to vector<8xf32>
    %674 = vector.shape_cast %673 : vector<8xf32> to vector<8x1xf32>
    %675 = tpu.reciprocal %674 {approx = true} : vector<8x1xf32> -> vector<8x1xf32>
    %676 = vector.broadcast %675 : vector<8x1xf32> to vector<8x8xf32>
    %677 = arith.mulf %672, %676 : vector<8x8xf32>
    %cst_332 = arith.constant dense<0.000000e+00> : vector<8x8xf32>
    %678 = tpu.matmul %677, %666, %cst_332 {dimension_numbers = #tpu.dot_dimension_numbers<[1], [0], [0], [1], [0, 0, 1, 1], [], []>} : vector<8x8xf32>, vector<8x8xf32>, vector<8x8xf32> -> vector<8x8xf32>
    %679 = vector.extract_strided_slice %616 {offsets = [16, 0], sizes = [8, 32], strides = [1, 1]} : vector<32x32xf32> to vector<8x32xf32>
    %cst_333 = arith.constant dense<0.000000e+00> : vector<8x32xf32>
    %680 = tpu.matmul %678, %679, %cst_333 {dimension_numbers = #tpu.dot_dimension_numbers<[1], [0], [0], [1], [0, 0, 1, 1], [], []>} : vector<8x8xf32>, vector<8x32xf32>, vector<8x32xf32> -> vector<8x32xf32>
    %681 = arith.addf %663, %680 : vector<8x32xf32>
    %682 = vector.extract_strided_slice %624 {offsets = [0, 24], sizes = [8, 8], strides = [1, 1]} : vector<8x32xf32> to vector<8x8xf32>
    %683 = vector.extract_strided_slice %625 {offsets = [0, 24], sizes = [8, 8], strides = [1, 1]} : vector<8x32xf32> to vector<8x8xf32>
    %684 = vector.extract_strided_slice %626 {offsets = [0, 24], sizes = [8, 8], strides = [1, 1]} : vector<8x32xf32> to vector<8x8xf32>
    %cst_334 = arith.constant dense<0.000000e+00> : vector<8x8xf32>
    %685 = tpu.matmul %682, %683, %cst_334 {dimension_numbers = #tpu.dot_dimension_numbers<[1], [1], [0], [0], [0, 0, 1, 0], [], []>} : vector<8x8xf32>, vector<8x8xf32>, vector<8x8xf32> -> vector<8x8xf32>
    %cst_335 = arith.constant dense<0xFF800000> : vector<8xf32>
    %686 = vector.multi_reduction <maximumf>, %685, %cst_335 [1] : vector<8x8xf32> to vector<8xf32>
    %687 = vector.shape_cast %686 : vector<8xf32> to vector<8x1xf32>
    %688 = vector.broadcast %687 : vector<8x1xf32> to vector<8x8xf32>
    %689 = arith.subf %685, %688 : vector<8x8xf32>
    %690 = math.exp %689 : vector<8x8xf32>
    %cst_336 = arith.constant dense<0.000000e+00> : vector<8xf32>
    %691 = vector.multi_reduction <add>, %690, %cst_336 [1] : vector<8x8xf32> to vector<8xf32>
    %692 = vector.shape_cast %691 : vector<8xf32> to vector<8x1xf32>
    %693 = tpu.reciprocal %692 {approx = true} : vector<8x1xf32> -> vector<8x1xf32>
    %694 = vector.broadcast %693 : vector<8x1xf32> to vector<8x8xf32>
    %695 = arith.mulf %690, %694 : vector<8x8xf32>
    %cst_337 = arith.constant dense<0.000000e+00> : vector<8x8xf32>
    %696 = tpu.matmul %695, %684, %cst_337 {dimension_numbers = #tpu.dot_dimension_numbers<[1], [0], [0], [1], [0, 0, 1, 1], [], []>} : vector<8x8xf32>, vector<8x8xf32>, vector<8x8xf32> -> vector<8x8xf32>
    %697 = vector.extract_strided_slice %616 {offsets = [24, 0], sizes = [8, 32], strides = [1, 1]} : vector<32x32xf32> to vector<8x32xf32>
    %cst_338 = arith.constant dense<0.000000e+00> : vector<8x32xf32>
    %698 = tpu.matmul %696, %697, %cst_338 {dimension_numbers = #tpu.dot_dimension_numbers<[1], [0], [0], [1], [0, 0, 1, 1], [], []>} : vector<8x8xf32>, vector<8x32xf32>, vector<8x32xf32> -> vector<8x32xf32>
    %699 = arith.addf %681, %698 : vector<8x32xf32>
    %700 = vector.broadcast %618 : vector<1x32xf32> to vector<8x32xf32>
    %701 = arith.addf %699, %700 : vector<8x32xf32>
    %c10_339 = arith.constant 10 : index
    %c1_340 = arith.constant 1 : index
    %c0_341 = arith.constant 0 : index
    %c0_342 = arith.constant 0 : index
    %702 = vector.load %arg11[%c10_339, %c1_340, %c0_341, %c0_342] : memref<16x2x1x32xf32, #tpu.memory_space<vmem>>, vector<1x1x1x32xf32>
    %703 = vector.shape_cast %702 : vector<1x1x1x32xf32> to vector<1x32xf32>
    %c11_343 = arith.constant 11 : index
    %c1_344 = arith.constant 1 : index
    %c0_345 = arith.constant 0 : index
    %c0_346 = arith.constant 0 : index
    %704 = vector.load %arg11[%c11_343, %c1_344, %c0_345, %c0_346] : memref<16x2x1x32xf32, #tpu.memory_space<vmem>>, vector<1x1x1x32xf32>
    %705 = vector.shape_cast %704 : vector<1x1x1x32xf32> to vector<1x32xf32>
    %706 = arith.addf %610, %701 : vector<8x32xf32>
    %cst_347 = arith.constant dense<0.000000e+00> : vector<8xf32>
    %707 = vector.multi_reduction <add>, %706, %cst_347 [1] : vector<8x32xf32> to vector<8xf32>
    %708 = vector.shape_cast %707 : vector<8xf32> to vector<8x1xf32>
    %cst_348 = arith.constant 3.200000e+01 : f32
    %709 = vector.broadcast %cst_348 : f32 to vector<8x1xf32>
    %710 = arith.divf %708, %709 : vector<8x1xf32>
    %711 = vector.broadcast %710 : vector<8x1xf32> to vector<8x32xf32>
    %712 = arith.subf %706, %711 : vector<8x32xf32>
    %713 = arith.mulf %712, %712 : vector<8x32xf32>
    %cst_349 = arith.constant dense<0.000000e+00> : vector<8xf32>
    %714 = vector.multi_reduction <add>, %713, %cst_349 [1] : vector<8x32xf32> to vector<8xf32>
    %715 = vector.shape_cast %714 : vector<8xf32> to vector<8x1xf32>
    %cst_350 = arith.constant 3.200000e+01 : f32
    %716 = vector.broadcast %cst_350 : f32 to vector<8x1xf32>
    %717 = arith.divf %715, %716 : vector<8x1xf32>
    %718 = vector.broadcast %710 : vector<8x1xf32> to vector<8x32xf32>
    %719 = arith.subf %706, %718 : vector<8x32xf32>
    %cst_351 = arith.constant 9.99999974E-6 : f32
    %720 = vector.broadcast %cst_351 : f32 to vector<8x1xf32>
    %721 = arith.addf %717, %720 : vector<8x1xf32>
    %722 = math.rsqrt %721 : vector<8x1xf32>
    %723 = vector.broadcast %722 : vector<8x1xf32> to vector<8x32xf32>
    %724 = arith.mulf %719, %723 : vector<8x32xf32>
    %725 = vector.broadcast %703 : vector<1x32xf32> to vector<8x32xf32>
    %726 = arith.mulf %724, %725 : vector<8x32xf32>
    %727 = vector.broadcast %705 : vector<1x32xf32> to vector<8x32xf32>
    %728 = arith.addf %726, %727 : vector<8x32xf32>
    %c2_352 = arith.constant 2 : index
    %c1_353 = arith.constant 1 : index
    %c0_354 = arith.constant 0 : index
    %c0_355 = arith.constant 0 : index
    %729 = vector.load %arg5[%c2_352, %c1_353, %c0_354, %c0_355] : memref<4x2x32x32xf32, #tpu.memory_space<vmem>>, vector<1x1x32x32xf32>
    %730 = vector.shape_cast %729 : vector<1x1x32x32xf32> to vector<32x32xf32>
    %c7_356 = arith.constant 7 : index
    %c1_357 = arith.constant 1 : index
    %c0_358 = arith.constant 0 : index
    %c0_359 = arith.constant 0 : index
    %731 = vector.load %arg11[%c7_356, %c1_357, %c0_358, %c0_359] : memref<16x2x1x32xf32, #tpu.memory_space<vmem>>, vector<1x1x1x32xf32>
    %732 = vector.shape_cast %731 : vector<1x1x1x32xf32> to vector<1x32xf32>
    %c1_360 = arith.constant 1 : index
    %c0_361 = arith.constant 0 : index
    %c0_362 = arith.constant 0 : index
    %733 = vector.load %arg6[%c1_360, %c0_361, %c0_362] : memref<2x32x64xf32, #tpu.memory_space<vmem>>, vector<1x32x64xf32>
    %734 = vector.shape_cast %733 : vector<1x32x64xf32> to vector<32x64xf32>
    %c1_363 = arith.constant 1 : index
    %c0_364 = arith.constant 0 : index
    %c0_365 = arith.constant 0 : index
    %735 = vector.load %arg7[%c1_363, %c0_364, %c0_365] : memref<2x1x64xf32, #tpu.memory_space<vmem>>, vector<1x1x64xf32>
    %736 = vector.shape_cast %735 : vector<1x1x64xf32> to vector<1x64xf32>
    %c3_366 = arith.constant 3 : index
    %c1_367 = arith.constant 1 : index
    %c0_368 = arith.constant 0 : index
    %c0_369 = arith.constant 0 : index
    %737 = vector.load %arg5[%c3_366, %c1_367, %c0_368, %c0_369] : memref<4x2x32x32xf32, #tpu.memory_space<vmem>>, vector<1x1x32x32xf32>
    %738 = vector.shape_cast %737 : vector<1x1x32x32xf32> to vector<32x32xf32>
    %c8_370 = arith.constant 8 : index
    %c1_371 = arith.constant 1 : index
    %c0_372 = arith.constant 0 : index
    %c0_373 = arith.constant 0 : index
    %739 = vector.load %arg11[%c8_370, %c1_371, %c0_372, %c0_373] : memref<16x2x1x32xf32, #tpu.memory_space<vmem>>, vector<1x1x1x32xf32>
    %740 = vector.shape_cast %739 : vector<1x1x1x32xf32> to vector<1x32xf32>
    %cst_374 = arith.constant dense<0.000000e+00> : vector<8x32xf32>
    %741 = tpu.matmul %728, %730, %cst_374 {dimension_numbers = #tpu.dot_dimension_numbers<[1], [0], [0], [1], [0, 0, 1, 1], [], []>} : vector<8x32xf32>, vector<32x32xf32>, vector<8x32xf32> -> vector<8x32xf32>
    %742 = vector.broadcast %732 : vector<1x32xf32> to vector<8x32xf32>
    %743 = arith.addf %741, %742 : vector<8x32xf32>
    %cst_375 = arith.constant 0.353553385 : f32
    %744 = vector.broadcast %cst_375 : f32 to vector<8x32xf32>
    %745 = arith.mulf %743, %744 : vector<8x32xf32>
    %cst_376 = arith.constant dense<0.000000e+00> : vector<8x64xf32>
    %746 = tpu.matmul %323, %734, %cst_376 {dimension_numbers = #tpu.dot_dimension_numbers<[1], [0], [0], [1], [0, 0, 1, 1], [], []>} : vector<8x32xf32>, vector<32x64xf32>, vector<8x64xf32> -> vector<8x64xf32>
    %747 = vector.broadcast %736 : vector<1x64xf32> to vector<8x64xf32>
    %748 = arith.addf %746, %747 : vector<8x64xf32>
    %749 = vector.extract_strided_slice %748 {offsets = [0, 0], sizes = [8, 32], strides = [1, 1]} : vector<8x64xf32> to vector<8x32xf32>
    %750 = vector.extract_strided_slice %748 {offsets = [0, 32], sizes = [8, 32], strides = [1, 1]} : vector<8x64xf32> to vector<8x32xf32>
    %cst_377 = arith.constant 0.000000e+00 : f32
    %751 = vector.broadcast %cst_377 : f32 to vector<8x32xf32>
    %752 = vector.extract_strided_slice %745 {offsets = [0, 0], sizes = [8, 8], strides = [1, 1]} : vector<8x32xf32> to vector<8x8xf32>
    %753 = vector.extract_strided_slice %749 {offsets = [0, 0], sizes = [8, 8], strides = [1, 1]} : vector<8x32xf32> to vector<8x8xf32>
    %754 = vector.extract_strided_slice %750 {offsets = [0, 0], sizes = [8, 8], strides = [1, 1]} : vector<8x32xf32> to vector<8x8xf32>
    %cst_378 = arith.constant dense<0.000000e+00> : vector<8x8xf32>
    %755 = tpu.matmul %752, %753, %cst_378 {dimension_numbers = #tpu.dot_dimension_numbers<[1], [1], [0], [0], [0, 0, 1, 0], [], []>} : vector<8x8xf32>, vector<8x8xf32>, vector<8x8xf32> -> vector<8x8xf32>
    %cst_379 = arith.constant dense<0xFF800000> : vector<8xf32>
    %756 = vector.multi_reduction <maximumf>, %755, %cst_379 [1] : vector<8x8xf32> to vector<8xf32>
    %757 = vector.shape_cast %756 : vector<8xf32> to vector<8x1xf32>
    %758 = vector.broadcast %757 : vector<8x1xf32> to vector<8x8xf32>
    %759 = arith.subf %755, %758 : vector<8x8xf32>
    %760 = math.exp %759 : vector<8x8xf32>
    %cst_380 = arith.constant dense<0.000000e+00> : vector<8xf32>
    %761 = vector.multi_reduction <add>, %760, %cst_380 [1] : vector<8x8xf32> to vector<8xf32>
    %762 = vector.shape_cast %761 : vector<8xf32> to vector<8x1xf32>
    %763 = tpu.reciprocal %762 {approx = true} : vector<8x1xf32> -> vector<8x1xf32>
    %764 = vector.broadcast %763 : vector<8x1xf32> to vector<8x8xf32>
    %765 = arith.mulf %760, %764 : vector<8x8xf32>
    %cst_381 = arith.constant dense<0.000000e+00> : vector<8x8xf32>
    %766 = tpu.matmul %765, %754, %cst_381 {dimension_numbers = #tpu.dot_dimension_numbers<[1], [0], [0], [1], [0, 0, 1, 1], [], []>} : vector<8x8xf32>, vector<8x8xf32>, vector<8x8xf32> -> vector<8x8xf32>
    %767 = vector.extract_strided_slice %738 {offsets = [0, 0], sizes = [8, 32], strides = [1, 1]} : vector<32x32xf32> to vector<8x32xf32>
    %cst_382 = arith.constant dense<0.000000e+00> : vector<8x32xf32>
    %768 = tpu.matmul %766, %767, %cst_382 {dimension_numbers = #tpu.dot_dimension_numbers<[1], [0], [0], [1], [0, 0, 1, 1], [], []>} : vector<8x8xf32>, vector<8x32xf32>, vector<8x32xf32> -> vector<8x32xf32>
    %769 = arith.addf %751, %768 : vector<8x32xf32>
    %770 = vector.extract_strided_slice %745 {offsets = [0, 8], sizes = [8, 8], strides = [1, 1]} : vector<8x32xf32> to vector<8x8xf32>
    %771 = vector.extract_strided_slice %749 {offsets = [0, 8], sizes = [8, 8], strides = [1, 1]} : vector<8x32xf32> to vector<8x8xf32>
    %772 = vector.extract_strided_slice %750 {offsets = [0, 8], sizes = [8, 8], strides = [1, 1]} : vector<8x32xf32> to vector<8x8xf32>
    %cst_383 = arith.constant dense<0.000000e+00> : vector<8x8xf32>
    %773 = tpu.matmul %770, %771, %cst_383 {dimension_numbers = #tpu.dot_dimension_numbers<[1], [1], [0], [0], [0, 0, 1, 0], [], []>} : vector<8x8xf32>, vector<8x8xf32>, vector<8x8xf32> -> vector<8x8xf32>
    %cst_384 = arith.constant dense<0xFF800000> : vector<8xf32>
    %774 = vector.multi_reduction <maximumf>, %773, %cst_384 [1] : vector<8x8xf32> to vector<8xf32>
    %775 = vector.shape_cast %774 : vector<8xf32> to vector<8x1xf32>
    %776 = vector.broadcast %775 : vector<8x1xf32> to vector<8x8xf32>
    %777 = arith.subf %773, %776 : vector<8x8xf32>
    %778 = math.exp %777 : vector<8x8xf32>
    %cst_385 = arith.constant dense<0.000000e+00> : vector<8xf32>
    %779 = vector.multi_reduction <add>, %778, %cst_385 [1] : vector<8x8xf32> to vector<8xf32>
    %780 = vector.shape_cast %779 : vector<8xf32> to vector<8x1xf32>
    %781 = tpu.reciprocal %780 {approx = true} : vector<8x1xf32> -> vector<8x1xf32>
    %782 = vector.broadcast %781 : vector<8x1xf32> to vector<8x8xf32>
    %783 = arith.mulf %778, %782 : vector<8x8xf32>
    %cst_386 = arith.constant dense<0.000000e+00> : vector<8x8xf32>
    %784 = tpu.matmul %783, %772, %cst_386 {dimension_numbers = #tpu.dot_dimension_numbers<[1], [0], [0], [1], [0, 0, 1, 1], [], []>} : vector<8x8xf32>, vector<8x8xf32>, vector<8x8xf32> -> vector<8x8xf32>
    %785 = vector.extract_strided_slice %738 {offsets = [8, 0], sizes = [8, 32], strides = [1, 1]} : vector<32x32xf32> to vector<8x32xf32>
    %cst_387 = arith.constant dense<0.000000e+00> : vector<8x32xf32>
    %786 = tpu.matmul %784, %785, %cst_387 {dimension_numbers = #tpu.dot_dimension_numbers<[1], [0], [0], [1], [0, 0, 1, 1], [], []>} : vector<8x8xf32>, vector<8x32xf32>, vector<8x32xf32> -> vector<8x32xf32>
    %787 = arith.addf %769, %786 : vector<8x32xf32>
    %788 = vector.extract_strided_slice %745 {offsets = [0, 16], sizes = [8, 8], strides = [1, 1]} : vector<8x32xf32> to vector<8x8xf32>
    %789 = vector.extract_strided_slice %749 {offsets = [0, 16], sizes = [8, 8], strides = [1, 1]} : vector<8x32xf32> to vector<8x8xf32>
    %790 = vector.extract_strided_slice %750 {offsets = [0, 16], sizes = [8, 8], strides = [1, 1]} : vector<8x32xf32> to vector<8x8xf32>
    %cst_388 = arith.constant dense<0.000000e+00> : vector<8x8xf32>
    %791 = tpu.matmul %788, %789, %cst_388 {dimension_numbers = #tpu.dot_dimension_numbers<[1], [1], [0], [0], [0, 0, 1, 0], [], []>} : vector<8x8xf32>, vector<8x8xf32>, vector<8x8xf32> -> vector<8x8xf32>
    %cst_389 = arith.constant dense<0xFF800000> : vector<8xf32>
    %792 = vector.multi_reduction <maximumf>, %791, %cst_389 [1] : vector<8x8xf32> to vector<8xf32>
    %793 = vector.shape_cast %792 : vector<8xf32> to vector<8x1xf32>
    %794 = vector.broadcast %793 : vector<8x1xf32> to vector<8x8xf32>
    %795 = arith.subf %791, %794 : vector<8x8xf32>
    %796 = math.exp %795 : vector<8x8xf32>
    %cst_390 = arith.constant dense<0.000000e+00> : vector<8xf32>
    %797 = vector.multi_reduction <add>, %796, %cst_390 [1] : vector<8x8xf32> to vector<8xf32>
    %798 = vector.shape_cast %797 : vector<8xf32> to vector<8x1xf32>
    %799 = tpu.reciprocal %798 {approx = true} : vector<8x1xf32> -> vector<8x1xf32>
    %800 = vector.broadcast %799 : vector<8x1xf32> to vector<8x8xf32>
    %801 = arith.mulf %796, %800 : vector<8x8xf32>
    %cst_391 = arith.constant dense<0.000000e+00> : vector<8x8xf32>
    %802 = tpu.matmul %801, %790, %cst_391 {dimension_numbers = #tpu.dot_dimension_numbers<[1], [0], [0], [1], [0, 0, 1, 1], [], []>} : vector<8x8xf32>, vector<8x8xf32>, vector<8x8xf32> -> vector<8x8xf32>
    %803 = vector.extract_strided_slice %738 {offsets = [16, 0], sizes = [8, 32], strides = [1, 1]} : vector<32x32xf32> to vector<8x32xf32>
    %cst_392 = arith.constant dense<0.000000e+00> : vector<8x32xf32>
    %804 = tpu.matmul %802, %803, %cst_392 {dimension_numbers = #tpu.dot_dimension_numbers<[1], [0], [0], [1], [0, 0, 1, 1], [], []>} : vector<8x8xf32>, vector<8x32xf32>, vector<8x32xf32> -> vector<8x32xf32>
    %805 = arith.addf %787, %804 : vector<8x32xf32>
    %806 = vector.extract_strided_slice %745 {offsets = [0, 24], sizes = [8, 8], strides = [1, 1]} : vector<8x32xf32> to vector<8x8xf32>
    %807 = vector.extract_strided_slice %749 {offsets = [0, 24], sizes = [8, 8], strides = [1, 1]} : vector<8x32xf32> to vector<8x8xf32>
    %808 = vector.extract_strided_slice %750 {offsets = [0, 24], sizes = [8, 8], strides = [1, 1]} : vector<8x32xf32> to vector<8x8xf32>
    %cst_393 = arith.constant dense<0.000000e+00> : vector<8x8xf32>
    %809 = tpu.matmul %806, %807, %cst_393 {dimension_numbers = #tpu.dot_dimension_numbers<[1], [1], [0], [0], [0, 0, 1, 0], [], []>} : vector<8x8xf32>, vector<8x8xf32>, vector<8x8xf32> -> vector<8x8xf32>
    %cst_394 = arith.constant dense<0xFF800000> : vector<8xf32>
    %810 = vector.multi_reduction <maximumf>, %809, %cst_394 [1] : vector<8x8xf32> to vector<8xf32>
    %811 = vector.shape_cast %810 : vector<8xf32> to vector<8x1xf32>
    %812 = vector.broadcast %811 : vector<8x1xf32> to vector<8x8xf32>
    %813 = arith.subf %809, %812 : vector<8x8xf32>
    %814 = math.exp %813 : vector<8x8xf32>
    %cst_395 = arith.constant dense<0.000000e+00> : vector<8xf32>
    %815 = vector.multi_reduction <add>, %814, %cst_395 [1] : vector<8x8xf32> to vector<8xf32>
    %816 = vector.shape_cast %815 : vector<8xf32> to vector<8x1xf32>
    %817 = tpu.reciprocal %816 {approx = true} : vector<8x1xf32> -> vector<8x1xf32>
    %818 = vector.broadcast %817 : vector<8x1xf32> to vector<8x8xf32>
    %819 = arith.mulf %814, %818 : vector<8x8xf32>
    %cst_396 = arith.constant dense<0.000000e+00> : vector<8x8xf32>
    %820 = tpu.matmul %819, %808, %cst_396 {dimension_numbers = #tpu.dot_dimension_numbers<[1], [0], [0], [1], [0, 0, 1, 1], [], []>} : vector<8x8xf32>, vector<8x8xf32>, vector<8x8xf32> -> vector<8x8xf32>
    %821 = vector.extract_strided_slice %738 {offsets = [24, 0], sizes = [8, 32], strides = [1, 1]} : vector<32x32xf32> to vector<8x32xf32>
    %cst_397 = arith.constant dense<0.000000e+00> : vector<8x32xf32>
    %822 = tpu.matmul %820, %821, %cst_397 {dimension_numbers = #tpu.dot_dimension_numbers<[1], [0], [0], [1], [0, 0, 1, 1], [], []>} : vector<8x8xf32>, vector<8x32xf32>, vector<8x32xf32> -> vector<8x32xf32>
    %823 = arith.addf %805, %822 : vector<8x32xf32>
    %824 = vector.broadcast %740 : vector<1x32xf32> to vector<8x32xf32>
    %825 = arith.addf %823, %824 : vector<8x32xf32>
    %c12_398 = arith.constant 12 : index
    %c1_399 = arith.constant 1 : index
    %c0_400 = arith.constant 0 : index
    %c0_401 = arith.constant 0 : index
    %826 = vector.load %arg11[%c12_398, %c1_399, %c0_400, %c0_401] : memref<16x2x1x32xf32, #tpu.memory_space<vmem>>, vector<1x1x1x32xf32>
    %827 = vector.shape_cast %826 : vector<1x1x1x32xf32> to vector<1x32xf32>
    %c13_402 = arith.constant 13 : index
    %c1_403 = arith.constant 1 : index
    %c0_404 = arith.constant 0 : index
    %c0_405 = arith.constant 0 : index
    %828 = vector.load %arg11[%c13_402, %c1_403, %c0_404, %c0_405] : memref<16x2x1x32xf32, #tpu.memory_space<vmem>>, vector<1x1x1x32xf32>
    %829 = vector.shape_cast %828 : vector<1x1x1x32xf32> to vector<1x32xf32>
    %830 = arith.addf %728, %825 : vector<8x32xf32>
    %cst_406 = arith.constant dense<0.000000e+00> : vector<8xf32>
    %831 = vector.multi_reduction <add>, %830, %cst_406 [1] : vector<8x32xf32> to vector<8xf32>
    %832 = vector.shape_cast %831 : vector<8xf32> to vector<8x1xf32>
    %cst_407 = arith.constant 3.200000e+01 : f32
    %833 = vector.broadcast %cst_407 : f32 to vector<8x1xf32>
    %834 = arith.divf %832, %833 : vector<8x1xf32>
    %835 = vector.broadcast %834 : vector<8x1xf32> to vector<8x32xf32>
    %836 = arith.subf %830, %835 : vector<8x32xf32>
    %837 = arith.mulf %836, %836 : vector<8x32xf32>
    %cst_408 = arith.constant dense<0.000000e+00> : vector<8xf32>
    %838 = vector.multi_reduction <add>, %837, %cst_408 [1] : vector<8x32xf32> to vector<8xf32>
    %839 = vector.shape_cast %838 : vector<8xf32> to vector<8x1xf32>
    %cst_409 = arith.constant 3.200000e+01 : f32
    %840 = vector.broadcast %cst_409 : f32 to vector<8x1xf32>
    %841 = arith.divf %839, %840 : vector<8x1xf32>
    %842 = vector.broadcast %834 : vector<8x1xf32> to vector<8x32xf32>
    %843 = arith.subf %830, %842 : vector<8x32xf32>
    %cst_410 = arith.constant 9.99999974E-6 : f32
    %844 = vector.broadcast %cst_410 : f32 to vector<8x1xf32>
    %845 = arith.addf %841, %844 : vector<8x1xf32>
    %846 = math.rsqrt %845 : vector<8x1xf32>
    %847 = vector.broadcast %846 : vector<8x1xf32> to vector<8x32xf32>
    %848 = arith.mulf %843, %847 : vector<8x32xf32>
    %849 = vector.broadcast %827 : vector<1x32xf32> to vector<8x32xf32>
    %850 = arith.mulf %848, %849 : vector<8x32xf32>
    %851 = vector.broadcast %829 : vector<1x32xf32> to vector<8x32xf32>
    %852 = arith.addf %850, %851 : vector<8x32xf32>
    %c1_411 = arith.constant 1 : index
    %c1_412 = arith.constant 1 : index
    %c0_413 = arith.constant 0 : index
    %c0_414 = arith.constant 0 : index
    %853 = vector.load %arg8[%c1_411, %c1_412, %c0_413, %c0_414] : memref<2x2x32x64xf32, #tpu.memory_space<vmem>>, vector<1x1x32x64xf32>
    %854 = vector.shape_cast %853 : vector<1x1x32x64xf32> to vector<32x64xf32>
    %c1_415 = arith.constant 1 : index
    %c1_416 = arith.constant 1 : index
    %c0_417 = arith.constant 0 : index
    %c0_418 = arith.constant 0 : index
    %855 = vector.load %arg9[%c1_415, %c1_416, %c0_417, %c0_418] : memref<2x2x1x64xf32, #tpu.memory_space<vmem>>, vector<1x1x1x64xf32>
    %856 = vector.shape_cast %855 : vector<1x1x1x64xf32> to vector<1x64xf32>
    %c1_419 = arith.constant 1 : index
    %c1_420 = arith.constant 1 : index
    %c0_421 = arith.constant 0 : index
    %c0_422 = arith.constant 0 : index
    %857 = vector.load %arg10[%c1_419, %c1_420, %c0_421, %c0_422] : memref<2x2x64x32xf32, #tpu.memory_space<vmem>>, vector<1x1x64x32xf32>
    %858 = vector.shape_cast %857 : vector<1x1x64x32xf32> to vector<64x32xf32>
    %c9_423 = arith.constant 9 : index
    %c1_424 = arith.constant 1 : index
    %c0_425 = arith.constant 0 : index
    %c0_426 = arith.constant 0 : index
    %859 = vector.load %arg11[%c9_423, %c1_424, %c0_425, %c0_426] : memref<16x2x1x32xf32, #tpu.memory_space<vmem>>, vector<1x1x1x32xf32>
    %860 = vector.shape_cast %859 : vector<1x1x1x32xf32> to vector<1x32xf32>
    %cst_427 = arith.constant dense<0.000000e+00> : vector<8x64xf32>
    %861 = tpu.matmul %852, %854, %cst_427 {dimension_numbers = #tpu.dot_dimension_numbers<[1], [0], [0], [1], [0, 0, 1, 1], [], []>} : vector<8x32xf32>, vector<32x64xf32>, vector<8x64xf32> -> vector<8x64xf32>
    %862 = vector.broadcast %856 : vector<1x64xf32> to vector<8x64xf32>
    %863 = arith.addf %861, %862 : vector<8x64xf32>
    %cst_428 = arith.constant 0.000000e+00 : f32
    %864 = vector.broadcast %cst_428 : f32 to vector<8x64xf32>
    %865 = arith.maximumf %863, %864 : vector<8x64xf32>
    %cst_429 = arith.constant dense<0.000000e+00> : vector<8x32xf32>
    %866 = tpu.matmul %865, %858, %cst_429 {dimension_numbers = #tpu.dot_dimension_numbers<[1], [0], [0], [1], [0, 0, 1, 1], [], []>} : vector<8x64xf32>, vector<64x32xf32>, vector<8x32xf32> -> vector<8x32xf32>
    %867 = vector.broadcast %860 : vector<1x32xf32> to vector<8x32xf32>
    %868 = arith.addf %866, %867 : vector<8x32xf32>
    %c14_430 = arith.constant 14 : index
    %c1_431 = arith.constant 1 : index
    %c0_432 = arith.constant 0 : index
    %c0_433 = arith.constant 0 : index
    %869 = vector.load %arg11[%c14_430, %c1_431, %c0_432, %c0_433] : memref<16x2x1x32xf32, #tpu.memory_space<vmem>>, vector<1x1x1x32xf32>
    %870 = vector.shape_cast %869 : vector<1x1x1x32xf32> to vector<1x32xf32>
    %c15_434 = arith.constant 15 : index
    %c1_435 = arith.constant 1 : index
    %c0_436 = arith.constant 0 : index
    %c0_437 = arith.constant 0 : index
    %871 = vector.load %arg11[%c15_434, %c1_435, %c0_436, %c0_437] : memref<16x2x1x32xf32, #tpu.memory_space<vmem>>, vector<1x1x1x32xf32>
    %872 = vector.shape_cast %871 : vector<1x1x1x32xf32> to vector<1x32xf32>
    %873 = arith.addf %852, %868 : vector<8x32xf32>
    %cst_438 = arith.constant dense<0.000000e+00> : vector<8xf32>
    %874 = vector.multi_reduction <add>, %873, %cst_438 [1] : vector<8x32xf32> to vector<8xf32>
    %875 = vector.shape_cast %874 : vector<8xf32> to vector<8x1xf32>
    %cst_439 = arith.constant 3.200000e+01 : f32
    %876 = vector.broadcast %cst_439 : f32 to vector<8x1xf32>
    %877 = arith.divf %875, %876 : vector<8x1xf32>
    %878 = vector.broadcast %877 : vector<8x1xf32> to vector<8x32xf32>
    %879 = arith.subf %873, %878 : vector<8x32xf32>
    %880 = arith.mulf %879, %879 : vector<8x32xf32>
    %cst_440 = arith.constant dense<0.000000e+00> : vector<8xf32>
    %881 = vector.multi_reduction <add>, %880, %cst_440 [1] : vector<8x32xf32> to vector<8xf32>
    %882 = vector.shape_cast %881 : vector<8xf32> to vector<8x1xf32>
    %cst_441 = arith.constant 3.200000e+01 : f32
    %883 = vector.broadcast %cst_441 : f32 to vector<8x1xf32>
    %884 = arith.divf %882, %883 : vector<8x1xf32>
    %885 = vector.broadcast %877 : vector<8x1xf32> to vector<8x32xf32>
    %886 = arith.subf %873, %885 : vector<8x32xf32>
    %cst_442 = arith.constant 9.99999974E-6 : f32
    %887 = vector.broadcast %cst_442 : f32 to vector<8x1xf32>
    %888 = arith.addf %884, %887 : vector<8x1xf32>
    %889 = math.rsqrt %888 : vector<8x1xf32>
    %890 = vector.broadcast %889 : vector<8x1xf32> to vector<8x32xf32>
    %891 = arith.mulf %886, %890 : vector<8x32xf32>
    %892 = vector.broadcast %870 : vector<1x32xf32> to vector<8x32xf32>
    %893 = arith.mulf %891, %892 : vector<8x32xf32>
    %894 = vector.broadcast %872 : vector<1x32xf32> to vector<8x32xf32>
    %895 = arith.addf %893, %894 : vector<8x32xf32>
    %c0_443 = arith.constant 0 : index
    %c0_444 = arith.constant 0 : index
    %896 = vector.load %arg12[%c0_443, %c0_444] : memref<32x16xf32, #tpu.memory_space<vmem>>, vector<32x16xf32>
    %cst_445 = arith.constant dense<0.000000e+00> : vector<8x16xf32>
    %897 = tpu.matmul %895, %896, %cst_445 {dimension_numbers = #tpu.dot_dimension_numbers<[1], [0], [0], [1], [0, 0, 1, 1], [], []>} : vector<8x32xf32>, vector<32x16xf32>, vector<8x16xf32> -> vector<8x16xf32>
    %c0_446 = arith.constant 0 : index
    %c0_447 = arith.constant 0 : index
    %898 = vector.load %arg13[%c0_446, %c0_447] : memref<1x16xf32, #tpu.memory_space<vmem>>, vector<1x16xf32>
    %899 = vector.broadcast %898 : vector<1x16xf32> to vector<8x16xf32>
    %900 = arith.addf %897, %899 : vector<8x16xf32>
    %c0_448 = arith.constant 0 : index
    %c0_449 = arith.constant 0 : index
    %c0_450 = arith.constant 0 : index
    %901 = vector.load %arg14[%c0_448, %c0_449, %c0_450] : memref<1x8x16xf32, #tpu.memory_space<vmem>>, vector<1x8x16xf32>
    %902 = vector.shape_cast %901 : vector<1x8x16xf32> to vector<8x16xf32>
    %903 = vector.shape_cast %900 : vector<8x16xf32> to vector<1x8x16xf32>
    tpu.vector_store %arg14[%c0_448, %c0_449, %c0_450], %903 {strides = array<i32>} : memref<1x8x16xf32, #tpu.memory_space<vmem>>, vector<1x8x16xf32>,
    return
  }
  func.func @transform_0(%arg0: i32) -> (i32, i32, i32) {
    %c0_i32 = arith.constant 0 : i32
    %c0_i32_0 = arith.constant 0 : i32
    %c0_i32_1 = arith.constant 0 : i32
    return %arg0, %c0_i32, %c0_i32_0 : i32, i32, i32
  }
  func.func @transform_1(%arg0: i32) -> (i32, i32, i32) {
    %c0_i32 = arith.constant 0 : i32
    %c0_i32_0 = arith.constant 0 : i32
    %c0_i32_1 = arith.constant 0 : i32
    return %arg0, %c0_i32, %c0_i32_0 : i32, i32, i32
  }
  func.func @transform_2(%arg0: i32) -> (i32, i32, i32, i32) {
    %c0_i32 = arith.constant 0 : i32
    %c0_i32_0 = arith.constant 0 : i32
    %c0_i32_1 = arith.constant 0 : i32
    %c0_i32_2 = arith.constant 0 : i32
    %c0_i32_3 = arith.constant 0 : i32
    return %c0_i32, %c0_i32_0, %c0_i32_1, %c0_i32_2 : i32, i32, i32, i32
  }
  func.func @transform_3(%arg0: i32) -> (i32, i32, i32, i32) {
    %c0_i32 = arith.constant 0 : i32
    %c0_i32_0 = arith.constant 0 : i32
    %c0_i32_1 = arith.constant 0 : i32
    %c0_i32_2 = arith.constant 0 : i32
    %c0_i32_3 = arith.constant 0 : i32
    return %c0_i32, %c0_i32_0, %c0_i32_1, %c0_i32_2 : i32, i32, i32, i32
  }
  func.func @transform_4(%arg0: i32) -> (i32, i32, i32, i32) {
    %c0_i32 = arith.constant 0 : i32
    %c0_i32_0 = arith.constant 0 : i32
    %c0_i32_1 = arith.constant 0 : i32
    %c0_i32_2 = arith.constant 0 : i32
    %c0_i32_3 = arith.constant 0 : i32
    return %c0_i32, %c0_i32_0, %c0_i32_1, %c0_i32_2 : i32, i32, i32, i32
  }
  func.func @transform_5(%arg0: i32) -> (i32, i32, i32) {
    %c0_i32 = arith.constant 0 : i32
    %c0_i32_0 = arith.constant 0 : i32
    %c0_i32_1 = arith.constant 0 : i32
    %c0_i32_2 = arith.constant 0 : i32
    return %c0_i32, %c0_i32_0, %c0_i32_1 : i32, i32, i32
  }
  func.func @transform_6(%arg0: i32) -> (i32, i32, i32) {
    %c0_i32 = arith.constant 0 : i32
    %c0_i32_0 = arith.constant 0 : i32
    %c0_i32_1 = arith.constant 0 : i32
    %c0_i32_2 = arith.constant 0 : i32
    return %c0_i32, %c0_i32_0, %c0_i32_1 : i32, i32, i32
  }
  func.func @transform_7(%arg0: i32) -> (i32, i32, i32, i32) {
    %c0_i32 = arith.constant 0 : i32
    %c0_i32_0 = arith.constant 0 : i32
    %c0_i32_1 = arith.constant 0 : i32
    %c0_i32_2 = arith.constant 0 : i32
    %c0_i32_3 = arith.constant 0 : i32
    return %c0_i32, %c0_i32_0, %c0_i32_1, %c0_i32_2 : i32, i32, i32, i32
  }
  func.func @transform_8(%arg0: i32) -> (i32, i32, i32, i32) {
    %c0_i32 = arith.constant 0 : i32
    %c0_i32_0 = arith.constant 0 : i32
    %c0_i32_1 = arith.constant 0 : i32
    %c0_i32_2 = arith.constant 0 : i32
    %c0_i32_3 = arith.constant 0 : i32
    return %c0_i32, %c0_i32_0, %c0_i32_1, %c0_i32_2 : i32, i32, i32, i32
  }
  func.func @transform_9(%arg0: i32) -> (i32, i32, i32, i32) {
    %c0_i32 = arith.constant 0 : i32
    %c0_i32_0 = arith.constant 0 : i32
    %c0_i32_1 = arith.constant 0 : i32
    %c0_i32_2 = arith.constant 0 : i32
    %c0_i32_3 = arith.constant 0 : i32
    return %c0_i32, %c0_i32_0, %c0_i32_1, %c0_i32_2 : i32, i32, i32, i32
  }
  func.func @transform_10(%arg0: i32) -> (i32, i32, i32, i32) {
    %c0_i32 = arith.constant 0 : i32
    %c0_i32_0 = arith.constant 0 : i32
    %c0_i32_1 = arith.constant 0 : i32
    %c0_i32_2 = arith.constant 0 : i32
    %c0_i32_3 = arith.constant 0 : i32
    return %c0_i32, %c0_i32_0, %c0_i32_1, %c0_i32_2 : i32, i32, i32, i32
  }
  func.func @transform_11(%arg0: i32) -> (i32, i32) {
    %c0_i32 = arith.constant 0 : i32
    %c0_i32_0 = arith.constant 0 : i32
    %c0_i32_1 = arith.constant 0 : i32
    return %c0_i32, %c0_i32_0 : i32, i32
  }
  func.func @transform_12(%arg0: i32) -> (i32, i32) {
    %c0_i32 = arith.constant 0 : i32
    %c0_i32_0 = arith.constant 0 : i32
    %c0_i32_1 = arith.constant 0 : i32
    return %c0_i32, %c0_i32_0 : i32, i32
  }
  func.func @transform_13(%arg0: i32) -> (i32, i32, i32) {
    %c0_i32 = arith.constant 0 : i32
    %c0_i32_0 = arith.constant 0 : i32
    %c0_i32_1 = arith.constant 0 : i32
    return %arg0, %c0_i32, %c0_i32_0 : i32, i32, i32
  }
}

</mosaic_0001>

<llo_original>
// kernel: transformer_forward.1
$region0: #{transformer_forward.1}
  #allocation0 [shape = 'u32[]', space=smem, size = 0x4, offset = 0x4, fixed_abs, tag = 'smem constant byte address 0x4 - core index']
  #allocation1 [shape = 'u32[72,128]{1,0:T(1,128)}', space=vmem, size = 0x9000, scoped, tag = 'internal scratch']
  %s0 = inlined_call_operand.vmem [shape: f32[2,8,32], index: 0, kind: input, shape index: {}]
  %s1 = inlined_call_operand.vmem [shape: f32[2,8,32], index: 1, kind: input, shape index: {}]
  %s2 = inlined_call_operand.vmem [shape: f32[2,2,32,96], index: 2, kind: input, shape index: {}]
  %s3 = inlined_call_operand.vmem [shape: f32[2,2,1,96], index: 3, kind: input, shape index: {}]
  %s4 = inlined_call_operand.vmem [shape: f32[4,2,32,32], index: 4, kind: input, shape index: {}]
  %s5 = inlined_call_operand.vmem [shape: f32[2,32,64], index: 5, kind: input, shape index: {}]
  %s6 = inlined_call_operand.vmem [shape: f32[2,1,64], index: 6, kind: input, shape index: {}]
  %s7 = inlined_call_operand.vmem [shape: f32[2,2,32,64], index: 7, kind: input, shape index: {}]
  %s8 = inlined_call_operand.vmem [shape: f32[2,2,1,64], index: 8, kind: input, shape index: {}]
  %s9 = inlined_call_operand.vmem [shape: f32[2,2,64,32], index: 9, kind: input, shape index: {}]
  %s10 = inlined_call_operand.vmem [shape: f32[16,2,1,32], index: 10, kind: input, shape index: {}]
  %s11 = inlined_call_operand.vmem [shape: f32[32,16], index: 11, kind: input, shape index: {}]
  %s12 = inlined_call_operand.vmem [shape: f32[1,16], index: 12, kind: input, shape index: {}]
  %s13 = inlined_call_operand.hbm [shape: f32[2,8,16], index: 13, kind: output, shape index: {}]
  %s14 = sld [smem:[#allocation0]]
  $region85: #{transformer_forward.1} parent=0
    _
  %s16 = ssub.s32 1, %s14
  %s17 = scalar_select 0, %s16, %s14
  $region1: #{transformer_forward.1} parent=0
    #allocation2 [shape = 'u8[8192]{0}', space=vmem, size = 0x2000, scoped, tag = 'output window, operand 0']
    #allocation3 [shape = 's32[2]{0}', space=sflag, size = 0x8, scoped, tag = 'scoped memory for transformer_forward.1']
    %18 = vsyncpa [#allocation3], 0
    %s19 = scalar_lea.sflag [#allocation3], 1
    %20 = vsyncpa %s19, 0
    loop: start=0, step=1, limit=4
    $region2: #{transformer_forward.1} parent=1 // loop_pre_header
      _
    $region3: #{transformer_forward.1} parent=1 // loop_header
      %s22 = sphi 0, %s26
      %p23 = scmp.ge.s32.totalorder %s22, 4
      %s32 = sphi 0, %s34
      %s35 = sphi 0, %s32
      %s36 = sphi 0, %s35
      %s52 = sphi 0, %s36
      %s58 = sphi 0, %s60
      %s61 = sphi 0, %s58
      %s62 = sphi 0, %s61
      %s78 = sphi 0, %s62
      %s82 = sphi 0, %s82
      %s84 = sphi 0, %s82
      %s85 = sphi 0, %s84
      %s99 = sphi 0, %s85
      %s103 = sphi 0, %s103
      %s105 = sphi 0, %s103
      %s106 = sphi 0, %s105
      %s120 = sphi 0, %s106
      %s124 = sphi 0, %s124
      %s126 = sphi 0, %s124
      %s127 = sphi 0, %s126
      %s141 = sphi 0, %s127
      %s145 = sphi 0, %s145
      %s147 = sphi 0, %s145
      %s148 = sphi 0, %s147
      %s162 = sphi 0, %s148
      %s166 = sphi 0, %s166
      %s168 = sphi 0, %s166
      %s169 = sphi 0, %s168
      %s183 = sphi 0, %s169
      %s187 = sphi 0, %s187
      %s189 = sphi 0, %s187
      %s190 = sphi 0, %s189
      %s204 = sphi 0, %s190
      %s208 = sphi 0, %s208
      %s210 = sphi 0, %s208
      %s211 = sphi 0, %s210
      %s225 = sphi 0, %s211
      %s229 = sphi 0, %s229
      %s231 = sphi 0, %s229
      %s232 = sphi 0, %s231
      %s246 = sphi 0, %s232
      %s250 = sphi 0, %s250
      %s252 = sphi 0, %s250
      %s253 = sphi 0, %s252
      %s267 = sphi 0, %s253
      %s271 = sphi 0, %s271
      %s273 = sphi 0, %s271
      %s274 = sphi 0, %s273
      %s288 = sphi 0, %s274
      %s292 = sphi 0, %s292
      %s294 = sphi 0, %s292
      %s295 = sphi 0, %s294
      %s309 = sphi 0, %s295
      %s315 = sphi 0, %s317
      %s318 = sphi 0, %s315
      %s319 = sphi 0, %s318
      %s335 = sphi 0, %s319
    $region4: #{transformer_forward.1} parent=1 // loop_header_branch
      %25 = sbr.rel (%p23) target = $region8
    $region5: #{transformer_forward.1} parent=1 // loop_body
      %s27 = ssub.s32 %s22, 1
      %s28 = ssub.s32 %s22, 2
      %s29 = sadd.s32 %s22, 1
      %s30 = ssub.s32 %s22, %s29
      %p31 = scmp.eq.s32.totalorder %s30, 0
      %s33 = sadd.s32 %s32, 1
      %s34 = scalar_select %p31, %s32, %s33
      %p37 = pneg %p31
      %p38 = scmp.eq.s32.totalorder %s22, 1
      %p39 = por %p37, %p38
      %p40 = scmp.ne.s32.totalorder %s32, %s35
      %p41 = scmp.eq.s32.totalorder %s22, 0
      %p42 = por %p40, %p41
      %p43 = scmp.ne.s32.totalorder %s32, %s35
      %p44 = scmp.eq.s32.totalorder %s27, 1
      %p45 = por %p43, %p44
      %p46 = scmp.ne.s32.totalorder %s35, %s36
      %p47 = scmp.eq.s32.totalorder %s27, 0
      %p48 = por %p46, %p47
      %p49 = scmp.ne.s32.totalorder %s35, %s36
      %p50 = scmp.eq.s32.totalorder %s28, 1
      %p51 = por %p49, %p50
      %p53 = scmp.ne.s32.totalorder %s36, %s52
      %p54 = scmp.eq.s32.totalorder %s28, 0
      %p55 = por %p53, %p54
      %s56 = ssub.s32 %s22, %s29
      %p57 = scmp.eq.s32.totalorder %s56, 0
      %s59 = sadd.s32 %s58, 1
      %s60 = scalar_select %p57, %s58, %s59
      %p63 = pneg %p57
      %p64 = scmp.eq.s32.totalorder %s22, 1
      %p65 = por %p63, %p64
      %p66 = scmp.ne.s32.totalorder %s58, %s61
      %p67 = scmp.eq.s32.totalorder %s22, 0
      %p68 = por %p66, %p67
      %p69 = scmp.ne.s32.totalorder %s58, %s61
      %p70 = scmp.eq.s32.totalorder %s27, 1
      %p71 = por %p69, %p70
      %p72 = scmp.ne.s32.totalorder %s61, %s62
      %p73 = scmp.eq.s32.totalorder %s27, 0
      %p74 = por %p72, %p73
      %p75 = scmp.ne.s32.totalorder %s61, %s62
      %p76 = scmp.eq.s32.totalorder %s28, 1
      %p77 = por %p75, %p76
      %p79 = scmp.ne.s32.totalorder %s62, %s78
      %p80 = scmp.eq.s32.totalorder %s28, 0
      %p81 = por %p79, %p80
      %s83 = sadd.s32 %s82, 1
      %p86 = scmp.eq.s32.totalorder %s22, 1
      %p87 = scmp.ne.s32.totalorder %s82, %s84
      %p88 = scmp.eq.s32.totalorder %s22, 0
      %p89 = por %p87, %p88
      %p90 = scmp.ne.s32.totalorder %s82, %s84
      %p91 = scmp.eq.s32.totalorder %s27, 1
      %p92 = por %p90, %p91
      %p93 = scmp.ne.s32.totalorder %s84, %s85
      %p94 = scmp.eq.s32.totalorder %s27, 0
      %p95 = por %p93, %p94
      %p96 = scmp.ne.s32.totalorder %s84, %s85
      %p97 = scmp.eq.s32.totalorder %s28, 1
      %p98 = por %p96, %p97
      %p100 = scmp.ne.s32.totalorder %s85, %s99
      %p101 = scmp.eq.s32.totalorder %s28, 0
      %p102 = por %p100, %p101
      %s104 = sadd.s32 %s103, 1
      %p107 = scmp.eq.s32.totalorder %s22, 1
      %p108 = scmp.ne.s32.totalorder %s103, %s105
      %p109 = scmp.eq.s32.totalorder %s22, 0
      %p110 = por %p108, %p109
      %p111 = scmp.ne.s32.totalorder %s103, %s105
      %p112 = scmp.eq.s32.totalorder %s27, 1
      %p113 = por %p111, %p112
      %p114 = scmp.ne.s32.totalorder %s105, %s106
      %p115 = scmp.eq.s32.totalorder %s27, 0
      %p116 = por %p114, %p115
      %p117 = scmp.ne.s32.totalorder %s105, %s106
      %p118 = scmp.eq.s32.totalorder %s28, 1
      %p119 = por %p117, %p118
      %p121 = scmp.ne.s32.totalorder %s106, %s120
      %p122 = scmp.eq.s32.totalorder %s28, 0
      %p123 = por %p121, %p122
      %s125 = sadd.s32 %s124, 1
      %p128 = scmp.eq.s32.totalorder %s22, 1
      %p129 = scmp.ne.s32.totalorder %s124, %s126
      %p130 = scmp.eq.s32.totalorder %s22, 0
      %p131 = por %p129, %p130
      %p132 = scmp.ne.s32.totalorder %s124, %s126
      %p133 = scmp.eq.s32.totalorder %s27, 1
      %p134 = por %p132, %p133
      %p135 = scmp.ne.s32.totalorder %s126, %s127
      %p136 = scmp.eq.s32.totalorder %s27, 0
      %p137 = por %p135, %p136
      %p138 = scmp.ne.s32.totalorder %s126, %s127
      %p139 = scmp.eq.s32.totalorder %s28, 1
      %p140 = por %p138, %p139
      %p142 = scmp.ne.s32.totalorder %s127, %s141
      %p143 = scmp.eq.s32.totalorder %s28, 0
      %p144 = por %p142, %p143
      %s146 = sadd.s32 %s145, 1
      %p149 = scmp.eq.s32.totalorder %s22, 1
      %p150 = scmp.ne.s32.totalorder %s145, %s147
      %p151 = scmp.eq.s32.totalorder %s22, 0
      %p152 = por %p150, %p151
      %p153 = scmp.ne.s32.totalorder %s145, %s147
      %p154 = scmp.eq.s32.totalorder %s27, 1
      %p155 = por %p153, %p154
      %p156 = scmp.ne.s32.totalorder %s147, %s148
      %p157 = scmp.eq.s32.totalorder %s27, 0
      %p158 = por %p156, %p157
      %p159 = scmp.ne.s32.totalorder %s147, %s148
      %p160 = scmp.eq.s32.totalorder %s28, 1
      %p161 = por %p159, %p160
      %p163 = scmp.ne.s32.totalorder %s148, %s162
      %p164 = scmp.eq.s32.totalorder %s28, 0
      %p165 = por %p163, %p164
      %s167 = sadd.s32 %s166, 1
      %p170 = scmp.eq.s32.totalorder %s22, 1
      %p171 = scmp.ne.s32.totalorder %s166, %s168
      %p172 = scmp.eq.s32.totalorder %s22, 0
      %p173 = por %p171, %p172
      %p174 = scmp.ne.s32.totalorder %s166, %s168
      %p175 = scmp.eq.s32.totalorder %s27, 1
      %p176 = por %p174, %p175
      %p177 = scmp.ne.s32.totalorder %s168, %s169
      %p178 = scmp.eq.s32.totalorder %s27, 0
      %p179 = por %p177, %p178
      %p180 = scmp.ne.s32.totalorder %s168, %s169
      %p181 = scmp.eq.s32.totalorder %s28, 1
      %p182 = por %p180, %p181
      %p184 = scmp.ne.s32.totalorder %s169, %s183
      %p185 = scmp.eq.s32.totalorder %s28, 0
      %p186 = por %p184, %p185
      %s188 = sadd.s32 %s187, 1
      %p191 = scmp.eq.s32.totalorder %s22, 1
      %p192 = scmp.ne.s32.totalorder %s187, %s189
      %p193 = scmp.eq.s32.totalorder %s22, 0
      %p194 = por %p192, %p193
      %p195 = scmp.ne.s32.totalorder %s187, %s189
      %p196 = scmp.eq.s32.totalorder %s27, 1
      %p197 = por %p195, %p196
      %p198 = scmp.ne.s32.totalorder %s189, %s190
      %p199 = scmp.eq.s32.totalorder %s27, 0
      %p200 = por %p198, %p199
      %p201 = scmp.ne.s32.totalorder %s189, %s190
      %p202 = scmp.eq.s32.totalorder %s28, 1
      %p203 = por %p201, %p202
      %p205 = scmp.ne.s32.totalorder %s190, %s204
      %p206 = scmp.eq.s32.totalorder %s28, 0
      %p207 = por %p205, %p206
      %s209 = sadd.s32 %s208, 1
      %p212 = scmp.eq.s32.totalorder %s22, 1
      %p213 = scmp.ne.s32.totalorder %s208, %s210
      %p214 = scmp.eq.s32.totalorder %s22, 0
      %p215 = por %p213, %p214
      %p216 = scmp.ne.s32.totalorder %s208, %s210
      %p217 = scmp.eq.s32.totalorder %s27, 1
      %p218 = por %p216, %p217
      %p219 = scmp.ne.s32.totalorder %s210, %s211
      %p220 = scmp.eq.s32.totalorder %s27, 0
      %p221 = por %p219, %p220
      %p222 = scmp.ne.s32.totalorder %s210, %s211
      %p223 = scmp.eq.s32.totalorder %s28, 1
      %p224 = por %p222, %p223
      %p226 = scmp.ne.s32.totalorder %s211, %s225
      %p227 = scmp.eq.s32.totalorder %s28, 0
      %p228 = por %p226, %p227
      %s230 = sadd.s32 %s229, 1
      %p233 = scmp.eq.s32.totalorder %s22, 1
      %p234 = scmp.ne.s32.totalorder %s229, %s231
      %p235 = scmp.eq.s32.totalorder %s22, 0
      %p236 = por %p234, %p235
      %p237 = scmp.ne.s32.totalorder %s229, %s231
      %p238 = scmp.eq.s32.totalorder %s27, 1
      %p239 = por %p237, %p238
      %p240 = scmp.ne.s32.totalorder %s231, %s232
      %p241 = scmp.eq.s32.totalorder %s27, 0
      %p242 = por %p240, %p241
      %p243 = scmp.ne.s32.totalorder %s231, %s232
      %p244 = scmp.eq.s32.totalorder %s28, 1
      %p245 = por %p243, %p244
      %p247 = scmp.ne.s32.totalorder %s232, %s246
      %p248 = scmp.eq.s32.totalorder %s28, 0
      %p249 = por %p247, %p248
      %s251 = sadd.s32 %s250, 1
      %p254 = scmp.eq.s32.totalorder %s22, 1
      %p255 = scmp.ne.s32.totalorder %s250, %s252
      %p256 = scmp.eq.s32.totalorder %s22, 0
      %p257 = por %p255, %p256
      %p258 = scmp.ne.s32.totalorder %s250, %s252
      %p259 = scmp.eq.s32.totalorder %s27, 1
      %p260 = por %p258, %p259
      %p261 = scmp.ne.s32.totalorder %s252, %s253
      %p262 = scmp.eq.s32.totalorder %s27, 0
      %p263 = por %p261, %p262
      %p264 = scmp.ne.s32.totalorder %s252, %s253
      %p265 = scmp.eq.s32.totalorder %s28, 1
      %p266 = por %p264, %p265
      %p268 = scmp.ne.s32.totalorder %s253, %s267
      %p269 = scmp.eq.s32.totalorder %s28, 0
      %p270 = por %p268, %p269
      %s272 = sadd.s32 %s271, 1
      %p275 = scmp.eq.s32.totalorder %s22, 1
      %p276 = scmp.ne.s32.totalorder %s271, %s273
      %p277 = scmp.eq.s32.totalorder %s22, 0
      %p278 = por %p276, %p277
      %p279 = scmp.ne.s32.totalorder %s271, %s273
      %p280 = scmp.eq.s32.totalorder %s27, 1
      %p281 = por %p279, %p280
      %p282 = scmp.ne.s32.totalorder %s273, %s274
      %p283 = scmp.eq.s32.totalorder %s27, 0
      %p284 = por %p282, %p283
      %p285 = scmp.ne.s32.totalorder %s273, %s274
      %p286 = scmp.eq.s32.totalorder %s28, 1
      %p287 = por %p285, %p286
      %p289 = scmp.ne.s32.totalorder %s274, %s288
      %p290 = scmp.eq.s32.totalorder %s28, 0
      %p291 = por %p289, %p290
      %s293 = sadd.s32 %s292, 1
      %p296 = scmp.eq.s32.totalorder %s22, 1
      %p297 = scmp.ne.s32.totalorder %s292, %s294
      %p298 = scmp.eq.s32.totalorder %s22, 0
      %p299 = por %p297, %p298
      %p300 = scmp.ne.s32.totalorder %s292, %s294
      %p301 = scmp.eq.s32.totalorder %s27, 1
      %p302 = por %p300, %p301
      %p303 = scmp.ne.s32.totalorder %s294, %s295
      %p304 = scmp.eq.s32.totalorder %s27, 0
      %p305 = por %p303, %p304
      %p306 = scmp.ne.s32.totalorder %s294, %s295
      %p307 = scmp.eq.s32.totalorder %s28, 1
      %p308 = por %p306, %p307
      %p310 = scmp.ne.s32.totalorder %s295, %s309
      %p311 = scmp.eq.s32.totalorder %s28, 0
      %p312 = por %p310, %p311
      %s313 = ssub.s32 %s22, %s29
      %p314 = scmp.eq.s32.totalorder %s313, 0
      %s316 = sadd.s32 %s315, 1
      %s317 = scalar_select %p314, %s315, %s316
      %p320 = pneg %p314
      %p321 = scmp.eq.s32.totalorder %s22, 1
      %p322 = por %p320, %p321
      %p323 = scmp.ne.s32.totalorder %s315, %s318
      %p324 = scmp.eq.s32.totalorder %s22, 0
      %p325 = por %p323, %p324
      %p326 = scmp.ne.s32.totalorder %s315, %s318
      %p327 = scmp.eq.s32.totalorder %s27, 1
      %p328 = por %p326, %p327
      %p329 = scmp.ne.s32.totalorder %s318, %s319
      %p330 = scmp.eq.s32.totalorder %s27, 0
      %p331 = por %p329, %p330
      %p332 = scmp.ne.s32.totalorder %s318, %s319
      %p333 = scmp.eq.s32.totalorder %s28, 1
      %p334 = por %p332, %p333
      %p336 = scmp.ne.s32.totalorder %s319, %s335
      %p337 = scmp.eq.s32.totalorder %s28, 0
      %p338 = por %p336, %p337
      %p339 = scmp.le.s32.totalorder 1, %s22
      %p340 = scmp.lt.s32.totalorder %s22, 3
      %p341 = pnand %p339, %p340
      %p342 = pneg %p341
      // Predicated region
      $region9: #{transformer_forward.1} parent=5 // pred_check
        _
      $region10: #{transformer_forward.1} parent=5 // pred_check_branch
        %344 = sbr.rel (%p341) target = $region12
      $region11: #{transformer_forward.1} parent=5 // pred_region
        %s345 = ssub.s32 %s22, 1
        // Predicated region
        $region13: #{transformer_forward.1} parent=11 // pred_check
          %p346 = pneg %p95
        $region14: #{transformer_forward.1} parent=11 // pred_check_branch
          %348 = sbr.rel (%p346) target = $region16
        $region15: #{transformer_forward.1} parent=11 // pred_region
          _
        $region16: #{transformer_forward.1} parent=11 // pred_fallthru
          _
        // Predicated region
        $region17: #{transformer_forward.1} parent=11 // pred_check
          %p349 = pneg %p116
        $region18: #{transformer_forward.1} parent=11 // pred_check_branch
          %351 = sbr.rel (%p349) target = $region20
        $region19: #{transformer_forward.1} parent=11 // pred_region
          _
        $region20: #{transformer_forward.1} parent=11 // pred_fallthru
          _
        // Predicated region
        $region21: #{transformer_forward.1} parent=11 // pred_check
          %p352 = pneg %p137
        $region22: #{transformer_forward.1} parent=11 // pred_check_branch
          %354 = sbr.rel (%p352) target = $region24
        $region23: #{transformer_forward.1} parent=11 // pred_region
          _
        $region24: #{transformer_forward.1} parent=11 // pred_fallthru
          _
        // Predicated region
        $region25: #{transformer_forward.1} parent=11 // pred_check
          %p355 = pneg %p158
        $region26: #{transformer_forward.1} parent=11 // pred_check_branch
          %357 = sbr.rel (%p355) target = $region28
        $region27: #{transformer_forward.1} parent=11 // pred_region
          _
        $region28: #{transformer_forward.1} parent=11 // pred_fallthru
          _
        // Predicated region
        $region29: #{transformer_forward.1} parent=11 // pred_check
          %p358 = pneg %p179
        $region30: #{transformer_forward.1} parent=11 // pred_check_branch
          %360 = sbr.rel (%p358) target = $region32
        $region31: #{transformer_forward.1} parent=11 // pred_region
          _
        $region32: #{transformer_forward.1} parent=11 // pred_fallthru
          _
        // Predicated region
        $region33: #{transformer_forward.1} parent=11 // pred_check
          %p361 = pneg %p200
        $region34: #{transformer_forward.1} parent=11 // pred_check_branch
          %363 = sbr.rel (%p361) target = $region36
        $region35: #{transformer_forward.1} parent=11 // pred_region
          _
        $region36: #{transformer_forward.1} parent=11 // pred_fallthru
          _
        // Predicated region
        $region37: #{transformer_forward.1} parent=11 // pred_check
          %p364 = pneg %p221
        $region38: #{transformer_forward.1} parent=11 // pred_check_branch
          %366 = sbr.rel (%p364) target = $region40
        $region39: #{transformer_forward.1} parent=11 // pred_region
          _
        $region40: #{transformer_forward.1} parent=11 // pred_fallthru
          _
        // Predicated region
        $region41: #{transformer_forward.1} parent=11 // pred_check
          %p367 = pneg %p242
        $region42: #{transformer_forward.1} parent=11 // pred_check_branch
          %369 = sbr.rel (%p367) target = $region44
        $region43: #{transformer_forward.1} parent=11 // pred_region
          _
        $region44: #{transformer_forward.1} parent=11 // pred_fallthru
          _
        // Predicated region
        $region45: #{transformer_forward.1} parent=11 // pred_check
          %p370 = pneg %p263
        $region46: #{transformer_forward.1} parent=11 // pred_check_branch
          %372 = sbr.rel (%p370) target = $region48
        $region47: #{transformer_forward.1} parent=11 // pred_region
          _
        $region48: #{transformer_forward.1} parent=11 // pred_fallthru
          _
        // Predicated region
        $region49: #{transformer_forward.1} parent=11 // pred_check
          %p373 = pneg %p284
        $region50: #{transformer_forward.1} parent=11 // pred_check_branch
          %375 = sbr.rel (%p373) target = $region52
        $region51: #{transformer_forward.1} parent=11 // pred_region
          _
        $region52: #{transformer_forward.1} parent=11 // pred_fallthru
          _
        // Predicated region
        $region53: #{transformer_forward.1} parent=11 // pred_check
          %p376 = pneg %p305
        $region54: #{transformer_forward.1} parent=11 // pred_check_branch
          %378 = sbr.rel (%p376) target = $region56
        $region55: #{transformer_forward.1} parent=11 // pred_region
          _
        $region56: #{transformer_forward.1} parent=11 // pred_fallthru
          _
      $region12: #{transformer_forward.1} parent=5 // pred_fallthru
        _
      %p379 = scmp.lt.s32.totalorder %s22, 2
      // Predicated region
      $region57: #{transformer_forward.1} parent=5 // pred_check
        %p380 = pneg %p379
      $region58: #{transformer_forward.1} parent=5 // pred_check_branch
        %382 = sbr.rel (%p380) target = $region60
      $region59: #{transformer_forward.1} parent=5 // pred_region
        // Predicated region
        $region61: #{transformer_forward.1} parent=59 // pred_check
          %p383 = pneg %p42
        $region62: #{transformer_forward.1} parent=59 // pred_check_branch
          %385 = sbr.rel (%p383) target = $region64
        $region63: #{transformer_forward.1} parent=59 // pred_region
          %p386 = scmp.lt.s32.totalorder %s22, 1
          %s387 = scalar_select %p386, %s22, 1
          %s388 = smul.addr %s387, 8
          %s389 = scalar_lea.vmem %s0, %s388
        $region64: #{transformer_forward.1} parent=59 // pred_fallthru
          _
        // Predicated region
        $region65: #{transformer_forward.1} parent=59 // pred_check
          %p390 = pneg %p68
        $region66: #{transformer_forward.1} parent=59 // pred_check_branch
          %392 = sbr.rel (%p390) target = $region68
        $region67: #{transformer_forward.1} parent=59 // pred_region
          %p393 = scmp.lt.s32.totalorder %s22, 1
          %s394 = scalar_select %p393, %s22, 1
          %s395 = smul.addr %s394, 8
          %s396 = scalar_lea.vmem %s1, %s395
        $region68: #{transformer_forward.1} parent=59 // pred_fallthru
          _
      $region60: #{transformer_forward.1} parent=5 // pred_fallthru
        _
      %p397 = scmp.le.s32.totalorder 1, %s22
      %p398 = scmp.lt.s32.totalorder %s22, 3
      %p399 = pnand %p397, %p398
      %p400 = pneg %p399
      // Predicated region
      $region69: #{transformer_forward.1} parent=5 // pred_check
        _
      $region70: #{transformer_forward.1} parent=5 // pred_check_branch
        %402 = sbr.rel (%p399) target = $region72
      $region71: #{transformer_forward.1} parent=5 // pred_region
        %s403 = ssub.s32 %s22, 1
        %p404 = scmp.lt.s32.totalorder %s27, 1
        %s405 = scalar_select %p404, %s27, 1
        %s406 = smul.addr %s405, 8
        %s407 = scalar_lea.vmem %s0, %s406
        %p408 = pneg %p48
        %p409 = pneg %p45
        %p410 = scmp.lt.s32.totalorder %s27, 1
        %s411 = scalar_select %p410, %s27, 1
        %s412 = smul.addr %s411, 8
        %s413 = scalar_lea.vmem %s1, %s412
        %p414 = pneg %p74
        %p415 = pneg %p71
        %p416 = pneg %p95
        %p417 = pneg %p92
        %p418 = pneg %p116
        %p419 = pneg %p113
        %p420 = pneg %p137
        %p421 = pneg %p134
        %p422 = pneg %p158
        %p423 = pneg %p155
        %p424 = pneg %p179
        %p425 = pneg %p176
        %p426 = pneg %p200
        %p427 = pneg %p197
        %p428 = pneg %p221
        %p429 = pneg %p218
        %p430 = pneg %p242
        %p431 = pneg %p239
        %p432 = pneg %p263
        %p433 = pneg %p260
        %p434 = pneg %p284
        %p435 = pneg %p281
        %p436 = pneg %p305
        %p437 = pneg %p302
        %p438 = pneg %p331
        %p439 = pneg %p328
        %s440 = sand.u32 %s318, 1
        %s441 = scalar_lea.sflag [#allocation3], %s440
        %s442 = sand.u32 %s318, 1
        %s443 = smul.addr %s442, 8
        %s444 = scalar_lea.vmem [#allocation2], %s443
        %p445 = scmp.lt.s32.totalorder %s27, 1
        %s446 = scalar_select %p445, %s27, 1
        %s447 = smul.addr %s446, 8
        %s448 = scalar_lea.vmem %s0, %s447
        %p449 = scmp.lt.s32.totalorder %s27, 1
        %s450 = scalar_select %p449, %s27, 1
        %s451 = smul.addr %s450, 8
        %s452 = scalar_lea.vmem %s1, %s451
        %v453 = vld [vmem:[%s448] sm:$0xff]
        %v454 = vld [vmem:[%s2] sm:$0xff]
        %v455 = vld [vmem:[%s2 + $0x8] sm:$0xff]
        %v456 = vld [vmem:[%s2 + $0x10] sm:$0xff]
        %v457 = vld [vmem:[%s2 + $0x18] sm:$0xff]
        %v458 = vld [vmem:[%s3] sm:$0x1]
        %v459 = vld [vmem:[%s4] sm:$0xff]
        %v460 = vld [vmem:[%s4 + $0x8] sm:$0xff]
        %v461 = vld [vmem:[%s4 + $0x10] sm:$0xff]
        %v462 = vld [vmem:[%s4 + $0x18] sm:$0xff]
        %v463 = vld [vmem:[%s10] sm:$0x1]
        %v465 = vperm.slane %v458, 0
        %vm467 = vcmask 261120
        %v469 = vsel %vm467, %v453, 0
        %471 = vmatpush.msra.mxu0 0.0
        %472 = vmatpush.msra.mxu0 0.0
        %473 = vmatpush.msra.mxu0 0.0
        %474 = vmatpush.msra.mxu0 0.0
        %475 = vmatpush.msra.mxu0 0.0
        %476 = vmatpush.msra.mxu0 0.0
        %477 = vmatpush.msra.mxu0 0.0
        %478 = vmatpush.msra.mxu0 0.0
        %479 = vmatpush.msra.mxu0 0.0
        %480 = vmatpush.msra.mxu0 0.0
        %481 = vmatpush.msra.mxu0 0.0
        %482 = vmatpush.msra.mxu0 0.0
        %483 = vmatpush.msra.mxu0 %v457
        %484 = vmatpush.msra.mxu0 %v456
        %485 = vmatpush.msra.mxu0 %v455
        %486 = vmatpush.msra.mxu0 %v454
        %487 = vmatmul.f32.gmra.mxu0 %v469
        %v488 = vpop.f32.mrf.mxu0
        %v489 = vadd.f32 %v465, %v488
        %490 = vdwg.mxu0
        %v491 = vmul.f32 %v489, 0.35355338
        %493 = vrot.lane.b32.xlu0 %v489, 96
        %v494 = vpop.permute.xlu0 %493
        %vm495 = vcmask 64512
        %v497 = vsel %vm495, %v491, 0
        %v499 = vsel %vm495, %v494, 0
        %501 = vmatpush.xpose.msra.mxu0 0.0
        %502 = vmatpush.xpose.msra.mxu0 0.0
        %503 = vmatpush.xpose.msra.mxu0 0.0
        %504 = vmatpush.xpose.msra.mxu0 0.0
        %505 = vmatpush.xpose.msra.mxu0 0.0
        %506 = vmatpush.xpose.msra.mxu0 0.0
        %507 = vmatpush.xpose.msra.mxu0 0.0
        %508 = vmatpush.xpose.msra.mxu0 0.0
        %509 = vmatpush.xpose.msra.mxu0 0.0
        %510 = vmatpush.xpose.msra.mxu0 0.0
        %511 = vmatpush.xpose.msra.mxu0 0.0
        %512 = vmatpush.xpose.msra.mxu0 0.0
        %513 = vmatpush.xpose.msra.mxu0 0.0
        %514 = vmatpush.xpose.msra.mxu0 0.0
        %515 = vmatpush.xpose.msra.mxu0 0.0
        %516 = vmatpush.xpose.msra.mxu0 %v499
        %517 = vmatmul.f32.gmra.mxu0 %v497
        %v518 = vpop.f32.mrf.mxu0
        %v519 = vadd.f32 0.0, %v518
        %520 = vdwg.mxu0
        %v521 = vsel %vm495, %v519, -inf
        %522 = vmax.xlane.f32.xlu0 %v521
        %v523 = vpop.xlane.xlu0 %522
        %v524 = vsub.f32 %v519, %v523
        %v525 = vmul.f32 %v524, 1.442695
        %v526 = vpow.pop %v525
        %v527 = vsel %vm495, %v526, 0.0
        %528 = vadd.xlane.f32.xlu0 %v527
        %v529 = vpop.xlane.xlu0 %528
        %v530 = vrcp.pop %v529
        %v531 = vmul.f32 %v526, %v530
        %532 = vrot.lane.b32.xlu0 %v489, 64
        %v533 = vpop.permute.xlu0 %532
        %v536 = vsel %vm495, %v531, 0
        %538 = vmatpush.msra.mxu0 0.0
        %539 = vmatpush.msra.mxu0 0.0
        %540 = vmatpush.msra.mxu0 0.0
        %541 = vmatpush.msra.mxu0 0.0
        %542 = vmatpush.msra.mxu0 0.0
        %543 = vmatpush.msra.mxu0 0.0
        %544 = vmatpush.msra.mxu0 0.0
        %545 = vmatpush.msra.mxu0 0.0
        %546 = vmatpush.msra.mxu0 0.0
        %547 = vmatpush.msra.mxu0 0.0
        %548 = vmatpush.msra.mxu0 0.0
        %549 = vmatpush.msra.mxu0 0.0
        %550 = vmatpush.msra.mxu0 0.0
        %551 = vmatpush.msra.mxu0 0.0
        %552 = vmatpush.msra.mxu0 0.0
        %553 = vmatpush.msra.mxu0 %v533
        %554 = vmatmul.f32.gmra.mxu0 %v536
        %v555 = vpop.f32.mrf.mxu0
        %v556 = vadd.f32 0.0, %v555
        %557 = vdwg.mxu0
        %558 = vrot.lane.b32.xlu0 %v491, 120
        %v559 = vpop.permute.xlu0 %558
        %560 = vrot.lane.b32.xlu0 %v489, 88
        %v561 = vpop.permute.xlu0 %560
        %v562 = vsel %vm495, %v559, 0
        %v564 = vsel %vm495, %v561, 0
        %566 = vmatpush.xpose.msra.mxu0 0.0
        %567 = vmatpush.xpose.msra.mxu0 0.0
        %568 = vmatpush.xpose.msra.mxu0 0.0
        %569 = vmatpush.xpose.msra.mxu0 0.0
        %570 = vmatpush.xpose.msra.mxu0 0.0
        %571 = vmatpush.xpose.msra.mxu0 0.0
        %572 = vmatpush.xpose.msra.mxu0 0.0
        %573 = vmatpush.xpose.msra.mxu0 0.0
        %574 = vmatpush.xpose.msra.mxu0 0.0
        %575 = vmatpush.xpose.msra.mxu0 0.0
        %576 = vmatpush.xpose.msra.mxu0 0.0
        %577 = vmatpush.xpose.msra.mxu0 0.0
        %578 = vmatpush.xpose.msra.mxu0 0.0
        %579 = vmatpush.xpose.msra.mxu0 0.0
        %580 = vmatpush.xpose.msra.mxu0 0.0
        %581 = vmatpush.xpose.msra.mxu0 %v564
        %582 = vmatmul.f32.gmra.mxu0 %v562
        %v583 = vpop.f32.mrf.mxu0
        %v584 = vadd.f32 0.0, %v583
        %585 = vdwg.mxu0
        %v586 = vsel %vm495, %v584, -inf
        %587 = vmax.xlane.f32.xlu0 %v586
        %v588 = vpop.xlane.xlu0 %587
        %v589 = vsub.f32 %v584, %v588
        %v590 = vmul.f32 %v589, 1.442695
        %v591 = vpow.pop %v590
        %v592 = vsel %vm495, %v591, 0.0
        %593 = vadd.xlane.f32.xlu0 %v592
        %v594 = vpop.xlane.xlu0 %593
        %v595 = vrcp.pop %v594
        %v596 = vmul.f32 %v591, %v595
        %597 = vrot.lane.b32.xlu0 %v489, 56
        %v598 = vpop.permute.xlu0 %597
        %v601 = vsel %vm495, %v596, 0
        %603 = vmatpush.msra.mxu0 0.0
        %604 = vmatpush.msra.mxu0 0.0
        %605 = vmatpush.msra.mxu0 0.0
        %606 = vmatpush.msra.mxu0 0.0
        %607 = vmatpush.msra.mxu0 0.0
        %608 = vmatpush.msra.mxu0 0.0
        %609 = vmatpush.msra.mxu0 0.0
        %610 = vmatpush.msra.mxu0 0.0
        %611 = vmatpush.msra.mxu0 0.0
        %612 = vmatpush.msra.mxu0 0.0
        %613 = vmatpush.msra.mxu0 0.0
        %614 = vmatpush.msra.mxu0 0.0
        %615 = vmatpush.msra.mxu0 0.0
        %616 = vmatpush.msra.mxu0 0.0
        %617 = vmatpush.msra.mxu0 0.0
        %618 = vmatpush.msra.mxu0 %v598
        %619 = vmatmul.f32.gmra.mxu0 %v601
        %v620 = vpop.f32.mrf.mxu0
        %v621 = vadd.f32 0.0, %v620
        %622 = vdwg.mxu0
        %v624 = vsel %vm495, %v621, 0
        %626 = vmatpush.msra.mxu0 0.0
        %627 = vmatpush.msra.mxu0 0.0
        %628 = vmatpush.msra.mxu0 0.0
        %629 = vmatpush.msra.mxu0 0.0
        %630 = vmatpush.msra.mxu0 0.0
        %631 = vmatpush.msra.mxu0 0.0
        %632 = vmatpush.msra.mxu0 0.0
        %633 = vmatpush.msra.mxu0 0.0
        %634 = vmatpush.msra.mxu0 0.0
        %635 = vmatpush.msra.mxu0 0.0
        %636 = vmatpush.msra.mxu0 0.0
        %637 = vmatpush.msra.mxu0 0.0
        %638 = vmatpush.msra.mxu0 0.0
        %639 = vmatpush.msra.mxu0 0.0
        %640 = vmatpush.msra.mxu0 0.0
        %641 = vmatpush.msra.mxu0 %v460
        %642 = vmatmul.f32.gmra.mxu0 %v624
        %v643 = vpop.f32.mrf.mxu0
        %v644 = vadd.f32 0.0, %v643
        %645 = vdwg.mxu0
        %v647 = vsel %vm495, %v556, 0
        %649 = vmatpush.msra.mxu0 0.0
        %650 = vmatpush.msra.mxu0 0.0
        %651 = vmatpush.msra.mxu0 0.0
        %652 = vmatpush.msra.mxu0 0.0
        %653 = vmatpush.msra.mxu0 0.0
        %654 = vmatpush.msra.mxu0 0.0
        %655 = vmatpush.msra.mxu0 0.0
        %656 = vmatpush.msra.mxu0 0.0
        %657 = vmatpush.msra.mxu0 0.0
        %658 = vmatpush.msra.mxu0 0.0
        %659 = vmatpush.msra.mxu0 0.0
        %660 = vmatpush.msra.mxu0 0.0
        %661 = vmatpush.msra.mxu0 0.0
        %662 = vmatpush.msra.mxu0 0.0
        %663 = vmatpush.msra.mxu0 0.0
        %664 = vmatpush.msra.mxu0 %v459
        %665 = vmatmul.f32.gmra.mxu0 %v647
        %v666 = vpop.f32.mrf.mxu0
        %v667 = vadd.f32 %v644, %v666
        %668 = vdwg.mxu0
        %669 = vrot.lane.b32.xlu0 %v491, 112
        %v670 = vpop.permute.xlu0 %669
        %671 = vrot.lane.b32.xlu0 %v489, 80
        %v672 = vpop.permute.xlu0 %671
        %v673 = vsel %vm495, %v670, 0
        %v675 = vsel %vm495, %v672, 0
        %677 = vmatpush.xpose.msra.mxu0 0.0
        %678 = vmatpush.xpose.msra.mxu0 0.0
        %679 = vmatpush.xpose.msra.mxu0 0.0
        %680 = vmatpush.xpose.msra.mxu0 0.0
        %681 = vmatpush.xpose.msra.mxu0 0.0
        %682 = vmatpush.xpose.msra.mxu0 0.0
        %683 = vmatpush.xpose.msra.mxu0 0.0
        %684 = vmatpush.xpose.msra.mxu0 0.0
        %685 = vmatpush.xpose.msra.mxu0 0.0
        %686 = vmatpush.xpose.msra.mxu0 0.0
        %687 = vmatpush.xpose.msra.mxu0 0.0
        %688 = vmatpush.xpose.msra.mxu0 0.0
        %689 = vmatpush.xpose.msra.mxu0 0.0
        %690 = vmatpush.xpose.msra.mxu0 0.0
        %691 = vmatpush.xpose.msra.mxu0 0.0
        %692 = vmatpush.xpose.msra.mxu0 %v675
        %693 = vmatmul.f32.gmra.mxu0 %v673
        %v694 = vpop.f32.mrf.mxu0
        %v695 = vadd.f32 0.0, %v694
        %696 = vdwg.mxu0
        %v697 = vsel %vm495, %v695, -inf
        %698 = vmax.xlane.f32.xlu0 %v697
        %v699 = vpop.xlane.xlu0 %698
        %v700 = vsub.f32 %v695, %v699
        %v701 = vmul.f32 %v700, 1.442695
        %v702 = vpow.pop %v701
        %v703 = vsel %vm495, %v702, 0.0
        %704 = vadd.xlane.f32.xlu0 %v703
        %v705 = vpop.xlane.xlu0 %704
        %v706 = vrcp.pop %v705
        %v707 = vmul.f32 %v702, %v706
        %708 = vrot.lane.b32.xlu0 %v489, 48
        %v709 = vpop.permute.xlu0 %708
        %v712 = vsel %vm495, %v707, 0
        %714 = vmatpush.msra.mxu0 0.0
        %715 = vmatpush.msra.mxu0 0.0
        %716 = vmatpush.msra.mxu0 0.0
        %717 = vmatpush.msra.mxu0 0.0
        %718 = vmatpush.msra.mxu0 0.0
        %719 = vmatpush.msra.mxu0 0.0
        %720 = vmatpush.msra.mxu0 0.0
        %721 = vmatpush.msra.mxu0 0.0
        %722 = vmatpush.msra.mxu0 0.0
        %723 = vmatpush.msra.mxu0 0.0
        %724 = vmatpush.msra.mxu0 0.0
        %725 = vmatpush.msra.mxu0 0.0
        %726 = vmatpush.msra.mxu0 0.0
        %727 = vmatpush.msra.mxu0 0.0
        %728 = vmatpush.msra.mxu0 0.0
        %729 = vmatpush.msra.mxu0 %v709
        %730 = vmatmul.f32.gmra.mxu0 %v712
        %v731 = vpop.f32.mrf.mxu0
        %v732 = vadd.f32 0.0, %v731
        %733 = vdwg.mxu0
        %v735 = vsel %vm495, %v732, 0
        %737 = vmatpush.msra.mxu0 0.0
        %738 = vmatpush.msra.mxu0 0.0
        %739 = vmatpush.msra.mxu0 0.0
        %740 = vmatpush.msra.mxu0 0.0
        %741 = vmatpush.msra.mxu0 0.0
        %742 = vmatpush.msra.mxu0 0.0
        %743 = vmatpush.msra.mxu0 0.0
        %744 = vmatpush.msra.mxu0 0.0
        %745 = vmatpush.msra.mxu0 0.0
        %746 = vmatpush.msra.mxu0 0.0
        %747 = vmatpush.msra.mxu0 0.0
        %748 = vmatpush.msra.mxu0 0.0
        %749 = vmatpush.msra.mxu0 0.0
        %750 = vmatpush.msra.mxu0 0.0
        %751 = vmatpush.msra.mxu0 0.0
        %752 = vmatpush.msra.mxu0 %v461
        %753 = vmatmul.f32.gmra.mxu0 %v735
        %v754 = vpop.f32.mrf.mxu0
        %v755 = vadd.f32 0.0, %v754
        %756 = vdwg.mxu0
        %v757 = vadd.f32 %v667, %v755
        %758 = vrot.lane.b32.xlu0 %v491, 104
        %v759 = vpop.permute.xlu0 %758
        %760 = vrot.lane.b32.xlu0 %v489, 72
        %v761 = vpop.permute.xlu0 %760
        %v762 = vsel %vm495, %v759, 0
        %v764 = vsel %vm495, %v761, 0
        %766 = vmatpush.xpose.msra.mxu0 0.0
        %767 = vmatpush.xpose.msra.mxu0 0.0
        %768 = vmatpush.xpose.msra.mxu0 0.0
        %769 = vmatpush.xpose.msra.mxu0 0.0
        %770 = vmatpush.xpose.msra.mxu0 0.0
        %771 = vmatpush.xpose.msra.mxu0 0.0
        %772 = vmatpush.xpose.msra.mxu0 0.0
        %773 = vmatpush.xpose.msra.mxu0 0.0
        %774 = vmatpush.xpose.msra.mxu0 0.0
        %775 = vmatpush.xpose.msra.mxu0 0.0
        %776 = vmatpush.xpose.msra.mxu0 0.0
        %777 = vmatpush.xpose.msra.mxu0 0.0
        %778 = vmatpush.xpose.msra.mxu0 0.0
        %779 = vmatpush.xpose.msra.mxu0 0.0
        %780 = vmatpush.xpose.msra.mxu0 0.0
        %781 = vmatpush.xpose.msra.mxu0 %v764
        %782 = vmatmul.f32.gmra.mxu0 %v762
        %v783 = vpop.f32.mrf.mxu0
        %v784 = vadd.f32 0.0, %v783
        %785 = vdwg.mxu0
        %v786 = vsel %vm495, %v784, -inf
        %787 = vmax.xlane.f32.xlu0 %v786
        %v788 = vpop.xlane.xlu0 %787
        %v789 = vsub.f32 %v784, %v788
        %v790 = vmul.f32 %v789, 1.442695
        %v791 = vpow.pop %v790
        %v792 = vsel %vm495, %v791, 0.0
        %793 = vadd.xlane.f32.xlu0 %v792
        %v794 = vpop.xlane.xlu0 %793
        %v795 = vrcp.pop %v794
        %v796 = vmul.f32 %v791, %v795
        %797 = vrot.lane.b32.xlu0 %v489, 40
        %v798 = vpop.permute.xlu0 %797
        %v801 = vsel %vm495, %v796, 0
        %803 = vmatpush.msra.mxu0 0.0
        %804 = vmatpush.msra.mxu0 0.0
        %805 = vmatpush.msra.mxu0 0.0
        %806 = vmatpush.msra.mxu0 0.0
        %807 = vmatpush.msra.mxu0 0.0
        %808 = vmatpush.msra.mxu0 0.0
        %809 = vmatpush.msra.mxu0 0.0
        %810 = vmatpush.msra.mxu0 0.0
        %811 = vmatpush.msra.mxu0 0.0
        %812 = vmatpush.msra.mxu0 0.0
        %813 = vmatpush.msra.mxu0 0.0
        %814 = vmatpush.msra.mxu0 0.0
        %815 = vmatpush.msra.mxu0 0.0
        %816 = vmatpush.msra.mxu0 0.0
        %817 = vmatpush.msra.mxu0 0.0
        %818 = vmatpush.msra.mxu0 %v798
        %819 = vmatmul.f32.gmra.mxu0 %v801
        %v820 = vpop.f32.mrf.mxu0
        %v821 = vadd.f32 0.0, %v820
        %822 = vdwg.mxu0
        %v824 = vsel %vm495, %v821, 0
        %826 = vmatpush.msra.mxu0 0.0
        %827 = vmatpush.msra.mxu0 0.0
        %828 = vmatpush.msra.mxu0 0.0
        %829 = vmatpush.msra.mxu0 0.0
        %830 = vmatpush.msra.mxu0 0.0
        %831 = vmatpush.msra.mxu0 0.0
        %832 = vmatpush.msra.mxu0 0.0
        %833 = vmatpush.msra.mxu0 0.0
        %834 = vmatpush.msra.mxu0 0.0
        %835 = vmatpush.msra.mxu0 0.0
        %836 = vmatpush.msra.mxu0 0.0
        %837 = vmatpush.msra.mxu0 0.0
        %838 = vmatpush.msra.mxu0 0.0
        %839 = vmatpush.msra.mxu0 0.0
        %840 = vmatpush.msra.mxu0 0.0
        %841 = vmatpush.msra.mxu0 %v462
        %842 = vmatmul.f32.gmra.mxu0 %v824
        %v843 = vpop.f32.mrf.mxu0
        %v844 = vadd.f32 0.0, %v843
        %845 = vdwg.mxu0
        %v846 = vadd.f32 %v757, %v844
        %v848 = vperm.slane %v463, 0
        %v850 = vadd.f32 %v846, %v848
        %s851 = scalar_lea.vmem %s10, 4
        %v852 = vld [vmem:[%s851] sm:$0x1]
        %s853 = scalar_lea.vmem %s10, 6
        %v854 = vld [vmem:[%s853] sm:$0x1]
        %v855 = vadd.f32 %v453, %v850
        %v856 = vsel %vm467, %v855, 0.0
        %857 = vadd.xlane.f32.xlu0 %v856
        %v858 = vpop.xlane.xlu0 %857
        %v859 = vrcp.pop 32.0
        %v860 = vmul.f32 32.0, %v859
        %v861 = vsub.f32 1.0, %v860
        %v862 = vmul.f32 %v859, %v861
        %v863 = vadd.f32 %v859, %v862
        %vm864 = vweird.f32 %v859
        %v865 = vsel %vm864, %v859, %v863
        %v866 = vmul.f32 %v858, %v865
        %v867 = vsub.f32 %v855, %v866
        %v868 = vmul.f32 %v867, %v867
        %v869 = vsel %vm467, %v868, 0.0
        %870 = vadd.xlane.f32.xlu0 %v869
        %v871 = vpop.xlane.xlu0 %870
        %v872 = vmul.f32 %v871, %v865
        %v873 = vadd.f32 %v872, 1e-05
        %v874 = vrsqrt.pop %v873
        %v875 = vmul.f32 %v874, %v873
        %v876 = vmul.f32 %v875, %v874
        %v877 = vmul.f32 0.5, %v876
        %v878 = vsub.f32 1.5, %v877
        %v879 = vmul.f32 %v874, %v878
        %vm880 = vweird.f32 %v873
        %vm881 = vweird.f32 %v874
        %vm882 = vmor %vm880, %vm881
        %v883 = vsel %vm882, %v874, %v879
        %v884 = vmul.f32 %v867, %v883
        %v886 = vperm.slane %v852, 0
        %v888 = vmul.f32 %v884, %v886
        %v890 = vperm.slane %v854, 0
        %v892 = vadd.f32 %v888, %v890
        %v893 = vld [vmem:[%s7] sm:$0xff]
        %v894 = vld [vmem:[%s7 + $0x8] sm:$0xff]
        %v895 = vld [vmem:[%s7 + $0x10] sm:$0xff]
        %v896 = vld [vmem:[%s7 + $0x18] sm:$0xff]
        %v897 = vld [vmem:[%s8] sm:$0x1]
        %v898 = vld [vmem:[%s9] sm:$0xff]
        %v899 = vld [vmem:[%s9 + $0x8] sm:$0xff]
        %v900 = vld [vmem:[%s9 + $0x10] sm:$0xff]
        %v901 = vld [vmem:[%s9 + $0x18] sm:$0xff]
        %v902 = vld [vmem:[%s9 + $0x20] sm:$0xff]
        %v903 = vld [vmem:[%s9 + $0x28] sm:$0xff]
        %v904 = vld [vmem:[%s9 + $0x30] sm:$0xff]
        %v905 = vld [vmem:[%s9 + $0x38] sm:$0xff]
        %s906 = scalar_lea.vmem %s10, 2
        %v907 = vld [vmem:[%s906] sm:$0x1]
        %v909 = vperm.slane %v897, 0
        %v912 = vsel %vm467, %v892, 0
        %914 = vmatpush.msra.mxu0 0.0
        %915 = vmatpush.msra.mxu0 0.0
        %916 = vmatpush.msra.mxu0 0.0
        %917 = vmatpush.msra.mxu0 0.0
        %918 = vmatpush.msra.mxu0 0.0
        %919 = vmatpush.msra.mxu0 0.0
        %920 = vmatpush.msra.mxu0 0.0
        %921 = vmatpush.msra.mxu0 0.0
        %922 = vmatpush.msra.mxu0 0.0
        %923 = vmatpush.msra.mxu0 0.0
        %924 = vmatpush.msra.mxu0 0.0
        %925 = vmatpush.msra.mxu0 0.0
        %926 = vmatpush.msra.mxu0 %v896
        %927 = vmatpush.msra.mxu0 %v895
        %928 = vmatpush.msra.mxu0 %v894
        %929 = vmatpush.msra.mxu0 %v893
        %930 = vmatmul.f32.gmra.mxu0 %v912
        %v931 = vpop.f32.mrf.mxu0
        %v932 = vadd.f32 %v909, %v931
        %933 = vdwg.mxu0
        %v934 = vmax.f32 %v932, 0.0
        %v936 = vperm.slane %v907, 0
        %vm938 = vcmask 523264
        %v940 = vsel %vm938, %v934, 0
        %942 = vmatpush.msra.mxu0 0.0
        %943 = vmatpush.msra.mxu0 0.0
        %944 = vmatpush.msra.mxu0 0.0
        %945 = vmatpush.msra.mxu0 0.0
        %946 = vmatpush.msra.mxu0 0.0
        %947 = vmatpush.msra.mxu0 0.0
        %948 = vmatpush.msra.mxu0 0.0
        %949 = vmatpush.msra.mxu0 0.0
        %950 = vmatpush.msra.mxu0 %v905
        %951 = vmatpush.msra.mxu0 %v904
        %952 = vmatpush.msra.mxu0 %v903
        %953 = vmatpush.msra.mxu0 %v902
        %954 = vmatpush.msra.mxu0 %v901
        %955 = vmatpush.msra.mxu0 %v900
        %956 = vmatpush.msra.mxu0 %v899
        %957 = vmatpush.msra.mxu0 %v898
        %958 = vmatmul.f32.gmra.mxu0 %v940
        %v959 = vpop.f32.mrf.mxu0
        %v960 = vadd.f32 %v936, %v959
        %961 = vdwg.mxu0
        %s962 = scalar_lea.vmem %s10, 8
        %v963 = vld [vmem:[%s962] sm:$0x1]
        %s964 = scalar_lea.vmem %s10, 10
        %v965 = vld [vmem:[%s964] sm:$0x1]
        %v966 = vadd.f32 %v892, %v960
        %v967 = vsel %vm467, %v966, 0.0
        %968 = vadd.xlane.f32.xlu0 %v967
        %v969 = vpop.xlane.xlu0 %968
        %v970 = vmul.f32 %v969, %v865
        %v971 = vsub.f32 %v966, %v970
        %v972 = vmul.f32 %v971, %v971
        %v973 = vsel %vm467, %v972, 0.0
        %974 = vadd.xlane.f32.xlu0 %v973
        %v975 = vpop.xlane.xlu0 %974
        %v976 = vmul.f32 %v975, %v865
        %v977 = vadd.f32 %v976, 1e-05
        %v978 = vrsqrt.pop %v977
        %v979 = vmul.f32 %v978, %v977
        %v980 = vmul.f32 %v979, %v978
        %v981 = vmul.f32 0.5, %v980
        %v982 = vsub.f32 1.5, %v981
        %v983 = vmul.f32 %v978, %v982
        %vm984 = vweird.f32 %v977
        %vm985 = vweird.f32 %v978
        %vm986 = vmor %vm984, %vm985
        %v987 = vsel %vm986, %v978, %v983
        %v988 = vmul.f32 %v971, %v987
        %v990 = vperm.slane %v963, 0
        %v992 = vmul.f32 %v988, %v990
        %v994 = vperm.slane %v965, 0
        %v996 = vadd.f32 %v992, %v994
        %s997 = scalar_lea.vmem %s2, 32
        %v998 = vld [vmem:[%s997] sm:$0xff]
        %v999 = vld [vmem:[%s997 + $0x8] sm:$0xff]
        %v1000 = vld [vmem:[%s997 + $0x10] sm:$0xff]
        %v1001 = vld [vmem:[%s997 + $0x18] sm:$0xff]
        %s1002 = scalar_lea.vmem %s3, 1
        %v1003 = vld [vmem:[%s1002] sm:$0x1]
        %s1004 = scalar_lea.vmem %s4, 32
        %v1005 = vld [vmem:[%s1004] sm:$0xff]
        %v1006 = vld [vmem:[%s1004 + $0x8] sm:$0xff]
        %v1007 = vld [vmem:[%s1004 + $0x10] sm:$0xff]
        %v1008 = vld [vmem:[%s1004 + $0x18] sm:$0xff]
        %s1009 = scalar_lea.vmem %s10, 1
        %v1010 = vld [vmem:[%s1009] sm:$0x1]
        %v1012 = vperm.slane %v1003, 0
        %v1015 = vsel %vm467, %v996, 0
        %1017 = vmatpush.msra.mxu0 0.0
        %1018 = vmatpush.msra.mxu0 0.0
        %1019 = vmatpush.msra.mxu0 0.0
        %1020 = vmatpush.msra.mxu0 0.0
        %1021 = vmatpush.msra.mxu0 0.0
        %1022 = vmatpush.msra.mxu0 0.0
        %1023 = vmatpush.msra.mxu0 0.0
        %1024 = vmatpush.msra.mxu0 0.0
        %1025 = vmatpush.msra.mxu0 0.0
        %1026 = vmatpush.msra.mxu0 0.0
        %1027 = vmatpush.msra.mxu0 0.0
        %1028 = vmatpush.msra.mxu0 0.0
        %1029 = vmatpush.msra.mxu0 %v1001
        %1030 = vmatpush.msra.mxu0 %v1000
        %1031 = vmatpush.msra.mxu0 %v999
        %1032 = vmatpush.msra.mxu0 %v998
        %1033 = vmatmul.f32.gmra.mxu0 %v1015
        %v1034 = vpop.f32.mrf.mxu0
        %v1035 = vadd.f32 %v1012, %v1034
        %1036 = vdwg.mxu0
        %v1037 = vmul.f32 %v1035, 0.35355338
        %1039 = vrot.lane.b32.xlu0 %v1035, 96
        %v1040 = vpop.permute.xlu0 %1039
        %v1042 = vsel %vm495, %v1037, 0
        %v1044 = vsel %vm495, %v1040, 0
        %1046 = vmatpush.xpose.msra.mxu0 0.0
        %1047 = vmatpush.xpose.msra.mxu0 0.0
        %1048 = vmatpush.xpose.msra.mxu0 0.0
        %1049 = vmatpush.xpose.msra.mxu0 0.0
        %1050 = vmatpush.xpose.msra.mxu0 0.0
        %1051 = vmatpush.xpose.msra.mxu0 0.0
        %1052 = vmatpush.xpose.msra.mxu0 0.0
        %1053 = vmatpush.xpose.msra.mxu0 0.0
        %1054 = vmatpush.xpose.msra.mxu0 0.0
        %1055 = vmatpush.xpose.msra.mxu0 0.0
        %1056 = vmatpush.xpose.msra.mxu0 0.0
        %1057 = vmatpush.xpose.msra.mxu0 0.0
        %1058 = vmatpush.xpose.msra.mxu0 0.0
        %1059 = vmatpush.xpose.msra.mxu0 0.0
        %1060 = vmatpush.xpose.msra.mxu0 0.0
        %1061 = vmatpush.xpose.msra.mxu0 %v1044
        %1062 = vmatmul.f32.gmra.mxu0 %v1042
        %v1063 = vpop.f32.mrf.mxu0
        %v1064 = vadd.f32 0.0, %v1063
        %1065 = vdwg.mxu0
        %v1066 = vsel %vm495, %v1064, -inf
        %1067 = vmax.xlane.f32.xlu0 %v1066
        %v1068 = vpop.xlane.xlu0 %1067
        %v1069 = vsub.f32 %v1064, %v1068
        %v1070 = vmul.f32 %v1069, 1.442695
        %v1071 = vpow.pop %v1070
        %v1072 = vsel %vm495, %v1071, 0.0
        %1073 = vadd.xlane.f32.xlu0 %v1072
        %v1074 = vpop.xlane.xlu0 %1073
        %v1075 = vrcp.pop %v1074
        %v1076 = vmul.f32 %v1071, %v1075
        %1077 = vrot.lane.b32.xlu0 %v1035, 64
        %v1078 = vpop.permute.xlu0 %1077
        %v1081 = vsel %vm495, %v1076, 0
        %1083 = vmatpush.msra.mxu0 0.0
        %1084 = vmatpush.msra.mxu0 0.0
        %1085 = vmatpush.msra.mxu0 0.0
        %1086 = vmatpush.msra.mxu0 0.0
        %1087 = vmatpush.msra.mxu0 0.0
        %1088 = vmatpush.msra.mxu0 0.0
        %1089 = vmatpush.msra.mxu0 0.0
        %1090 = vmatpush.msra.mxu0 0.0
        %1091 = vmatpush.msra.mxu0 0.0
        %1092 = vmatpush.msra.mxu0 0.0
        %1093 = vmatpush.msra.mxu0 0.0
        %1094 = vmatpush.msra.mxu0 0.0
        %1095 = vmatpush.msra.mxu0 0.0
        %1096 = vmatpush.msra.mxu0 0.0
        %1097 = vmatpush.msra.mxu0 0.0
        %1098 = vmatpush.msra.mxu0 %v1078
        %1099 = vmatmul.f32.gmra.mxu0 %v1081
        %v1100 = vpop.f32.mrf.mxu0
        %v1101 = vadd.f32 0.0, %v1100
        %1102 = vdwg.mxu0
        %1103 = vrot.lane.b32.xlu0 %v1037, 120
        %v1104 = vpop.permute.xlu0 %1103
        %1105 = vrot.lane.b32.xlu0 %v1035, 88
        %v1106 = vpop.permute.xlu0 %1105
        %v1107 = vsel %vm495, %v1104, 0
        %v1109 = vsel %vm495, %v1106, 0
        %1111 = vmatpush.xpose.msra.mxu0 0.0
        %1112 = vmatpush.xpose.msra.mxu0 0.0
        %1113 = vmatpush.xpose.msra.mxu0 0.0
        %1114 = vmatpush.xpose.msra.mxu0 0.0
        %1115 = vmatpush.xpose.msra.mxu0 0.0
        %1116 = vmatpush.xpose.msra.mxu0 0.0
        %1117 = vmatpush.xpose.msra.mxu0 0.0
        %1118 = vmatpush.xpose.msra.mxu0 0.0
        %1119 = vmatpush.xpose.msra.mxu0 0.0
        %1120 = vmatpush.xpose.msra.mxu0 0.0
        %1121 = vmatpush.xpose.msra.mxu0 0.0
        %1122 = vmatpush.xpose.msra.mxu0 0.0
        %1123 = vmatpush.xpose.msra.mxu0 0.0
        %1124 = vmatpush.xpose.msra.mxu0 0.0
        %1125 = vmatpush.xpose.msra.mxu0 0.0
        %1126 = vmatpush.xpose.msra.mxu0 %v1109
        %1127 = vmatmul.f32.gmra.mxu0 %v1107
        %v1128 = vpop.f32.mrf.mxu0
        %v1129 = vadd.f32 0.0, %v1128
        %1130 = vdwg.mxu0
        %v1131 = vsel %vm495, %v1129, -inf
        %1132 = vmax.xlane.f32.xlu0 %v1131
        %v1133 = vpop.xlane.xlu0 %1132
        %v1134 = vsub.f32 %v1129, %v1133
        %v1135 = vmul.f32 %v1134, 1.442695
        %v1136 = vpow.pop %v1135
        %v1137 = vsel %vm495, %v1136, 0.0
        %1138 = vadd.xlane.f32.xlu0 %v1137
        %v1139 = vpop.xlane.xlu0 %1138
        %v1140 = vrcp.pop %v1139
        %v1141 = vmul.f32 %v1136, %v1140
        %1142 = vrot.lane.b32.xlu0 %v1035, 56
        %v1143 = vpop.permute.xlu0 %1142
        %v1146 = vsel %vm495, %v1141, 0
        %1148 = vmatpush.msra.mxu0 0.0
        %1149 = vmatpush.msra.mxu0 0.0
        %1150 = vmatpush.msra.mxu0 0.0
        %1151 = vmatpush.msra.mxu0 0.0
        %1152 = vmatpush.msra.mxu0 0.0
        %1153 = vmatpush.msra.mxu0 0.0
        %1154 = vmatpush.msra.mxu0 0.0
        %1155 = vmatpush.msra.mxu0 0.0
        %1156 = vmatpush.msra.mxu0 0.0
        %1157 = vmatpush.msra.mxu0 0.0
        %1158 = vmatpush.msra.mxu0 0.0
        %1159 = vmatpush.msra.mxu0 0.0
        %1160 = vmatpush.msra.mxu0 0.0
        %1161 = vmatpush.msra.mxu0 0.0
        %1162 = vmatpush.msra.mxu0 0.0
        %1163 = vmatpush.msra.mxu0 %v1143
        %1164 = vmatmul.f32.gmra.mxu0 %v1146
        %v1165 = vpop.f32.mrf.mxu0
        %v1166 = vadd.f32 0.0, %v1165
        %1167 = vdwg.mxu0
        %v1169 = vsel %vm495, %v1166, 0
        %1171 = vmatpush.msra.mxu0 0.0
        %1172 = vmatpush.msra.mxu0 0.0
        %1173 = vmatpush.msra.mxu0 0.0
        %1174 = vmatpush.msra.mxu0 0.0
        %1175 = vmatpush.msra.mxu0 0.0
        %1176 = vmatpush.msra.mxu0 0.0
        %1177 = vmatpush.msra.mxu0 0.0
        %1178 = vmatpush.msra.mxu0 0.0
        %1179 = vmatpush.msra.mxu0 0.0
        %1180 = vmatpush.msra.mxu0 0.0
        %1181 = vmatpush.msra.mxu0 0.0
        %1182 = vmatpush.msra.mxu0 0.0
        %1183 = vmatpush.msra.mxu0 0.0
        %1184 = vmatpush.msra.mxu0 0.0
        %1185 = vmatpush.msra.mxu0 0.0
        %1186 = vmatpush.msra.mxu0 %v1006
        %1187 = vmatmul.f32.gmra.mxu0 %v1169
        %v1188 = vpop.f32.mrf.mxu0
        %v1189 = vadd.f32 0.0, %v1188
        %1190 = vdwg.mxu0
        %v1192 = vsel %vm495, %v1101, 0
        %1194 = vmatpush.msra.mxu0 0.0
        %1195 = vmatpush.msra.mxu0 0.0
        %1196 = vmatpush.msra.mxu0 0.0
        %1197 = vmatpush.msra.mxu0 0.0
        %1198 = vmatpush.msra.mxu0 0.0
        %1199 = vmatpush.msra.mxu0 0.0
        %1200 = vmatpush.msra.mxu0 0.0
        %1201 = vmatpush.msra.mxu0 0.0
        %1202 = vmatpush.msra.mxu0 0.0
        %1203 = vmatpush.msra.mxu0 0.0
        %1204 = vmatpush.msra.mxu0 0.0
        %1205 = vmatpush.msra.mxu0 0.0
        %1206 = vmatpush.msra.mxu0 0.0
        %1207 = vmatpush.msra.mxu0 0.0
        %1208 = vmatpush.msra.mxu0 0.0
        %1209 = vmatpush.msra.mxu0 %v1005
        %1210 = vmatmul.f32.gmra.mxu0 %v1192
        %v1211 = vpop.f32.mrf.mxu0
        %v1212 = vadd.f32 %v1189, %v1211
        %1213 = vdwg.mxu0
        %1214 = vrot.lane.b32.xlu0 %v1037, 112
        %v1215 = vpop.permute.xlu0 %1214
        %1216 = vrot.lane.b32.xlu0 %v1035, 80
        %v1217 = vpop.permute.xlu0 %1216
        %v1218 = vsel %vm495, %v1215, 0
        %v1220 = vsel %vm495, %v1217, 0
        %1222 = vmatpush.xpose.msra.mxu0 0.0
        %1223 = vmatpush.xpose.msra.mxu0 0.0
        %1224 = vmatpush.xpose.msra.mxu0 0.0
        %1225 = vmatpush.xpose.msra.mxu0 0.0
        %1226 = vmatpush.xpose.msra.mxu0 0.0
        %1227 = vmatpush.xpose.msra.mxu0 0.0
        %1228 = vmatpush.xpose.msra.mxu0 0.0
        %1229 = vmatpush.xpose.msra.mxu0 0.0
        %1230 = vmatpush.xpose.msra.mxu0 0.0
        %1231 = vmatpush.xpose.msra.mxu0 0.0
        %1232 = vmatpush.xpose.msra.mxu0 0.0
        %1233 = vmatpush.xpose.msra.mxu0 0.0
        %1234 = vmatpush.xpose.msra.mxu0 0.0
        %1235 = vmatpush.xpose.msra.mxu0 0.0
        %1236 = vmatpush.xpose.msra.mxu0 0.0
        %1237 = vmatpush.xpose.msra.mxu0 %v1220
        %1238 = vmatmul.f32.gmra.mxu0 %v1218
        %v1239 = vpop.f32.mrf.mxu0
        %v1240 = vadd.f32 0.0, %v1239
        %1241 = vdwg.mxu0
        %v1242 = vsel %vm495, %v1240, -inf
        %1243 = vmax.xlane.f32.xlu0 %v1242
        %v1244 = vpop.xlane.xlu0 %1243
        %v1245 = vsub.f32 %v1240, %v1244
        %v1246 = vmul.f32 %v1245, 1.442695
        %v1247 = vpow.pop %v1246
        %v1248 = vsel %vm495, %v1247, 0.0
        %1249 = vadd.xlane.f32.xlu0 %v1248
        %v1250 = vpop.xlane.xlu0 %1249
        %v1251 = vrcp.pop %v1250
        %v1252 = vmul.f32 %v1247, %v1251
        %1253 = vrot.lane.b32.xlu0 %v1035, 48
        %v1254 = vpop.permute.xlu0 %1253
        %v1257 = vsel %vm495, %v1252, 0
        %1259 = vmatpush.msra.mxu0 0.0
        %1260 = vmatpush.msra.mxu0 0.0
        %1261 = vmatpush.msra.mxu0 0.0
        %1262 = vmatpush.msra.mxu0 0.0
        %1263 = vmatpush.msra.mxu0 0.0
        %1264 = vmatpush.msra.mxu0 0.0
        %1265 = vmatpush.msra.mxu0 0.0
        %1266 = vmatpush.msra.mxu0 0.0
        %1267 = vmatpush.msra.mxu0 0.0
        %1268 = vmatpush.msra.mxu0 0.0
        %1269 = vmatpush.msra.mxu0 0.0
        %1270 = vmatpush.msra.mxu0 0.0
        %1271 = vmatpush.msra.mxu0 0.0
        %1272 = vmatpush.msra.mxu0 0.0
        %1273 = vmatpush.msra.mxu0 0.0
        %1274 = vmatpush.msra.mxu0 %v1254
        %1275 = vmatmul.f32.gmra.mxu0 %v1257
        %v1276 = vpop.f32.mrf.mxu0
        %v1277 = vadd.f32 0.0, %v1276
        %1278 = vdwg.mxu0
        %v1280 = vsel %vm495, %v1277, 0
        %1282 = vmatpush.msra.mxu0 0.0
        %1283 = vmatpush.msra.mxu0 0.0
        %1284 = vmatpush.msra.mxu0 0.0
        %1285 = vmatpush.msra.mxu0 0.0
        %1286 = vmatpush.msra.mxu0 0.0
        %1287 = vmatpush.msra.mxu0 0.0
        %1288 = vmatpush.msra.mxu0 0.0
        %1289 = vmatpush.msra.mxu0 0.0
        %1290 = vmatpush.msra.mxu0 0.0
        %1291 = vmatpush.msra.mxu0 0.0
        %1292 = vmatpush.msra.mxu0 0.0
        %1293 = vmatpush.msra.mxu0 0.0
        %1294 = vmatpush.msra.mxu0 0.0
        %1295 = vmatpush.msra.mxu0 0.0
        %1296 = vmatpush.msra.mxu0 0.0
        %1297 = vmatpush.msra.mxu0 %v1007
        %1298 = vmatmul.f32.gmra.mxu0 %v1280
        %v1299 = vpop.f32.mrf.mxu0
        %v1300 = vadd.f32 0.0, %v1299
        %1301 = vdwg.mxu0
        %v1302 = vadd.f32 %v1212, %v1300
        %1303 = vrot.lane.b32.xlu0 %v1037, 104
        %v1304 = vpop.permute.xlu0 %1303
        %1305 = vrot.lane.b32.xlu0 %v1035, 72
        %v1306 = vpop.permute.xlu0 %1305
        %v1307 = vsel %vm495, %v1304, 0
        %v1309 = vsel %vm495, %v1306, 0
        %1311 = vmatpush.xpose.msra.mxu0 0.0
        %1312 = vmatpush.xpose.msra.mxu0 0.0
        %1313 = vmatpush.xpose.msra.mxu0 0.0
        %1314 = vmatpush.xpose.msra.mxu0 0.0
        %1315 = vmatpush.xpose.msra.mxu0 0.0
        %1316 = vmatpush.xpose.msra.mxu0 0.0
        %1317 = vmatpush.xpose.msra.mxu0 0.0
        %1318 = vmatpush.xpose.msra.mxu0 0.0
        %1319 = vmatpush.xpose.msra.mxu0 0.0
        %1320 = vmatpush.xpose.msra.mxu0 0.0
        %1321 = vmatpush.xpose.msra.mxu0 0.0
        %1322 = vmatpush.xpose.msra.mxu0 0.0
        %1323 = vmatpush.xpose.msra.mxu0 0.0
        %1324 = vmatpush.xpose.msra.mxu0 0.0
        %1325 = vmatpush.xpose.msra.mxu0 0.0
        %1326 = vmatpush.xpose.msra.mxu0 %v1309
        %1327 = vmatmul.f32.gmra.mxu0 %v1307
        %v1328 = vpop.f32.mrf.mxu0
        %v1329 = vadd.f32 0.0, %v1328
        %1330 = vdwg.mxu0
        %v1331 = vsel %vm495, %v1329, -inf
        %1332 = vmax.xlane.f32.xlu0 %v1331
        %v1333 = vpop.xlane.xlu0 %1332
        %v1334 = vsub.f32 %v1329, %v1333
        %v1335 = vmul.f32 %v1334, 1.442695
        %v1336 = vpow.pop %v1335
        %v1337 = vsel %vm495, %v1336, 0.0
        %1338 = vadd.xlane.f32.xlu0 %v1337
        %v1339 = vpop.xlane.xlu0 %1338
        %v1340 = vrcp.pop %v1339
        %v1341 = vmul.f32 %v1336, %v1340
        %1342 = vrot.lane.b32.xlu0 %v1035, 40
        %v1343 = vpop.permute.xlu0 %1342
        %v1346 = vsel %vm495, %v1341, 0
        %1348 = vmatpush.msra.mxu0 0.0
        %1349 = vmatpush.msra.mxu0 0.0
        %1350 = vmatpush.msra.mxu0 0.0
        %1351 = vmatpush.msra.mxu0 0.0
        %1352 = vmatpush.msra.mxu0 0.0
        %1353 = vmatpush.msra.mxu0 0.0
        %1354 = vmatpush.msra.mxu0 0.0
        %1355 = vmatpush.msra.mxu0 0.0
        %1356 = vmatpush.msra.mxu0 0.0
        %1357 = vmatpush.msra.mxu0 0.0
        %1358 = vmatpush.msra.mxu0 0.0
        %1359 = vmatpush.msra.mxu0 0.0
        %1360 = vmatpush.msra.mxu0 0.0
        %1361 = vmatpush.msra.mxu0 0.0
        %1362 = vmatpush.msra.mxu0 0.0
        %1363 = vmatpush.msra.mxu0 %v1343
        %1364 = vmatmul.f32.gmra.mxu0 %v1346
        %v1365 = vpop.f32.mrf.mxu0
        %v1366 = vadd.f32 0.0, %v1365
        %1367 = vdwg.mxu0
        %v1369 = vsel %vm495, %v1366, 0
        %1371 = vmatpush.msra.mxu0 0.0
        %1372 = vmatpush.msra.mxu0 0.0
        %1373 = vmatpush.msra.mxu0 0.0
        %1374 = vmatpush.msra.mxu0 0.0
        %1375 = vmatpush.msra.mxu0 0.0
        %1376 = vmatpush.msra.mxu0 0.0
        %1377 = vmatpush.msra.mxu0 0.0
        %1378 = vmatpush.msra.mxu0 0.0
        %1379 = vmatpush.msra.mxu0 0.0
        %1380 = vmatpush.msra.mxu0 0.0
        %1381 = vmatpush.msra.mxu0 0.0
        %1382 = vmatpush.msra.mxu0 0.0
        %1383 = vmatpush.msra.mxu0 0.0
        %1384 = vmatpush.msra.mxu0 0.0
        %1385 = vmatpush.msra.mxu0 0.0
        %1386 = vmatpush.msra.mxu0 %v1008
        %1387 = vmatmul.f32.gmra.mxu0 %v1369
        %v1388 = vpop.f32.mrf.mxu0
        %v1389 = vadd.f32 0.0, %v1388
        %1390 = vdwg.mxu0
        %v1391 = vadd.f32 %v1302, %v1389
        %v1393 = vperm.slane %v1010, 0
        %v1395 = vadd.f32 %v1391, %v1393
        %s1396 = scalar_lea.vmem %s10, 5
        %v1397 = vld [vmem:[%s1396] sm:$0x1]
        %s1398 = scalar_lea.vmem %s10, 7
        %v1399 = vld [vmem:[%s1398] sm:$0x1]
        %v1400 = vadd.f32 %v996, %v1395
        %v1401 = vsel %vm467, %v1400, 0.0
        %1402 = vadd.xlane.f32.xlu0 %v1401
        %v1403 = vpop.xlane.xlu0 %1402
        %v1404 = vmul.f32 %v1403, %v865
        %v1405 = vsub.f32 %v1400, %v1404
        %v1406 = vmul.f32 %v1405, %v1405
        %v1407 = vsel %vm467, %v1406, 0.0
        %1408 = vadd.xlane.f32.xlu0 %v1407
        %v1409 = vpop.xlane.xlu0 %1408
        %v1410 = vmul.f32 %v1409, %v865
        %v1411 = vadd.f32 %v1410, 1e-05
        %v1412 = vrsqrt.pop %v1411
        %v1413 = vmul.f32 %v1412, %v1411
        %v1414 = vmul.f32 %v1413, %v1412
        %v1415 = vmul.f32 0.5, %v1414
        %v1416 = vsub.f32 1.5, %v1415
        %v1417 = vmul.f32 %v1412, %v1416
        %vm1418 = vweird.f32 %v1411
        %vm1419 = vweird.f32 %v1412
        %vm1420 = vmor %vm1418, %vm1419
        %v1421 = vsel %vm1420, %v1412, %v1417
        %v1422 = vmul.f32 %v1405, %v1421
        %v1424 = vperm.slane %v1397, 0
        %v1426 = vmul.f32 %v1422, %v1424
        %v1428 = vperm.slane %v1399, 0
        %v1430 = vadd.f32 %v1426, %v1428
        %s1431 = scalar_lea.vmem %s7, 32
        %v1432 = vld [vmem:[%s1431] sm:$0xff]
        %v1433 = vld [vmem:[%s1431 + $0x8] sm:$0xff]
        %v1434 = vld [vmem:[%s1431 + $0x10] sm:$0xff]
        %v1435 = vld [vmem:[%s1431 + $0x18] sm:$0xff]
        %s1436 = scalar_lea.vmem %s8, 1
        %v1437 = vld [vmem:[%s1436] sm:$0x1]
        %s1438 = scalar_lea.vmem %s9, 64
        %v1439 = vld [vmem:[%s1438] sm:$0xff]
        %v1440 = vld [vmem:[%s1438 + $0x8] sm:$0xff]
        %v1441 = vld [vmem:[%s1438 + $0x10] sm:$0xff]
        %v1442 = vld [vmem:[%s1438 + $0x18] sm:$0xff]
        %v1443 = vld [vmem:[%s1438 + $0x20] sm:$0xff]
        %v1444 = vld [vmem:[%s1438 + $0x28] sm:$0xff]
        %v1445 = vld [vmem:[%s1438 + $0x30] sm:$0xff]
        %v1446 = vld [vmem:[%s1438 + $0x38] sm:$0xff]
        %s1447 = scalar_lea.vmem %s10, 3
        %v1448 = vld [vmem:[%s1447] sm:$0x1]
        %v1450 = vperm.slane %v1437, 0
        %v1453 = vsel %vm467, %v1430, 0
        %1455 = vmatpush.msra.mxu0 0.0
        %1456 = vmatpush.msra.mxu0 0.0
        %1457 = vmatpush.msra.mxu0 0.0
        %1458 = vmatpush.msra.mxu0 0.0
        %1459 = vmatpush.msra.mxu0 0.0
        %1460 = vmatpush.msra.mxu0 0.0
        %1461 = vmatpush.msra.mxu0 0.0
        %1462 = vmatpush.msra.mxu0 0.0
        %1463 = vmatpush.msra.mxu0 0.0
        %1464 = vmatpush.msra.mxu0 0.0
        %1465 = vmatpush.msra.mxu0 0.0
        %1466 = vmatpush.msra.mxu0 0.0
        %1467 = vmatpush.msra.mxu0 %v1435
        %1468 = vmatpush.msra.mxu0 %v1434
        %1469 = vmatpush.msra.mxu0 %v1433
        %1470 = vmatpush.msra.mxu0 %v1432
        %1471 = vmatmul.f32.gmra.mxu0 %v1453
        %v1472 = vpop.f32.mrf.mxu0
        %v1473 = vadd.f32 %v1450, %v1472
        %1474 = vdwg.mxu0
        %v1475 = vmax.f32 %v1473, 0.0
        %v1477 = vperm.slane %v1448, 0
        %v1480 = vsel %vm938, %v1475, 0
        %1482 = vmatpush.msra.mxu0 0.0
        %1483 = vmatpush.msra.mxu0 0.0
        %1484 = vmatpush.msra.mxu0 0.0
        %1485 = vmatpush.msra.mxu0 0.0
        %1486 = vmatpush.msra.mxu0 0.0
        %1487 = vmatpush.msra.mxu0 0.0
        %1488 = vmatpush.msra.mxu0 0.0
        %1489 = vmatpush.msra.mxu0 0.0
        %1490 = vmatpush.msra.mxu0 %v1446
        %1491 = vmatpush.msra.mxu0 %v1445
        %1492 = vmatpush.msra.mxu0 %v1444
        %1493 = vmatpush.msra.mxu0 %v1443
        %1494 = vmatpush.msra.mxu0 %v1442
        %1495 = vmatpush.msra.mxu0 %v1441
        %1496 = vmatpush.msra.mxu0 %v1440
        %1497 = vmatpush.msra.mxu0 %v1439
        %1498 = vmatmul.f32.gmra.mxu0 %v1480
        %v1499 = vpop.f32.mrf.mxu0
        %v1500 = vadd.f32 %v1477, %v1499
        %1501 = vdwg.mxu0
        %s1502 = scalar_lea.vmem %s10, 9
        %v1503 = vld [vmem:[%s1502] sm:$0x1]
        %s1504 = scalar_lea.vmem %s10, 11
        %v1505 = vld [vmem:[%s1504] sm:$0x1]
        %v1506 = vadd.f32 %v1430, %v1500
        %v1507 = vsel %vm467, %v1506, 0.0
        %1508 = vadd.xlane.f32.xlu0 %v1507
        %v1509 = vpop.xlane.xlu0 %1508
        %v1510 = vmul.f32 %v1509, %v865
        %v1511 = vsub.f32 %v1506, %v1510
        %v1512 = vmul.f32 %v1511, %v1511
        %v1513 = vsel %vm467, %v1512, 0.0
        %1514 = vadd.xlane.f32.xlu0 %v1513
        %v1515 = vpop.xlane.xlu0 %1514
        %v1516 = vmul.f32 %v1515, %v865
        %v1517 = vadd.f32 %v1516, 1e-05
        %v1518 = vrsqrt.pop %v1517
        %v1519 = vmul.f32 %v1518, %v1517
        %v1520 = vmul.f32 %v1519, %v1518
        %v1521 = vmul.f32 0.5, %v1520
        %v1522 = vsub.f32 1.5, %v1521
        %v1523 = vmul.f32 %v1518, %v1522
        %vm1524 = vweird.f32 %v1517
        %vm1525 = vweird.f32 %v1518
        %vm1526 = vmor %vm1524, %vm1525
        %v1527 = vsel %vm1526, %v1518, %v1523
        %v1528 = vmul.f32 %v1511, %v1527
        %v1530 = vperm.slane %v1503, 0
        %v1532 = vmul.f32 %v1528, %v1530
        %v1534 = vperm.slane %v1505, 0
        %v1536 = vadd.f32 %v1532, %v1534
        %v1537 = vld [vmem:[%s452] sm:$0xff]
        %s1538 = scalar_lea.vmem %s2, 64
        %v1539 = vld [vmem:[%s1538] sm:$0xff]
        %v1540 = vld [vmem:[%s1538 + $0x8] sm:$0xff]
        %v1541 = vld [vmem:[%s1538 + $0x10] sm:$0xff]
        %v1542 = vld [vmem:[%s1538 + $0x18] sm:$0xff]
        %s1543 = scalar_lea.vmem %s3, 2
        %v1544 = vld [vmem:[%s1543] sm:$0x1]
        %s1545 = scalar_lea.vmem %s4, 64
        %v1546 = vld [vmem:[%s1545] sm:$0xff]
        %v1547 = vld [vmem:[%s1545 + $0x8] sm:$0xff]
        %v1548 = vld [vmem:[%s1545 + $0x10] sm:$0xff]
        %v1549 = vld [vmem:[%s1545 + $0x18] sm:$0xff]
        %s1550 = scalar_lea.vmem %s10, 12
        %v1551 = vld [vmem:[%s1550] sm:$0x1]
        %v1553 = vperm.slane %v1544, 0
        %v1556 = vsel %vm467, %v1537, 0
        %1558 = vmatpush.msra.mxu0 0.0
        %1559 = vmatpush.msra.mxu0 0.0
        %1560 = vmatpush.msra.mxu0 0.0
        %1561 = vmatpush.msra.mxu0 0.0
        %1562 = vmatpush.msra.mxu0 0.0
        %1563 = vmatpush.msra.mxu0 0.0
        %1564 = vmatpush.msra.mxu0 0.0
        %1565 = vmatpush.msra.mxu0 0.0
        %1566 = vmatpush.msra.mxu0 0.0
        %1567 = vmatpush.msra.mxu0 0.0
        %1568 = vmatpush.msra.mxu0 0.0
        %1569 = vmatpush.msra.mxu0 0.0
        %1570 = vmatpush.msra.mxu0 %v1542
        %1571 = vmatpush.msra.mxu0 %v1541
        %1572 = vmatpush.msra.mxu0 %v1540
        %1573 = vmatpush.msra.mxu0 %v1539
        %1574 = vmatmul.f32.gmra.mxu0 %v1556
        %v1575 = vpop.f32.mrf.mxu0
        %v1576 = vadd.f32 %v1553, %v1575
        %1577 = vdwg.mxu0
        %v1578 = vmul.f32 %v1576, 0.35355338
        %1580 = vrot.lane.b32.xlu0 %v1576, 96
        %v1581 = vpop.permute.xlu0 %1580
        %v1583 = vsel %vm495, %v1578, 0
        %v1585 = vsel %vm495, %v1581, 0
        %1587 = vmatpush.xpose.msra.mxu0 0.0
        %1588 = vmatpush.xpose.msra.mxu0 0.0
        %1589 = vmatpush.xpose.msra.mxu0 0.0
        %1590 = vmatpush.xpose.msra.mxu0 0.0
        %1591 = vmatpush.xpose.msra.mxu0 0.0
        %1592 = vmatpush.xpose.msra.mxu0 0.0
        %1593 = vmatpush.xpose.msra.mxu0 0.0
        %1594 = vmatpush.xpose.msra.mxu0 0.0
        %1595 = vmatpush.xpose.msra.mxu0 0.0
        %1596 = vmatpush.xpose.msra.mxu0 0.0
        %1597 = vmatpush.xpose.msra.mxu0 0.0
        %1598 = vmatpush.xpose.msra.mxu0 0.0
        %1599 = vmatpush.xpose.msra.mxu0 0.0
        %1600 = vmatpush.xpose.msra.mxu0 0.0
        %1601 = vmatpush.xpose.msra.mxu0 0.0
        %1602 = vmatpush.xpose.msra.mxu0 %v1585
        %1603 = vmatmul.f32.gmra.mxu0 %v1583
        %v1604 = vpop.f32.mrf.mxu0
        %v1605 = vadd.f32 0.0, %v1604
        %1606 = vdwg.mxu0
        %v1607 = vsel %vm495, %v1605, -inf
        %1608 = vmax.xlane.f32.xlu0 %v1607
        %v1609 = vpop.xlane.xlu0 %1608
        %v1610 = vsub.f32 %v1605, %v1609
        %v1611 = vmul.f32 %v1610, 1.442695
        %v1612 = vpow.pop %v1611
        %v1613 = vsel %vm495, %v1612, 0.0
        %1614 = vadd.xlane.f32.xlu0 %v1613
        %v1615 = vpop.xlane.xlu0 %1614
        %v1616 = vrcp.pop %v1615
        %v1617 = vmul.f32 %v1612, %v1616
        %1618 = vrot.lane.b32.xlu0 %v1576, 64
        %v1619 = vpop.permute.xlu0 %1618
        %v1622 = vsel %vm495, %v1617, 0
        %1624 = vmatpush.msra.mxu0 0.0
        %1625 = vmatpush.msra.mxu0 0.0
        %1626 = vmatpush.msra.mxu0 0.0
        %1627 = vmatpush.msra.mxu0 0.0
        %1628 = vmatpush.msra.mxu0 0.0
        %1629 = vmatpush.msra.mxu0 0.0
        %1630 = vmatpush.msra.mxu0 0.0
        %1631 = vmatpush.msra.mxu0 0.0
        %1632 = vmatpush.msra.mxu0 0.0
        %1633 = vmatpush.msra.mxu0 0.0
        %1634 = vmatpush.msra.mxu0 0.0
        %1635 = vmatpush.msra.mxu0 0.0
        %1636 = vmatpush.msra.mxu0 0.0
        %1637 = vmatpush.msra.mxu0 0.0
        %1638 = vmatpush.msra.mxu0 0.0
        %1639 = vmatpush.msra.mxu0 %v1619
        %1640 = vmatmul.f32.gmra.mxu0 %v1622
        %v1641 = vpop.f32.mrf.mxu0
        %v1642 = vadd.f32 0.0, %v1641
        %1643 = vdwg.mxu0
        %1644 = vrot.lane.b32.xlu0 %v1578, 120
        %v1645 = vpop.permute.xlu0 %1644
        %1646 = vrot.lane.b32.xlu0 %v1576, 88
        %v1647 = vpop.permute.xlu0 %1646
        %v1648 = vsel %vm495, %v1645, 0
        %v1650 = vsel %vm495, %v1647, 0
        %1652 = vmatpush.xpose.msra.mxu0 0.0
        %1653 = vmatpush.xpose.msra.mxu0 0.0
        %1654 = vmatpush.xpose.msra.mxu0 0.0
        %1655 = vmatpush.xpose.msra.mxu0 0.0
        %1656 = vmatpush.xpose.msra.mxu0 0.0
        %1657 = vmatpush.xpose.msra.mxu0 0.0
        %1658 = vmatpush.xpose.msra.mxu0 0.0
        %1659 = vmatpush.xpose.msra.mxu0 0.0
        %1660 = vmatpush.xpose.msra.mxu0 0.0
        %1661 = vmatpush.xpose.msra.mxu0 0.0
        %1662 = vmatpush.xpose.msra.mxu0 0.0
        %1663 = vmatpush.xpose.msra.mxu0 0.0
        %1664 = vmatpush.xpose.msra.mxu0 0.0
        %1665 = vmatpush.xpose.msra.mxu0 0.0
        %1666 = vmatpush.xpose.msra.mxu0 0.0
        %1667 = vmatpush.xpose.msra.mxu0 %v1650
        %1668 = vmatmul.f32.gmra.mxu0 %v1648
        %v1669 = vpop.f32.mrf.mxu0
        %v1670 = vadd.f32 0.0, %v1669
        %1671 = vdwg.mxu0
        %v1672 = vsel %vm495, %v1670, -inf
        %1673 = vmax.xlane.f32.xlu0 %v1672
        %v1674 = vpop.xlane.xlu0 %1673
        %v1675 = vsub.f32 %v1670, %v1674
        %v1676 = vmul.f32 %v1675, 1.442695
        %v1677 = vpow.pop %v1676
        %v1678 = vsel %vm495, %v1677, 0.0
        %1679 = vadd.xlane.f32.xlu0 %v1678
        %v1680 = vpop.xlane.xlu0 %1679
        %v1681 = vrcp.pop %v1680
        %v1682 = vmul.f32 %v1677, %v1681
        %1683 = vrot.lane.b32.xlu0 %v1576, 56
        %v1684 = vpop.permute.xlu0 %1683
        %v1687 = vsel %vm495, %v1682, 0
        %1689 = vmatpush.msra.mxu0 0.0
        %1690 = vmatpush.msra.mxu0 0.0
        %1691 = vmatpush.msra.mxu0 0.0
        %1692 = vmatpush.msra.mxu0 0.0
        %1693 = vmatpush.msra.mxu0 0.0
        %1694 = vmatpush.msra.mxu0 0.0
        %1695 = vmatpush.msra.mxu0 0.0
        %1696 = vmatpush.msra.mxu0 0.0
        %1697 = vmatpush.msra.mxu0 0.0
        %1698 = vmatpush.msra.mxu0 0.0
        %1699 = vmatpush.msra.mxu0 0.0
        %1700 = vmatpush.msra.mxu0 0.0
        %1701 = vmatpush.msra.mxu0 0.0
        %1702 = vmatpush.msra.mxu0 0.0
        %1703 = vmatpush.msra.mxu0 0.0
        %1704 = vmatpush.msra.mxu0 %v1684
        %1705 = vmatmul.f32.gmra.mxu0 %v1687
        %v1706 = vpop.f32.mrf.mxu0
        %v1707 = vadd.f32 0.0, %v1706
        %1708 = vdwg.mxu0
        %v1710 = vsel %vm495, %v1707, 0
        %1712 = vmatpush.msra.mxu0 0.0
        %1713 = vmatpush.msra.mxu0 0.0
        %1714 = vmatpush.msra.mxu0 0.0
        %1715 = vmatpush.msra.mxu0 0.0
        %1716 = vmatpush.msra.mxu0 0.0
        %1717 = vmatpush.msra.mxu0 0.0
        %1718 = vmatpush.msra.mxu0 0.0
        %1719 = vmatpush.msra.mxu0 0.0
        %1720 = vmatpush.msra.mxu0 0.0
        %1721 = vmatpush.msra.mxu0 0.0
        %1722 = vmatpush.msra.mxu0 0.0
        %1723 = vmatpush.msra.mxu0 0.0
        %1724 = vmatpush.msra.mxu0 0.0
        %1725 = vmatpush.msra.mxu0 0.0
        %1726 = vmatpush.msra.mxu0 0.0
        %1727 = vmatpush.msra.mxu0 %v1547
        %1728 = vmatmul.f32.gmra.mxu0 %v1710
        %v1729 = vpop.f32.mrf.mxu0
        %v1730 = vadd.f32 0.0, %v1729
        %1731 = vdwg.mxu0
        %v1733 = vsel %vm495, %v1642, 0
        %1735 = vmatpush.msra.mxu0 0.0
        %1736 = vmatpush.msra.mxu0 0.0
        %1737 = vmatpush.msra.mxu0 0.0
        %1738 = vmatpush.msra.mxu0 0.0
        %1739 = vmatpush.msra.mxu0 0.0
        %1740 = vmatpush.msra.mxu0 0.0
        %1741 = vmatpush.msra.mxu0 0.0
        %1742 = vmatpush.msra.mxu0 0.0
        %1743 = vmatpush.msra.mxu0 0.0
        %1744 = vmatpush.msra.mxu0 0.0
        %1745 = vmatpush.msra.mxu0 0.0
        %1746 = vmatpush.msra.mxu0 0.0
        %1747 = vmatpush.msra.mxu0 0.0
        %1748 = vmatpush.msra.mxu0 0.0
        %1749 = vmatpush.msra.mxu0 0.0
        %1750 = vmatpush.msra.mxu0 %v1546
        %1751 = vmatmul.f32.gmra.mxu0 %v1733
        %v1752 = vpop.f32.mrf.mxu0
        %v1753 = vadd.f32 %v1730, %v1752
        %1754 = vdwg.mxu0
        %1755 = vrot.lane.b32.xlu0 %v1578, 112
        %v1756 = vpop.permute.xlu0 %1755
        %1757 = vrot.lane.b32.xlu0 %v1576, 80
        %v1758 = vpop.permute.xlu0 %1757
        %v1759 = vsel %vm495, %v1756, 0
        %v1761 = vsel %vm495, %v1758, 0
        %1763 = vmatpush.xpose.msra.mxu0 0.0
        %1764 = vmatpush.xpose.msra.mxu0 0.0
        %1765 = vmatpush.xpose.msra.mxu0 0.0
        %1766 = vmatpush.xpose.msra.mxu0 0.0
        %1767 = vmatpush.xpose.msra.mxu0 0.0
        %1768 = vmatpush.xpose.msra.mxu0 0.0
        %1769 = vmatpush.xpose.msra.mxu0 0.0
        %1770 = vmatpush.xpose.msra.mxu0 0.0
        %1771 = vmatpush.xpose.msra.mxu0 0.0
        %1772 = vmatpush.xpose.msra.mxu0 0.0
        %1773 = vmatpush.xpose.msra.mxu0 0.0
        %1774 = vmatpush.xpose.msra.mxu0 0.0
        %1775 = vmatpush.xpose.msra.mxu0 0.0
        %1776 = vmatpush.xpose.msra.mxu0 0.0
        %1777 = vmatpush.xpose.msra.mxu0 0.0
        %1778 = vmatpush.xpose.msra.mxu0 %v1761
        %1779 = vmatmul.f32.gmra.mxu0 %v1759
        %v1780 = vpop.f32.mrf.mxu0
        %v1781 = vadd.f32 0.0, %v1780
        %1782 = vdwg.mxu0
        %v1783 = vsel %vm495, %v1781, -inf
        %1784 = vmax.xlane.f32.xlu0 %v1783
        %v1785 = vpop.xlane.xlu0 %1784
        %v1786 = vsub.f32 %v1781, %v1785
        %v1787 = vmul.f32 %v1786, 1.442695
        %v1788 = vpow.pop %v1787
        %v1789 = vsel %vm495, %v1788, 0.0
        %1790 = vadd.xlane.f32.xlu0 %v1789
        %v1791 = vpop.xlane.xlu0 %1790
        %v1792 = vrcp.pop %v1791
        %v1793 = vmul.f32 %v1788, %v1792
        %1794 = vrot.lane.b32.xlu0 %v1576, 48
        %v1795 = vpop.permute.xlu0 %1794
        %v1798 = vsel %vm495, %v1793, 0
        %1800 = vmatpush.msra.mxu0 0.0
        %1801 = vmatpush.msra.mxu0 0.0
        %1802 = vmatpush.msra.mxu0 0.0
        %1803 = vmatpush.msra.mxu0 0.0
        %1804 = vmatpush.msra.mxu0 0.0
        %1805 = vmatpush.msra.mxu0 0.0
        %1806 = vmatpush.msra.mxu0 0.0
        %1807 = vmatpush.msra.mxu0 0.0
        %1808 = vmatpush.msra.mxu0 0.0
        %1809 = vmatpush.msra.mxu0 0.0
        %1810 = vmatpush.msra.mxu0 0.0
        %1811 = vmatpush.msra.mxu0 0.0
        %1812 = vmatpush.msra.mxu0 0.0
        %1813 = vmatpush.msra.mxu0 0.0
        %1814 = vmatpush.msra.mxu0 0.0
        %1815 = vmatpush.msra.mxu0 %v1795
        %1816 = vmatmul.f32.gmra.mxu0 %v1798
        %v1817 = vpop.f32.mrf.mxu0
        %v1818 = vadd.f32 0.0, %v1817
        %1819 = vdwg.mxu0
        %v1821 = vsel %vm495, %v1818, 0
        %1823 = vmatpush.msra.mxu0 0.0
        %1824 = vmatpush.msra.mxu0 0.0
        %1825 = vmatpush.msra.mxu0 0.0
        %1826 = vmatpush.msra.mxu0 0.0
        %1827 = vmatpush.msra.mxu0 0.0
        %1828 = vmatpush.msra.mxu0 0.0
        %1829 = vmatpush.msra.mxu0 0.0
        %1830 = vmatpush.msra.mxu0 0.0
        %1831 = vmatpush.msra.mxu0 0.0
        %1832 = vmatpush.msra.mxu0 0.0
        %1833 = vmatpush.msra.mxu0 0.0
        %1834 = vmatpush.msra.mxu0 0.0
        %1835 = vmatpush.msra.mxu0 0.0
        %1836 = vmatpush.msra.mxu0 0.0
        %1837 = vmatpush.msra.mxu0 0.0
        %1838 = vmatpush.msra.mxu0 %v1548
        %1839 = vmatmul.f32.gmra.mxu0 %v1821
        %v1840 = vpop.f32.mrf.mxu0
        %v1841 = vadd.f32 0.0, %v1840
        %1842 = vdwg.mxu0
        %v1843 = vadd.f32 %v1753, %v1841
        %1844 = vrot.lane.b32.xlu0 %v1578, 104
        %v1845 = vpop.permute.xlu0 %1844
        %1846 = vrot.lane.b32.xlu0 %v1576, 72
        %v1847 = vpop.permute.xlu0 %1846
        %v1848 = vsel %vm495, %v1845, 0
        %v1850 = vsel %vm495, %v1847, 0
        %1852 = vmatpush.xpose.msra.mxu0 0.0
        %1853 = vmatpush.xpose.msra.mxu0 0.0
        %1854 = vmatpush.xpose.msra.mxu0 0.0
        %1855 = vmatpush.xpose.msra.mxu0 0.0
        %1856 = vmatpush.xpose.msra.mxu0 0.0
        %1857 = vmatpush.xpose.msra.mxu0 0.0
        %1858 = vmatpush.xpose.msra.mxu0 0.0
        %1859 = vmatpush.xpose.msra.mxu0 0.0
        %1860 = vmatpush.xpose.msra.mxu0 0.0
        %1861 = vmatpush.xpose.msra.mxu0 0.0
        %1862 = vmatpush.xpose.msra.mxu0 0.0
        %1863 = vmatpush.xpose.msra.mxu0 0.0
        %1864 = vmatpush.xpose.msra.mxu0 0.0
        %1865 = vmatpush.xpose.msra.mxu0 0.0
        %1866 = vmatpush.xpose.msra.mxu0 0.0
        %1867 = vmatpush.xpose.msra.mxu0 %v1850
        %1868 = vmatmul.f32.gmra.mxu0 %v1848
        %v1869 = vpop.f32.mrf.mxu0
        %v1870 = vadd.f32 0.0, %v1869
        %1871 = vdwg.mxu0
        %v1872 = vsel %vm495, %v1870, -inf
        %1873 = vmax.xlane.f32.xlu0 %v1872
        %v1874 = vpop.xlane.xlu0 %1873
        %v1875 = vsub.f32 %v1870, %v1874
        %v1876 = vmul.f32 %v1875, 1.442695
        %v1877 = vpow.pop %v1876
        %v1878 = vsel %vm495, %v1877, 0.0
        %1879 = vadd.xlane.f32.xlu0 %v1878
        %v1880 = vpop.xlane.xlu0 %1879
        %v1881 = vrcp.pop %v1880
        %v1882 = vmul.f32 %v1877, %v1881
        %1883 = vrot.lane.b32.xlu0 %v1576, 40
        %v1884 = vpop.permute.xlu0 %1883
        %v1887 = vsel %vm495, %v1882, 0
        %1889 = vmatpush.msra.mxu0 0.0
        %1890 = vmatpush.msra.mxu0 0.0
        %1891 = vmatpush.msra.mxu0 0.0
        %1892 = vmatpush.msra.mxu0 0.0
        %1893 = vmatpush.msra.mxu0 0.0
        %1894 = vmatpush.msra.mxu0 0.0
        %1895 = vmatpush.msra.mxu0 0.0
        %1896 = vmatpush.msra.mxu0 0.0
        %1897 = vmatpush.msra.mxu0 0.0
        %1898 = vmatpush.msra.mxu0 0.0
        %1899 = vmatpush.msra.mxu0 0.0
        %1900 = vmatpush.msra.mxu0 0.0
        %1901 = vmatpush.msra.mxu0 0.0
        %1902 = vmatpush.msra.mxu0 0.0
        %1903 = vmatpush.msra.mxu0 0.0
        %1904 = vmatpush.msra.mxu0 %v1884
        %1905 = vmatmul.f32.gmra.mxu0 %v1887
        %v1906 = vpop.f32.mrf.mxu0
        %v1907 = vadd.f32 0.0, %v1906
        %1908 = vdwg.mxu0
        %v1910 = vsel %vm495, %v1907, 0
        %1912 = vmatpush.msra.mxu0 0.0
        %1913 = vmatpush.msra.mxu0 0.0
        %1914 = vmatpush.msra.mxu0 0.0
        %1915 = vmatpush.msra.mxu0 0.0
        %1916 = vmatpush.msra.mxu0 0.0
        %1917 = vmatpush.msra.mxu0 0.0
        %1918 = vmatpush.msra.mxu0 0.0
        %1919 = vmatpush.msra.mxu0 0.0
        %1920 = vmatpush.msra.mxu0 0.0
        %1921 = vmatpush.msra.mxu0 0.0
        %1922 = vmatpush.msra.mxu0 0.0
        %1923 = vmatpush.msra.mxu0 0.0
        %1924 = vmatpush.msra.mxu0 0.0
        %1925 = vmatpush.msra.mxu0 0.0
        %1926 = vmatpush.msra.mxu0 0.0
        %1927 = vmatpush.msra.mxu0 %v1549
        %1928 = vmatmul.f32.gmra.mxu0 %v1910
        %v1929 = vpop.f32.mrf.mxu0
        %v1930 = vadd.f32 0.0, %v1929
        %1931 = vdwg.mxu0
        %v1932 = vadd.f32 %v1843, %v1930
        %v1934 = vperm.slane %v1551, 0
        %v1936 = vadd.f32 %v1932, %v1934
        %s1937 = scalar_lea.vmem %s10, 20
        %v1938 = vld [vmem:[%s1937] sm:$0x1]
        %s1939 = scalar_lea.vmem %s10, 22
        %v1940 = vld [vmem:[%s1939] sm:$0x1]
        %v1941 = vadd.f32 %v1537, %v1936
        %v1942 = vsel %vm467, %v1941, 0.0
        %1943 = vadd.xlane.f32.xlu0 %v1942
        %v1944 = vpop.xlane.xlu0 %1943
        %v1945 = vmul.f32 %v1944, %v865
        %v1946 = vsub.f32 %v1941, %v1945
        %v1947 = vmul.f32 %v1946, %v1946
        %v1948 = vsel %vm467, %v1947, 0.0
        %1949 = vadd.xlane.f32.xlu0 %v1948
        %v1950 = vpop.xlane.xlu0 %1949
        %v1951 = vmul.f32 %v1950, %v865
        %v1952 = vadd.f32 %v1951, 1e-05
        %v1953 = vrsqrt.pop %v1952
        %v1954 = vmul.f32 %v1953, %v1952
        %v1955 = vmul.f32 %v1954, %v1953
        %v1956 = vmul.f32 0.5, %v1955
        %v1957 = vsub.f32 1.5, %v1956
        %v1958 = vmul.f32 %v1953, %v1957
        %vm1959 = vweird.f32 %v1952
        %vm1960 = vweird.f32 %v1953
        %vm1961 = vmor %vm1959, %vm1960
        %v1962 = vsel %vm1961, %v1953, %v1958
        %v1963 = vmul.f32 %v1946, %v1962
        %v1965 = vperm.slane %v1938, 0
        %v1967 = vmul.f32 %v1963, %v1965
        %v1969 = vperm.slane %v1940, 0
        %v1971 = vadd.f32 %v1967, %v1969
        %s1972 = scalar_lea.vmem %s4, 128
        %v1973 = vld [vmem:[%s1972] sm:$0xff]
        %v1974 = vld [vmem:[%s1972 + $0x8] sm:$0xff]
        %v1975 = vld [vmem:[%s1972 + $0x10] sm:$0xff]
        %v1976 = vld [vmem:[%s1972 + $0x18] sm:$0xff]
        %s1977 = scalar_lea.vmem %s10, 14
        %v1978 = vld [vmem:[%s1977] sm:$0x1]
        %v1979 = vld [vmem:[%s5] sm:$0xff]
        %v1980 = vld [vmem:[%s5 + $0x8] sm:$0xff]
        %v1981 = vld [vmem:[%s5 + $0x10] sm:$0xff]
        %v1982 = vld [vmem:[%s5 + $0x18] sm:$0xff]
        %v1983 = vld [vmem:[%s6] sm:$0x1]
        %s1984 = scalar_lea.vmem %s4, 192
        %v1985 = vld [vmem:[%s1984] sm:$0xff]
        %v1986 = vld [vmem:[%s1984 + $0x8] sm:$0xff]
        %v1987 = vld [vmem:[%s1984 + $0x10] sm:$0xff]
        %v1988 = vld [vmem:[%s1984 + $0x18] sm:$0xff]
        %s1989 = scalar_lea.vmem %s10, 16
        %v1990 = vld [vmem:[%s1989] sm:$0x1]
        %v1992 = vperm.slane %v1978, 0
        %v1995 = vsel %vm467, %v1971, 0
        %1997 = vmatpush.msra.mxu0 0.0
        %1998 = vmatpush.msra.mxu0 0.0
        %1999 = vmatpush.msra.mxu0 0.0
        %2000 = vmatpush.msra.mxu0 0.0
        %2001 = vmatpush.msra.mxu0 0.0
        %2002 = vmatpush.msra.mxu0 0.0
        %2003 = vmatpush.msra.mxu0 0.0
        %2004 = vmatpush.msra.mxu0 0.0
        %2005 = vmatpush.msra.mxu0 0.0
        %2006 = vmatpush.msra.mxu0 0.0
        %2007 = vmatpush.msra.mxu0 0.0
        %2008 = vmatpush.msra.mxu0 0.0
        %2009 = vmatpush.msra.mxu0 %v1976
        %2010 = vmatpush.msra.mxu0 %v1975
        %2011 = vmatpush.msra.mxu0 %v1974
        %2012 = vmatpush.msra.mxu0 %v1973
        %2013 = vmatmul.f32.gmra.mxu0 %v1995
        %v2014 = vpop.f32.mrf.mxu0
        %v2015 = vadd.f32 %v1992, %v2014
        %2016 = vdwg.mxu0
        %v2017 = vmul.f32 %v2015, 0.35355338
        %v2019 = vperm.slane %v1983, 0
        %v2022 = vsel %vm467, %v1536, 0
        %2024 = vmatpush.msra.mxu0 0.0
        %2025 = vmatpush.msra.mxu0 0.0
        %2026 = vmatpush.msra.mxu0 0.0
        %2027 = vmatpush.msra.mxu0 0.0
        %2028 = vmatpush.msra.mxu0 0.0
        %2029 = vmatpush.msra.mxu0 0.0
        %2030 = vmatpush.msra.mxu0 0.0
        %2031 = vmatpush.msra.mxu0 0.0
        %2032 = vmatpush.msra.mxu0 0.0
        %2033 = vmatpush.msra.mxu0 0.0
        %2034 = vmatpush.msra.mxu0 0.0
        %2035 = vmatpush.msra.mxu0 0.0
        %2036 = vmatpush.msra.mxu0 %v1982
        %2037 = vmatpush.msra.mxu0 %v1981
        %2038 = vmatpush.msra.mxu0 %v1980
        %2039 = vmatpush.msra.mxu0 %v1979
        %2040 = vmatmul.f32.gmra.mxu0 %v2022
        %v2041 = vpop.f32.mrf.mxu0
        %v2042 = vadd.f32 %v2019, %v2041
        %2043 = vdwg.mxu0
        %v2045 = vsel %vm495, %v2017, 0
        %v2048 = vsel %vm495, %v2042, 0
        %2050 = vmatpush.xpose.msra.mxu0 0.0
        %2051 = vmatpush.xpose.msra.mxu0 0.0
        %2052 = vmatpush.xpose.msra.mxu0 0.0
        %2053 = vmatpush.xpose.msra.mxu0 0.0
        %2054 = vmatpush.xpose.msra.mxu0 0.0
        %2055 = vmatpush.xpose.msra.mxu0 0.0
        %2056 = vmatpush.xpose.msra.mxu0 0.0
        %2057 = vmatpush.xpose.msra.mxu0 0.0
        %2058 = vmatpush.xpose.msra.mxu0 0.0
        %2059 = vmatpush.xpose.msra.mxu0 0.0
        %2060 = vmatpush.xpose.msra.mxu0 0.0
        %2061 = vmatpush.xpose.msra.mxu0 0.0
        %2062 = vmatpush.xpose.msra.mxu0 0.0
        %2063 = vmatpush.xpose.msra.mxu0 0.0
        %2064 = vmatpush.xpose.msra.mxu0 0.0
        %2065 = vmatpush.xpose.msra.mxu0 %v2048
        %2066 = vmatmul.f32.gmra.mxu0 %v2045
        %v2067 = vpop.f32.mrf.mxu0
        %v2068 = vadd.f32 0.0, %v2067
        %2069 = vdwg.mxu0
        %v2070 = vsel %vm495, %v2068, -inf
        %2071 = vmax.xlane.f32.xlu0 %v2070
        %v2072 = vpop.xlane.xlu0 %2071
        %v2073 = vsub.f32 %v2068, %v2072
        %v2074 = vmul.f32 %v2073, 1.442695
        %v2075 = vpow.pop %v2074
        %v2076 = vsel %vm495, %v2075, 0.0
        %2077 = vadd.xlane.f32.xlu0 %v2076
        %v2078 = vpop.xlane.xlu0 %2077
        %v2079 = vrcp.pop %v2078
        %v2080 = vmul.f32 %v2075, %v2079
        %2081 = vrot.lane.b32.xlu0 %v2042, 96
        %v2082 = vpop.permute.xlu0 %2081
        %v2085 = vsel %vm495, %v2080, 0
        %2087 = vmatpush.msra.mxu0 0.0
        %2088 = vmatpush.msra.mxu0 0.0
        %2089 = vmatpush.msra.mxu0 0.0
        %2090 = vmatpush.msra.mxu0 0.0
        %2091 = vmatpush.msra.mxu0 0.0
        %2092 = vmatpush.msra.mxu0 0.0
        %2093 = vmatpush.msra.mxu0 0.0
        %2094 = vmatpush.msra.mxu0 0.0
        %2095 = vmatpush.msra.mxu0 0.0
        %2096 = vmatpush.msra.mxu0 0.0
        %2097 = vmatpush.msra.mxu0 0.0
        %2098 = vmatpush.msra.mxu0 0.0
        %2099 = vmatpush.msra.mxu0 0.0
        %2100 = vmatpush.msra.mxu0 0.0
        %2101 = vmatpush.msra.mxu0 0.0
        %2102 = vmatpush.msra.mxu0 %v2082
        %2103 = vmatmul.f32.gmra.mxu0 %v2085
        %v2104 = vpop.f32.mrf.mxu0
        %v2105 = vadd.f32 0.0, %v2104
        %2106 = vdwg.mxu0
        %2107 = vrot.lane.b32.xlu0 %v2017, 120
        %v2108 = vpop.permute.xlu0 %2107
        %2109 = vrot.lane.b32.xlu0 %v2042, 120
        %v2110 = vpop.permute.xlu0 %2109
        %v2111 = vsel %vm495, %v2108, 0
        %v2113 = vsel %vm495, %v2110, 0
        %2115 = vmatpush.xpose.msra.mxu0 0.0
        %2116 = vmatpush.xpose.msra.mxu0 0.0
        %2117 = vmatpush.xpose.msra.mxu0 0.0
        %2118 = vmatpush.xpose.msra.mxu0 0.0
        %2119 = vmatpush.xpose.msra.mxu0 0.0
        %2120 = vmatpush.xpose.msra.mxu0 0.0
        %2121 = vmatpush.xpose.msra.mxu0 0.0
        %2122 = vmatpush.xpose.msra.mxu0 0.0
        %2123 = vmatpush.xpose.msra.mxu0 0.0
        %2124 = vmatpush.xpose.msra.mxu0 0.0
        %2125 = vmatpush.xpose.msra.mxu0 0.0
        %2126 = vmatpush.xpose.msra.mxu0 0.0
        %2127 = vmatpush.xpose.msra.mxu0 0.0
        %2128 = vmatpush.xpose.msra.mxu0 0.0
        %2129 = vmatpush.xpose.msra.mxu0 0.0
        %2130 = vmatpush.xpose.msra.mxu0 %v2113
        %2131 = vmatmul.f32.gmra.mxu0 %v2111
        %v2132 = vpop.f32.mrf.mxu0
        %v2133 = vadd.f32 0.0, %v2132
        %2134 = vdwg.mxu0
        %v2135 = vsel %vm495, %v2133, -inf
        %2136 = vmax.xlane.f32.xlu0 %v2135
        %v2137 = vpop.xlane.xlu0 %2136
        %v2138 = vsub.f32 %v2133, %v2137
        %v2139 = vmul.f32 %v2138, 1.442695
        %v2140 = vpow.pop %v2139
        %v2141 = vsel %vm495, %v2140, 0.0
        %2142 = vadd.xlane.f32.xlu0 %v2141
        %v2143 = vpop.xlane.xlu0 %2142
        %v2144 = vrcp.pop %v2143
        %v2145 = vmul.f32 %v2140, %v2144
        %2146 = vrot.lane.b32.xlu0 %v2042, 88
        %v2147 = vpop.permute.xlu0 %2146
        %v2150 = vsel %vm495, %v2145, 0
        %2152 = vmatpush.msra.mxu0 0.0
        %2153 = vmatpush.msra.mxu0 0.0
        %2154 = vmatpush.msra.mxu0 0.0
        %2155 = vmatpush.msra.mxu0 0.0
        %2156 = vmatpush.msra.mxu0 0.0
        %2157 = vmatpush.msra.mxu0 0.0
        %2158 = vmatpush.msra.mxu0 0.0
        %2159 = vmatpush.msra.mxu0 0.0
        %2160 = vmatpush.msra.mxu0 0.0
        %2161 = vmatpush.msra.mxu0 0.0
        %2162 = vmatpush.msra.mxu0 0.0
        %2163 = vmatpush.msra.mxu0 0.0
        %2164 = vmatpush.msra.mxu0 0.0
        %2165 = vmatpush.msra.mxu0 0.0
        %2166 = vmatpush.msra.mxu0 0.0
        %2167 = vmatpush.msra.mxu0 %v2147
        %2168 = vmatmul.f32.gmra.mxu0 %v2150
        %v2169 = vpop.f32.mrf.mxu0
        %v2170 = vadd.f32 0.0, %v2169
        %2171 = vdwg.mxu0
        %v2173 = vsel %vm495, %v2170, 0
        %2175 = vmatpush.msra.mxu0 0.0
        %2176 = vmatpush.msra.mxu0 0.0
        %2177 = vmatpush.msra.mxu0 0.0
        %2178 = vmatpush.msra.mxu0 0.0
        %2179 = vmatpush.msra.mxu0 0.0
        %2180 = vmatpush.msra.mxu0 0.0
        %2181 = vmatpush.msra.mxu0 0.0
        %2182 = vmatpush.msra.mxu0 0.0
        %2183 = vmatpush.msra.mxu0 0.0
        %2184 = vmatpush.msra.mxu0 0.0
        %2185 = vmatpush.msra.mxu0 0.0
        %2186 = vmatpush.msra.mxu0 0.0
        %2187 = vmatpush.msra.mxu0 0.0
        %2188 = vmatpush.msra.mxu0 0.0
        %2189 = vmatpush.msra.mxu0 0.0
        %2190 = vmatpush.msra.mxu0 %v1986
        %2191 = vmatmul.f32.gmra.mxu0 %v2173
        %v2192 = vpop.f32.mrf.mxu0
        %v2193 = vadd.f32 0.0, %v2192
        %2194 = vdwg.mxu0
        %v2196 = vsel %vm495, %v2105, 0
        %2198 = vmatpush.msra.mxu0 0.0
        %2199 = vmatpush.msra.mxu0 0.0
        %2200 = vmatpush.msra.mxu0 0.0
        %2201 = vmatpush.msra.mxu0 0.0
        %2202 = vmatpush.msra.mxu0 0.0
        %2203 = vmatpush.msra.mxu0 0.0
        %2204 = vmatpush.msra.mxu0 0.0
        %2205 = vmatpush.msra.mxu0 0.0
        %2206 = vmatpush.msra.mxu0 0.0
        %2207 = vmatpush.msra.mxu0 0.0
        %2208 = vmatpush.msra.mxu0 0.0
        %2209 = vmatpush.msra.mxu0 0.0
        %2210 = vmatpush.msra.mxu0 0.0
        %2211 = vmatpush.msra.mxu0 0.0
        %2212 = vmatpush.msra.mxu0 0.0
        %2213 = vmatpush.msra.mxu0 %v1985
        %2214 = vmatmul.f32.gmra.mxu0 %v2196
        %v2215 = vpop.f32.mrf.mxu0
        %v2216 = vadd.f32 %v2193, %v2215
        %2217 = vdwg.mxu0
        %2218 = vrot.lane.b32.xlu0 %v2017, 112
        %v2219 = vpop.permute.xlu0 %2218
        %2220 = vrot.lane.b32.xlu0 %v2042, 112
        %v2221 = vpop.permute.xlu0 %2220
        %v2222 = vsel %vm495, %v2219, 0
        %v2224 = vsel %vm495, %v2221, 0
        %2226 = vmatpush.xpose.msra.mxu0 0.0
        %2227 = vmatpush.xpose.msra.mxu0 0.0
        %2228 = vmatpush.xpose.msra.mxu0 0.0
        %2229 = vmatpush.xpose.msra.mxu0 0.0
        %2230 = vmatpush.xpose.msra.mxu0 0.0
        %2231 = vmatpush.xpose.msra.mxu0 0.0
        %2232 = vmatpush.xpose.msra.mxu0 0.0
        %2233 = vmatpush.xpose.msra.mxu0 0.0
        %2234 = vmatpush.xpose.msra.mxu0 0.0
        %2235 = vmatpush.xpose.msra.mxu0 0.0
        %2236 = vmatpush.xpose.msra.mxu0 0.0
        %2237 = vmatpush.xpose.msra.mxu0 0.0
        %2238 = vmatpush.xpose.msra.mxu0 0.0
        %2239 = vmatpush.xpose.msra.mxu0 0.0
        %2240 = vmatpush.xpose.msra.mxu0 0.0
        %2241 = vmatpush.xpose.msra.mxu0 %v2224
        %2242 = vmatmul.f32.gmra.mxu0 %v2222
        %v2243 = vpop.f32.mrf.mxu0
        %v2244 = vadd.f32 0.0, %v2243
        %2245 = vdwg.mxu0
        %v2246 = vsel %vm495, %v2244, -inf
        %2247 = vmax.xlane.f32.xlu0 %v2246
        %v2248 = vpop.xlane.xlu0 %2247
        %v2249 = vsub.f32 %v2244, %v2248
        %v2250 = vmul.f32 %v2249, 1.442695
        %v2251 = vpow.pop %v2250
        %v2252 = vsel %vm495, %v2251, 0.0
        %2253 = vadd.xlane.f32.xlu0 %v2252
        %v2254 = vpop.xlane.xlu0 %2253
        %v2255 = vrcp.pop %v2254
        %v2256 = vmul.f32 %v2251, %v2255
        %2257 = vrot.lane.b32.xlu0 %v2042, 80
        %v2258 = vpop.permute.xlu0 %2257
        %v2261 = vsel %vm495, %v2256, 0
        %2263 = vmatpush.msra.mxu0 0.0
        %2264 = vmatpush.msra.mxu0 0.0
        %2265 = vmatpush.msra.mxu0 0.0
        %2266 = vmatpush.msra.mxu0 0.0
        %2267 = vmatpush.msra.mxu0 0.0
        %2268 = vmatpush.msra.mxu0 0.0
        %2269 = vmatpush.msra.mxu0 0.0
        %2270 = vmatpush.msra.mxu0 0.0
        %2271 = vmatpush.msra.mxu0 0.0
        %2272 = vmatpush.msra.mxu0 0.0
        %2273 = vmatpush.msra.mxu0 0.0
        %2274 = vmatpush.msra.mxu0 0.0
        %2275 = vmatpush.msra.mxu0 0.0
        %2276 = vmatpush.msra.mxu0 0.0
        %2277 = vmatpush.msra.mxu0 0.0
        %2278 = vmatpush.msra.mxu0 %v2258
        %2279 = vmatmul.f32.gmra.mxu0 %v2261
        %v2280 = vpop.f32.mrf.mxu0
        %v2281 = vadd.f32 0.0, %v2280
        %2282 = vdwg.mxu0
        %v2284 = vsel %vm495, %v2281, 0
        %2286 = vmatpush.msra.mxu0 0.0
        %2287 = vmatpush.msra.mxu0 0.0
        %2288 = vmatpush.msra.mxu0 0.0
        %2289 = vmatpush.msra.mxu0 0.0
        %2290 = vmatpush.msra.mxu0 0.0
        %2291 = vmatpush.msra.mxu0 0.0
        %2292 = vmatpush.msra.mxu0 0.0
        %2293 = vmatpush.msra.mxu0 0.0
        %2294 = vmatpush.msra.mxu0 0.0
        %2295 = vmatpush.msra.mxu0 0.0
        %2296 = vmatpush.msra.mxu0 0.0
        %2297 = vmatpush.msra.mxu0 0.0
        %2298 = vmatpush.msra.mxu0 0.0
        %2299 = vmatpush.msra.mxu0 0.0
        %2300 = vmatpush.msra.mxu0 0.0
        %2301 = vmatpush.msra.mxu0 %v1987
        %2302 = vmatmul.f32.gmra.mxu0 %v2284
        %v2303 = vpop.f32.mrf.mxu0
        %v2304 = vadd.f32 0.0, %v2303
        %2305 = vdwg.mxu0
        %v2306 = vadd.f32 %v2216, %v2304
        %2307 = vrot.lane.b32.xlu0 %v2017, 104
        %v2308 = vpop.permute.xlu0 %2307
        %2309 = vrot.lane.b32.xlu0 %v2042, 104
        %v2310 = vpop.permute.xlu0 %2309
        %v2311 = vsel %vm495, %v2308, 0
        %v2313 = vsel %vm495, %v2310, 0
        %2315 = vmatpush.xpose.msra.mxu0 0.0
        %2316 = vmatpush.xpose.msra.mxu0 0.0
        %2317 = vmatpush.xpose.msra.mxu0 0.0
        %2318 = vmatpush.xpose.msra.mxu0 0.0
        %2319 = vmatpush.xpose.msra.mxu0 0.0
        %2320 = vmatpush.xpose.msra.mxu0 0.0
        %2321 = vmatpush.xpose.msra.mxu0 0.0
        %2322 = vmatpush.xpose.msra.mxu0 0.0
        %2323 = vmatpush.xpose.msra.mxu0 0.0
        %2324 = vmatpush.xpose.msra.mxu0 0.0
        %2325 = vmatpush.xpose.msra.mxu0 0.0
        %2326 = vmatpush.xpose.msra.mxu0 0.0
        %2327 = vmatpush.xpose.msra.mxu0 0.0
        %2328 = vmatpush.xpose.msra.mxu0 0.0
        %2329 = vmatpush.xpose.msra.mxu0 0.0
        %2330 = vmatpush.xpose.msra.mxu0 %v2313
        %2331 = vmatmul.f32.gmra.mxu0 %v2311
        %v2332 = vpop.f32.mrf.mxu0
        %v2333 = vadd.f32 0.0, %v2332
        %2334 = vdwg.mxu0
        %v2335 = vsel %vm495, %v2333, -inf
        %2336 = vmax.xlane.f32.xlu0 %v2335
        %v2337 = vpop.xlane.xlu0 %2336
        %v2338 = vsub.f32 %v2333, %v2337
        %v2339 = vmul.f32 %v2338, 1.442695
        %v2340 = vpow.pop %v2339
        %v2341 = vsel %vm495, %v2340, 0.0
        %2342 = vadd.xlane.f32.xlu0 %v2341
        %v2343 = vpop.xlane.xlu0 %2342
        %v2344 = vrcp.pop %v2343
        %v2345 = vmul.f32 %v2340, %v2344
        %2346 = vrot.lane.b32.xlu0 %v2042, 72
        %v2347 = vpop.permute.xlu0 %2346
        %v2350 = vsel %vm495, %v2345, 0
        %2352 = vmatpush.msra.mxu0 0.0
        %2353 = vmatpush.msra.mxu0 0.0
        %2354 = vmatpush.msra.mxu0 0.0
        %2355 = vmatpush.msra.mxu0 0.0
        %2356 = vmatpush.msra.mxu0 0.0
        %2357 = vmatpush.msra.mxu0 0.0
        %2358 = vmatpush.msra.mxu0 0.0
        %2359 = vmatpush.msra.mxu0 0.0
        %2360 = vmatpush.msra.mxu0 0.0
        %2361 = vmatpush.msra.mxu0 0.0
        %2362 = vmatpush.msra.mxu0 0.0
        %2363 = vmatpush.msra.mxu0 0.0
        %2364 = vmatpush.msra.mxu0 0.0
        %2365 = vmatpush.msra.mxu0 0.0
        %2366 = vmatpush.msra.mxu0 0.0
        %2367 = vmatpush.msra.mxu0 %v2347
        %2368 = vmatmul.f32.gmra.mxu0 %v2350
        %v2369 = vpop.f32.mrf.mxu0
        %v2370 = vadd.f32 0.0, %v2369
        %2371 = vdwg.mxu0
        %v2373 = vsel %vm495, %v2370, 0
        %2375 = vmatpush.msra.mxu0 0.0
        %2376 = vmatpush.msra.mxu0 0.0
        %2377 = vmatpush.msra.mxu0 0.0
        %2378 = vmatpush.msra.mxu0 0.0
        %2379 = vmatpush.msra.mxu0 0.0
        %2380 = vmatpush.msra.mxu0 0.0
        %2381 = vmatpush.msra.mxu0 0.0
        %2382 = vmatpush.msra.mxu0 0.0
        %2383 = vmatpush.msra.mxu0 0.0
        %2384 = vmatpush.msra.mxu0 0.0
        %2385 = vmatpush.msra.mxu0 0.0
        %2386 = vmatpush.msra.mxu0 0.0
        %2387 = vmatpush.msra.mxu0 0.0
        %2388 = vmatpush.msra.mxu0 0.0
        %2389 = vmatpush.msra.mxu0 0.0
        %2390 = vmatpush.msra.mxu0 %v1988
        %2391 = vmatmul.f32.gmra.mxu0 %v2373
        %v2392 = vpop.f32.mrf.mxu0
        %v2393 = vadd.f32 0.0, %v2392
        %2394 = vdwg.mxu0
        %v2395 = vadd.f32 %v2306, %v2393
        %v2397 = vperm.slane %v1990, 0
        %v2399 = vadd.f32 %v2395, %v2397
        %s2400 = scalar_lea.vmem %s10, 24
        %v2401 = vld [vmem:[%s2400] sm:$0x1]
        %s2402 = scalar_lea.vmem %s10, 26
        %v2403 = vld [vmem:[%s2402] sm:$0x1]
        %v2404 = vadd.f32 %v1971, %v2399
        %v2405 = vsel %vm467, %v2404, 0.0
        %2406 = vadd.xlane.f32.xlu0 %v2405
        %v2407 = vpop.xlane.xlu0 %2406
        %v2408 = vmul.f32 %v2407, %v865
        %v2409 = vsub.f32 %v2404, %v2408
        %v2410 = vmul.f32 %v2409, %v2409
        %v2411 = vsel %vm467, %v2410, 0.0
        %2412 = vadd.xlane.f32.xlu0 %v2411
        %v2413 = vpop.xlane.xlu0 %2412
        %v2414 = vmul.f32 %v2413, %v865
        %v2415 = vadd.f32 %v2414, 1e-05
        %v2416 = vrsqrt.pop %v2415
        %v2417 = vmul.f32 %v2416, %v2415
        %v2418 = vmul.f32 %v2417, %v2416
        %v2419 = vmul.f32 0.5, %v2418
        %v2420 = vsub.f32 1.5, %v2419
        %v2421 = vmul.f32 %v2416, %v2420
        %vm2422 = vweird.f32 %v2415
        %vm2423 = vweird.f32 %v2416
        %vm2424 = vmor %vm2422, %vm2423
        %v2425 = vsel %vm2424, %v2416, %v2421
        %v2426 = vmul.f32 %v2409, %v2425
        %v2428 = vperm.slane %v2401, 0
        %v2430 = vmul.f32 %v2426, %v2428
        %v2432 = vperm.slane %v2403, 0
        %v2434 = vadd.f32 %v2430, %v2432
        %s2435 = scalar_lea.vmem %s7, 64
        %v2436 = vld [vmem:[%s2435] sm:$0xff]
        %v2437 = vld [vmem:[%s2435 + $0x8] sm:$0xff]
        %v2438 = vld [vmem:[%s2435 + $0x10] sm:$0xff]
        %v2439 = vld [vmem:[%s2435 + $0x18] sm:$0xff]
        %s2440 = scalar_lea.vmem %s8, 2
        %v2441 = vld [vmem:[%s2440] sm:$0x1]
        %s2442 = scalar_lea.vmem %s9, 128
        %v2443 = vld [vmem:[%s2442] sm:$0xff]
        %v2444 = vld [vmem:[%s2442 + $0x8] sm:$0xff]
        %v2445 = vld [vmem:[%s2442 + $0x10] sm:$0xff]
        %v2446 = vld [vmem:[%s2442 + $0x18] sm:$0xff]
        %v2447 = vld [vmem:[%s2442 + $0x20] sm:$0xff]
        %v2448 = vld [vmem:[%s2442 + $0x28] sm:$0xff]
        %v2449 = vld [vmem:[%s2442 + $0x30] sm:$0xff]
        %v2450 = vld [vmem:[%s2442 + $0x38] sm:$0xff]
        %s2451 = scalar_lea.vmem %s10, 18
        %v2452 = vld [vmem:[%s2451] sm:$0x1]
        %v2454 = vperm.slane %v2441, 0
        %v2457 = vsel %vm467, %v2434, 0
        %2459 = vmatpush.msra.mxu0 0.0
        %2460 = vmatpush.msra.mxu0 0.0
        %2461 = vmatpush.msra.mxu0 0.0
        %2462 = vmatpush.msra.mxu0 0.0
        %2463 = vmatpush.msra.mxu0 0.0
        %2464 = vmatpush.msra.mxu0 0.0
        %2465 = vmatpush.msra.mxu0 0.0
        %2466 = vmatpush.msra.mxu0 0.0
        %2467 = vmatpush.msra.mxu0 0.0
        %2468 = vmatpush.msra.mxu0 0.0
        %2469 = vmatpush.msra.mxu0 0.0
        %2470 = vmatpush.msra.mxu0 0.0
        %2471 = vmatpush.msra.mxu0 %v2439
        %2472 = vmatpush.msra.mxu0 %v2438
        %2473 = vmatpush.msra.mxu0 %v2437
        %2474 = vmatpush.msra.mxu0 %v2436
        %2475 = vmatmul.f32.gmra.mxu0 %v2457
        %v2476 = vpop.f32.mrf.mxu0
        %v2477 = vadd.f32 %v2454, %v2476
        %2478 = vdwg.mxu0
        %v2479 = vmax.f32 %v2477, 0.0
        %v2481 = vperm.slane %v2452, 0
        %v2484 = vsel %vm938, %v2479, 0
        %2486 = vmatpush.msra.mxu0 0.0
        %2487 = vmatpush.msra.mxu0 0.0
        %2488 = vmatpush.msra.mxu0 0.0
        %2489 = vmatpush.msra.mxu0 0.0
        %2490 = vmatpush.msra.mxu0 0.0
        %2491 = vmatpush.msra.mxu0 0.0
        %2492 = vmatpush.msra.mxu0 0.0
        %2493 = vmatpush.msra.mxu0 0.0
        %2494 = vmatpush.msra.mxu0 %v2450
        %2495 = vmatpush.msra.mxu0 %v2449
        %2496 = vmatpush.msra.mxu0 %v2448
        %2497 = vmatpush.msra.mxu0 %v2447
        %2498 = vmatpush.msra.mxu0 %v2446
        %2499 = vmatpush.msra.mxu0 %v2445
        %2500 = vmatpush.msra.mxu0 %v2444
        %2501 = vmatpush.msra.mxu0 %v2443
        %2502 = vmatmul.f32.gmra.mxu0 %v2484
        %v2503 = vpop.f32.mrf.mxu0
        %v2504 = vadd.f32 %v2481, %v2503
        %2505 = vdwg.mxu0
        %s2506 = scalar_lea.vmem %s10, 28
        %v2507 = vld [vmem:[%s2506] sm:$0x1]
        %s2508 = scalar_lea.vmem %s10, 30
        %v2509 = vld [vmem:[%s2508] sm:$0x1]
        %v2510 = vadd.f32 %v2434, %v2504
        %v2511 = vsel %vm467, %v2510, 0.0
        %2512 = vadd.xlane.f32.xlu0 %v2511
        %v2513 = vpop.xlane.xlu0 %2512
        %v2514 = vmul.f32 %v2513, %v865
        %v2515 = vsub.f32 %v2510, %v2514
        %v2516 = vmul.f32 %v2515, %v2515
        %v2517 = vsel %vm467, %v2516, 0.0
        %2518 = vadd.xlane.f32.xlu0 %v2517
        %v2519 = vpop.xlane.xlu0 %2518
        %v2520 = vmul.f32 %v2519, %v865
        %v2521 = vadd.f32 %v2520, 1e-05
        %v2522 = vrsqrt.pop %v2521
        %v2523 = vmul.f32 %v2522, %v2521
        %v2524 = vmul.f32 %v2523, %v2522
        %v2525 = vmul.f32 0.5, %v2524
        %v2526 = vsub.f32 1.5, %v2525
        %v2527 = vmul.f32 %v2522, %v2526
        %vm2528 = vweird.f32 %v2521
        %vm2529 = vweird.f32 %v2522
        %vm2530 = vmor %vm2528, %vm2529
        %v2531 = vsel %vm2530, %v2522, %v2527
        %v2532 = vmul.f32 %v2515, %v2531
        %v2534 = vperm.slane %v2507, 0
        %v2536 = vmul.f32 %v2532, %v2534
        %v2538 = vperm.slane %v2509, 0
        %v2540 = vadd.f32 %v2536, %v2538
        %s2541 = scalar_lea.vmem %s2, 96
        %v2542 = vld [vmem:[%s2541] sm:$0xff]
        %v2543 = vld [vmem:[%s2541 + $0x8] sm:$0xff]
        %v2544 = vld [vmem:[%s2541 + $0x10] sm:$0xff]
        %v2545 = vld [vmem:[%s2541 + $0x18] sm:$0xff]
        %s2546 = scalar_lea.vmem %s3, 3
        %v2547 = vld [vmem:[%s2546] sm:$0x1]
        %s2548 = scalar_lea.vmem %s4, 96
        %v2549 = vld [vmem:[%s2548] sm:$0xff]
        %v2550 = vld [vmem:[%s2548 + $0x8] sm:$0xff]
        %v2551 = vld [vmem:[%s2548 + $0x10] sm:$0xff]
        %v2552 = vld [vmem:[%s2548 + $0x18] sm:$0xff]
        %s2553 = scalar_lea.vmem %s10, 13
        %v2554 = vld [vmem:[%s2553] sm:$0x1]
        %v2556 = vperm.slane %v2547, 0
        %v2559 = vsel %vm467, %v2540, 0
        %2561 = vmatpush.msra.mxu0 0.0
        %2562 = vmatpush.msra.mxu0 0.0
        %2563 = vmatpush.msra.mxu0 0.0
        %2564 = vmatpush.msra.mxu0 0.0
        %2565 = vmatpush.msra.mxu0 0.0
        %2566 = vmatpush.msra.mxu0 0.0
        %2567 = vmatpush.msra.mxu0 0.0
        %2568 = vmatpush.msra.mxu0 0.0
        %2569 = vmatpush.msra.mxu0 0.0
        %2570 = vmatpush.msra.mxu0 0.0
        %2571 = vmatpush.msra.mxu0 0.0
        %2572 = vmatpush.msra.mxu0 0.0
        %2573 = vmatpush.msra.mxu0 %v2545
        %2574 = vmatpush.msra.mxu0 %v2544
        %2575 = vmatpush.msra.mxu0 %v2543
        %2576 = vmatpush.msra.mxu0 %v2542
        %2577 = vmatmul.f32.gmra.mxu0 %v2559
        %v2578 = vpop.f32.mrf.mxu0
        %v2579 = vadd.f32 %v2556, %v2578
        %2580 = vdwg.mxu0
        %v2581 = vmul.f32 %v2579, 0.35355338
        %2583 = vrot.lane.b32.xlu0 %v2579, 96
        %v2584 = vpop.permute.xlu0 %2583
        %v2586 = vsel %vm495, %v2581, 0
        %v2588 = vsel %vm495, %v2584, 0
        %2590 = vmatpush.xpose.msra.mxu0 0.0
        %2591 = vmatpush.xpose.msra.mxu0 0.0
        %2592 = vmatpush.xpose.msra.mxu0 0.0
        %2593 = vmatpush.xpose.msra.mxu0 0.0
        %2594 = vmatpush.xpose.msra.mxu0 0.0
        %2595 = vmatpush.xpose.msra.mxu0 0.0
        %2596 = vmatpush.xpose.msra.mxu0 0.0
        %2597 = vmatpush.xpose.msra.mxu0 0.0
        %2598 = vmatpush.xpose.msra.mxu0 0.0
        %2599 = vmatpush.xpose.msra.mxu0 0.0
        %2600 = vmatpush.xpose.msra.mxu0 0.0
        %2601 = vmatpush.xpose.msra.mxu0 0.0
        %2602 = vmatpush.xpose.msra.mxu0 0.0
        %2603 = vmatpush.xpose.msra.mxu0 0.0
        %2604 = vmatpush.xpose.msra.mxu0 0.0
        %2605 = vmatpush.xpose.msra.mxu0 %v2588
        %2606 = vmatmul.f32.gmra.mxu0 %v2586
        %v2607 = vpop.f32.mrf.mxu0
        %v2608 = vadd.f32 0.0, %v2607
        %2609 = vdwg.mxu0
        %v2610 = vsel %vm495, %v2608, -inf
        %2611 = vmax.xlane.f32.xlu0 %v2610
        %v2612 = vpop.xlane.xlu0 %2611
        %v2613 = vsub.f32 %v2608, %v2612
        %v2614 = vmul.f32 %v2613, 1.442695
        %v2615 = vpow.pop %v2614
        %v2616 = vsel %vm495, %v2615, 0.0
        %2617 = vadd.xlane.f32.xlu0 %v2616
        %v2618 = vpop.xlane.xlu0 %2617
        %v2619 = vrcp.pop %v2618
        %v2620 = vmul.f32 %v2615, %v2619
        %2621 = vrot.lane.b32.xlu0 %v2579, 64
        %v2622 = vpop.permute.xlu0 %2621
        %v2625 = vsel %vm495, %v2620, 0
        %2627 = vmatpush.msra.mxu0 0.0
        %2628 = vmatpush.msra.mxu0 0.0
        %2629 = vmatpush.msra.mxu0 0.0
        %2630 = vmatpush.msra.mxu0 0.0
        %2631 = vmatpush.msra.mxu0 0.0
        %2632 = vmatpush.msra.mxu0 0.0
        %2633 = vmatpush.msra.mxu0 0.0
        %2634 = vmatpush.msra.mxu0 0.0
        %2635 = vmatpush.msra.mxu0 0.0
        %2636 = vmatpush.msra.mxu0 0.0
        %2637 = vmatpush.msra.mxu0 0.0
        %2638 = vmatpush.msra.mxu0 0.0
        %2639 = vmatpush.msra.mxu0 0.0
        %2640 = vmatpush.msra.mxu0 0.0
        %2641 = vmatpush.msra.mxu0 0.0
        %2642 = vmatpush.msra.mxu0 %v2622
        %2643 = vmatmul.f32.gmra.mxu0 %v2625
        %v2644 = vpop.f32.mrf.mxu0
        %v2645 = vadd.f32 0.0, %v2644
        %2646 = vdwg.mxu0
        %2647 = vrot.lane.b32.xlu0 %v2581, 120
        %v2648 = vpop.permute.xlu0 %2647
        %2649 = vrot.lane.b32.xlu0 %v2579, 88
        %v2650 = vpop.permute.xlu0 %2649
        %v2651 = vsel %vm495, %v2648, 0
        %v2653 = vsel %vm495, %v2650, 0
        %2655 = vmatpush.xpose.msra.mxu0 0.0
        %2656 = vmatpush.xpose.msra.mxu0 0.0
        %2657 = vmatpush.xpose.msra.mxu0 0.0
        %2658 = vmatpush.xpose.msra.mxu0 0.0
        %2659 = vmatpush.xpose.msra.mxu0 0.0
        %2660 = vmatpush.xpose.msra.mxu0 0.0
        %2661 = vmatpush.xpose.msra.mxu0 0.0
        %2662 = vmatpush.xpose.msra.mxu0 0.0
        %2663 = vmatpush.xpose.msra.mxu0 0.0
        %2664 = vmatpush.xpose.msra.mxu0 0.0
        %2665 = vmatpush.xpose.msra.mxu0 0.0
        %2666 = vmatpush.xpose.msra.mxu0 0.0
        %2667 = vmatpush.xpose.msra.mxu0 0.0
        %2668 = vmatpush.xpose.msra.mxu0 0.0
        %2669 = vmatpush.xpose.msra.mxu0 0.0
        %2670 = vmatpush.xpose.msra.mxu0 %v2653
        %2671 = vmatmul.f32.gmra.mxu0 %v2651
        %v2672 = vpop.f32.mrf.mxu0
        %v2673 = vadd.f32 0.0, %v2672
        %2674 = vdwg.mxu0
        %v2675 = vsel %vm495, %v2673, -inf
        %2676 = vmax.xlane.f32.xlu0 %v2675
        %v2677 = vpop.xlane.xlu0 %2676
        %v2678 = vsub.f32 %v2673, %v2677
        %v2679 = vmul.f32 %v2678, 1.442695
        %v2680 = vpow.pop %v2679
        %v2681 = vsel %vm495, %v2680, 0.0
        %2682 = vadd.xlane.f32.xlu0 %v2681
        %v2683 = vpop.xlane.xlu0 %2682
        %v2684 = vrcp.pop %v2683
        %v2685 = vmul.f32 %v2680, %v2684
        %2686 = vrot.lane.b32.xlu0 %v2579, 56
        %v2687 = vpop.permute.xlu0 %2686
        %v2690 = vsel %vm495, %v2685, 0
        %2692 = vmatpush.msra.mxu0 0.0
        %2693 = vmatpush.msra.mxu0 0.0
        %2694 = vmatpush.msra.mxu0 0.0
        %2695 = vmatpush.msra.mxu0 0.0
        %2696 = vmatpush.msra.mxu0 0.0
        %2697 = vmatpush.msra.mxu0 0.0
        %2698 = vmatpush.msra.mxu0 0.0
        %2699 = vmatpush.msra.mxu0 0.0
        %2700 = vmatpush.msra.mxu0 0.0
        %2701 = vmatpush.msra.mxu0 0.0
        %2702 = vmatpush.msra.mxu0 0.0
        %2703 = vmatpush.msra.mxu0 0.0
        %2704 = vmatpush.msra.mxu0 0.0
        %2705 = vmatpush.msra.mxu0 0.0
        %2706 = vmatpush.msra.mxu0 0.0
        %2707 = vmatpush.msra.mxu0 %v2687
        %2708 = vmatmul.f32.gmra.mxu0 %v2690
        %v2709 = vpop.f32.mrf.mxu0
        %v2710 = vadd.f32 0.0, %v2709
        %2711 = vdwg.mxu0
        %v2713 = vsel %vm495, %v2710, 0
        %2715 = vmatpush.msra.mxu0 0.0
        %2716 = vmatpush.msra.mxu0 0.0
        %2717 = vmatpush.msra.mxu0 0.0
        %2718 = vmatpush.msra.mxu0 0.0
        %2719 = vmatpush.msra.mxu0 0.0
        %2720 = vmatpush.msra.mxu0 0.0
        %2721 = vmatpush.msra.mxu0 0.0
        %2722 = vmatpush.msra.mxu0 0.0
        %2723 = vmatpush.msra.mxu0 0.0
        %2724 = vmatpush.msra.mxu0 0.0
        %2725 = vmatpush.msra.mxu0 0.0
        %2726 = vmatpush.msra.mxu0 0.0
        %2727 = vmatpush.msra.mxu0 0.0
        %2728 = vmatpush.msra.mxu0 0.0
        %2729 = vmatpush.msra.mxu0 0.0
        %2730 = vmatpush.msra.mxu0 %v2550
        %2731 = vmatmul.f32.gmra.mxu0 %v2713
        %v2732 = vpop.f32.mrf.mxu0
        %v2733 = vadd.f32 0.0, %v2732
        %2734 = vdwg.mxu0
        %v2736 = vsel %vm495, %v2645, 0
        %2738 = vmatpush.msra.mxu0 0.0
        %2739 = vmatpush.msra.mxu0 0.0
        %2740 = vmatpush.msra.mxu0 0.0
        %2741 = vmatpush.msra.mxu0 0.0
        %2742 = vmatpush.msra.mxu0 0.0
        %2743 = vmatpush.msra.mxu0 0.0
        %2744 = vmatpush.msra.mxu0 0.0
        %2745 = vmatpush.msra.mxu0 0.0
        %2746 = vmatpush.msra.mxu0 0.0
        %2747 = vmatpush.msra.mxu0 0.0
        %2748 = vmatpush.msra.mxu0 0.0
        %2749 = vmatpush.msra.mxu0 0.0
        %2750 = vmatpush.msra.mxu0 0.0
        %2751 = vmatpush.msra.mxu0 0.0
        %2752 = vmatpush.msra.mxu0 0.0
        %2753 = vmatpush.msra.mxu0 %v2549
        %2754 = vmatmul.f32.gmra.mxu0 %v2736
        %v2755 = vpop.f32.mrf.mxu0
        %v2756 = vadd.f32 %v2733, %v2755
        %2757 = vdwg.mxu0
        %2758 = vrot.lane.b32.xlu0 %v2581, 112
        %v2759 = vpop.permute.xlu0 %2758
        %2760 = vrot.lane.b32.xlu0 %v2579, 80
        %v2761 = vpop.permute.xlu0 %2760
        %v2762 = vsel %vm495, %v2759, 0
        %v2764 = vsel %vm495, %v2761, 0
        %2766 = vmatpush.xpose.msra.mxu0 0.0
        %2767 = vmatpush.xpose.msra.mxu0 0.0
        %2768 = vmatpush.xpose.msra.mxu0 0.0
        %2769 = vmatpush.xpose.msra.mxu0 0.0
        %2770 = vmatpush.xpose.msra.mxu0 0.0
        %2771 = vmatpush.xpose.msra.mxu0 0.0
        %2772 = vmatpush.xpose.msra.mxu0 0.0
        %2773 = vmatpush.xpose.msra.mxu0 0.0
        %2774 = vmatpush.xpose.msra.mxu0 0.0
        %2775 = vmatpush.xpose.msra.mxu0 0.0
        %2776 = vmatpush.xpose.msra.mxu0 0.0
        %2777 = vmatpush.xpose.msra.mxu0 0.0
        %2778 = vmatpush.xpose.msra.mxu0 0.0
        %2779 = vmatpush.xpose.msra.mxu0 0.0
        %2780 = vmatpush.xpose.msra.mxu0 0.0
        %2781 = vmatpush.xpose.msra.mxu0 %v2764
        %2782 = vmatmul.f32.gmra.mxu0 %v2762
        %v2783 = vpop.f32.mrf.mxu0
        %v2784 = vadd.f32 0.0, %v2783
        %2785 = vdwg.mxu0
        %v2786 = vsel %vm495, %v2784, -inf
        %2787 = vmax.xlane.f32.xlu0 %v2786
        %v2788 = vpop.xlane.xlu0 %2787
        %v2789 = vsub.f32 %v2784, %v2788
        %v2790 = vmul.f32 %v2789, 1.442695
        %v2791 = vpow.pop %v2790
        %v2792 = vsel %vm495, %v2791, 0.0
        %2793 = vadd.xlane.f32.xlu0 %v2792
        %v2794 = vpop.xlane.xlu0 %2793
        %v2795 = vrcp.pop %v2794
        %v2796 = vmul.f32 %v2791, %v2795
        %2797 = vrot.lane.b32.xlu0 %v2579, 48
        %v2798 = vpop.permute.xlu0 %2797
        %v2801 = vsel %vm495, %v2796, 0
        %2803 = vmatpush.msra.mxu0 0.0
        %2804 = vmatpush.msra.mxu0 0.0
        %2805 = vmatpush.msra.mxu0 0.0
        %2806 = vmatpush.msra.mxu0 0.0
        %2807 = vmatpush.msra.mxu0 0.0
        %2808 = vmatpush.msra.mxu0 0.0
        %2809 = vmatpush.msra.mxu0 0.0
        %2810 = vmatpush.msra.mxu0 0.0
        %2811 = vmatpush.msra.mxu0 0.0
        %2812 = vmatpush.msra.mxu0 0.0
        %2813 = vmatpush.msra.mxu0 0.0
        %2814 = vmatpush.msra.mxu0 0.0
        %2815 = vmatpush.msra.mxu0 0.0
        %2816 = vmatpush.msra.mxu0 0.0
        %2817 = vmatpush.msra.mxu0 0.0
        %2818 = vmatpush.msra.mxu0 %v2798
        %2819 = vmatmul.f32.gmra.mxu0 %v2801
        %v2820 = vpop.f32.mrf.mxu0
        %v2821 = vadd.f32 0.0, %v2820
        %2822 = vdwg.mxu0
        %v2824 = vsel %vm495, %v2821, 0
        %2826 = vmatpush.msra.mxu0 0.0
        %2827 = vmatpush.msra.mxu0 0.0
        %2828 = vmatpush.msra.mxu0 0.0
        %2829 = vmatpush.msra.mxu0 0.0
        %2830 = vmatpush.msra.mxu0 0.0
        %2831 = vmatpush.msra.mxu0 0.0
        %2832 = vmatpush.msra.mxu0 0.0
        %2833 = vmatpush.msra.mxu0 0.0
        %2834 = vmatpush.msra.mxu0 0.0
        %2835 = vmatpush.msra.mxu0 0.0
        %2836 = vmatpush.msra.mxu0 0.0
        %2837 = vmatpush.msra.mxu0 0.0
        %2838 = vmatpush.msra.mxu0 0.0
        %2839 = vmatpush.msra.mxu0 0.0
        %2840 = vmatpush.msra.mxu0 0.0
        %2841 = vmatpush.msra.mxu0 %v2551
        %2842 = vmatmul.f32.gmra.mxu0 %v2824
        %v2843 = vpop.f32.mrf.mxu0
        %v2844 = vadd.f32 0.0, %v2843
        %2845 = vdwg.mxu0
        %v2846 = vadd.f32 %v2756, %v2844
        %2847 = vrot.lane.b32.xlu0 %v2581, 104
        %v2848 = vpop.permute.xlu0 %2847
        %2849 = vrot.lane.b32.xlu0 %v2579, 72
        %v2850 = vpop.permute.xlu0 %2849
        %v2851 = vsel %vm495, %v2848, 0
        %v2853 = vsel %vm495, %v2850, 0
        %2855 = vmatpush.xpose.msra.mxu0 0.0
        %2856 = vmatpush.xpose.msra.mxu0 0.0
        %2857 = vmatpush.xpose.msra.mxu0 0.0
        %2858 = vmatpush.xpose.msra.mxu0 0.0
        %2859 = vmatpush.xpose.msra.mxu0 0.0
        %2860 = vmatpush.xpose.msra.mxu0 0.0
        %2861 = vmatpush.xpose.msra.mxu0 0.0
        %2862 = vmatpush.xpose.msra.mxu0 0.0
        %2863 = vmatpush.xpose.msra.mxu0 0.0
        %2864 = vmatpush.xpose.msra.mxu0 0.0
        %2865 = vmatpush.xpose.msra.mxu0 0.0
        %2866 = vmatpush.xpose.msra.mxu0 0.0
        %2867 = vmatpush.xpose.msra.mxu0 0.0
        %2868 = vmatpush.xpose.msra.mxu0 0.0
        %2869 = vmatpush.xpose.msra.mxu0 0.0
        %2870 = vmatpush.xpose.msra.mxu0 %v2853
        %2871 = vmatmul.f32.gmra.mxu0 %v2851
        %v2872 = vpop.f32.mrf.mxu0
        %v2873 = vadd.f32 0.0, %v2872
        %2874 = vdwg.mxu0
        %v2875 = vsel %vm495, %v2873, -inf
        %2876 = vmax.xlane.f32.xlu0 %v2875
        %v2877 = vpop.xlane.xlu0 %2876
        %v2878 = vsub.f32 %v2873, %v2877
        %v2879 = vmul.f32 %v2878, 1.442695
        %v2880 = vpow.pop %v2879
        %v2881 = vsel %vm495, %v2880, 0.0
        %2882 = vadd.xlane.f32.xlu0 %v2881
        %v2883 = vpop.xlane.xlu0 %2882
        %v2884 = vrcp.pop %v2883
        %v2885 = vmul.f32 %v2880, %v2884
        %2886 = vrot.lane.b32.xlu0 %v2579, 40
        %v2887 = vpop.permute.xlu0 %2886
        %v2890 = vsel %vm495, %v2885, 0
        %2892 = vmatpush.msra.mxu0 0.0
        %2893 = vmatpush.msra.mxu0 0.0
        %2894 = vmatpush.msra.mxu0 0.0
        %2895 = vmatpush.msra.mxu0 0.0
        %2896 = vmatpush.msra.mxu0 0.0
        %2897 = vmatpush.msra.mxu0 0.0
        %2898 = vmatpush.msra.mxu0 0.0
        %2899 = vmatpush.msra.mxu0 0.0
        %2900 = vmatpush.msra.mxu0 0.0
        %2901 = vmatpush.msra.mxu0 0.0
        %2902 = vmatpush.msra.mxu0 0.0
        %2903 = vmatpush.msra.mxu0 0.0
        %2904 = vmatpush.msra.mxu0 0.0
        %2905 = vmatpush.msra.mxu0 0.0
        %2906 = vmatpush.msra.mxu0 0.0
        %2907 = vmatpush.msra.mxu0 %v2887
        %2908 = vmatmul.f32.gmra.mxu0 %v2890
        %v2909 = vpop.f32.mrf.mxu0
        %v2910 = vadd.f32 0.0, %v2909
        %2911 = vdwg.mxu0
        %v2913 = vsel %vm495, %v2910, 0
        %2915 = vmatpush.msra.mxu0 0.0
        %2916 = vmatpush.msra.mxu0 0.0
        %2917 = vmatpush.msra.mxu0 0.0
        %2918 = vmatpush.msra.mxu0 0.0
        %2919 = vmatpush.msra.mxu0 0.0
        %2920 = vmatpush.msra.mxu0 0.0
        %2921 = vmatpush.msra.mxu0 0.0
        %2922 = vmatpush.msra.mxu0 0.0
        %2923 = vmatpush.msra.mxu0 0.0
        %2924 = vmatpush.msra.mxu0 0.0
        %2925 = vmatpush.msra.mxu0 0.0
        %2926 = vmatpush.msra.mxu0 0.0
        %2927 = vmatpush.msra.mxu0 0.0
        %2928 = vmatpush.msra.mxu0 0.0
        %2929 = vmatpush.msra.mxu0 0.0
        %2930 = vmatpush.msra.mxu0 %v2552
        %2931 = vmatmul.f32.gmra.mxu0 %v2913
        %v2932 = vpop.f32.mrf.mxu0
        %v2933 = vadd.f32 0.0, %v2932
        %2934 = vdwg.mxu0
        %v2935 = vadd.f32 %v2846, %v2933
        %v2937 = vperm.slane %v2554, 0
        %v2939 = vadd.f32 %v2935, %v2937
        %s2940 = scalar_lea.vmem %s10, 21
        %v2941 = vld [vmem:[%s2940] sm:$0x1]
        %s2942 = scalar_lea.vmem %s10, 23
        %v2943 = vld [vmem:[%s2942] sm:$0x1]
        %v2944 = vadd.f32 %v2540, %v2939
        %v2945 = vsel %vm467, %v2944, 0.0
        %2946 = vadd.xlane.f32.xlu0 %v2945
        %v2947 = vpop.xlane.xlu0 %2946
        %v2948 = vmul.f32 %v2947, %v865
        %v2949 = vsub.f32 %v2944, %v2948
        %v2950 = vmul.f32 %v2949, %v2949
        %v2951 = vsel %vm467, %v2950, 0.0
        %2952 = vadd.xlane.f32.xlu0 %v2951
        %v2953 = vpop.xlane.xlu0 %2952
        %v2954 = vmul.f32 %v2953, %v865
        %v2955 = vadd.f32 %v2954, 1e-05
        %v2956 = vrsqrt.pop %v2955
        %v2957 = vmul.f32 %v2956, %v2955
        %v2958 = vmul.f32 %v2957, %v2956
        %v2959 = vmul.f32 0.5, %v2958
        %v2960 = vsub.f32 1.5, %v2959
        %v2961 = vmul.f32 %v2956, %v2960
        %vm2962 = vweird.f32 %v2955
        %vm2963 = vweird.f32 %v2956
        %vm2964 = vmor %vm2962, %vm2963
        %v2965 = vsel %vm2964, %v2956, %v2961
        %v2966 = vmul.f32 %v2949, %v2965
        %v2968 = vperm.slane %v2941, 0
        %v2970 = vmul.f32 %v2966, %v2968
        %v2972 = vperm.slane %v2943, 0
        %v2974 = vadd.f32 %v2970, %v2972
        %s2975 = scalar_lea.vmem %s4, 160
        %v2976 = vld [vmem:[%s2975] sm:$0xff]
        %v2977 = vld [vmem:[%s2975 + $0x8] sm:$0xff]
        %v2978 = vld [vmem:[%s2975 + $0x10] sm:$0xff]
        %v2979 = vld [vmem:[%s2975 + $0x18] sm:$0xff]
        %s2980 = scalar_lea.vmem %s10, 15
        %v2981 = vld [vmem:[%s2980] sm:$0x1]
        %s2982 = scalar_lea.vmem %s5, 32
        %v2983 = vld [vmem:[%s2982] sm:$0xff]
        %v2984 = vld [vmem:[%s2982 + $0x8] sm:$0xff]
        %v2985 = vld [vmem:[%s2982 + $0x10] sm:$0xff]
        %v2986 = vld [vmem:[%s2982 + $0x18] sm:$0xff]
        %s2987 = scalar_lea.vmem %s6, 1
        %v2988 = vld [vmem:[%s2987] sm:$0x1]
        %s2989 = scalar_lea.vmem %s4, 224
        %v2990 = vld [vmem:[%s2989] sm:$0xff]
        %v2991 = vld [vmem:[%s2989 + $0x8] sm:$0xff]
        %v2992 = vld [vmem:[%s2989 + $0x10] sm:$0xff]
        %v2993 = vld [vmem:[%s2989 + $0x18] sm:$0xff]
        %s2994 = scalar_lea.vmem %s10, 17
        %v2995 = vld [vmem:[%s2994] sm:$0x1]
        %v2997 = vperm.slane %v2981, 0
        %v3000 = vsel %vm467, %v2974, 0
        %3002 = vmatpush.msra.mxu0 0.0
        %3003 = vmatpush.msra.mxu0 0.0
        %3004 = vmatpush.msra.mxu0 0.0
        %3005 = vmatpush.msra.mxu0 0.0
        %3006 = vmatpush.msra.mxu0 0.0
        %3007 = vmatpush.msra.mxu0 0.0
        %3008 = vmatpush.msra.mxu0 0.0
        %3009 = vmatpush.msra.mxu0 0.0
        %3010 = vmatpush.msra.mxu0 0.0
        %3011 = vmatpush.msra.mxu0 0.0
        %3012 = vmatpush.msra.mxu0 0.0
        %3013 = vmatpush.msra.mxu0 0.0
        %3014 = vmatpush.msra.mxu0 %v2979
        %3015 = vmatpush.msra.mxu0 %v2978
        %3016 = vmatpush.msra.mxu0 %v2977
        %3017 = vmatpush.msra.mxu0 %v2976
        %3018 = vmatmul.f32.gmra.mxu0 %v3000
        %v3019 = vpop.f32.mrf.mxu0
        %v3020 = vadd.f32 %v2997, %v3019
        %3021 = vdwg.mxu0
        %v3022 = vmul.f32 %v3020, 0.35355338
        %v3024 = vperm.slane %v2988, 0
        %3026 = vmatpush.msra.mxu0 0.0
        %3027 = vmatpush.msra.mxu0 0.0
        %3028 = vmatpush.msra.mxu0 0.0
        %3029 = vmatpush.msra.mxu0 0.0
        %3030 = vmatpush.msra.mxu0 0.0
        %3031 = vmatpush.msra.mxu0 0.0
        %3032 = vmatpush.msra.mxu0 0.0
        %3033 = vmatpush.msra.mxu0 0.0
        %3034 = vmatpush.msra.mxu0 0.0
        %3035 = vmatpush.msra.mxu0 0.0
        %3036 = vmatpush.msra.mxu0 0.0
        %3037 = vmatpush.msra.mxu0 0.0
        %3038 = vmatpush.msra.mxu0 %v2986
        %3039 = vmatpush.msra.mxu0 %v2985
        %3040 = vmatpush.msra.mxu0 %v2984
        %3041 = vmatpush.msra.mxu0 %v2983
        %3042 = vmatmul.f32.gmra.mxu0 %v2022
        %v3043 = vpop.f32.mrf.mxu0
        %v3044 = vadd.f32 %v3024, %v3043
        %3045 = vdwg.mxu0
        %v3047 = vsel %vm495, %v3022, 0
        %v3050 = vsel %vm495, %v3044, 0
        %3052 = vmatpush.xpose.msra.mxu0 0.0
        %3053 = vmatpush.xpose.msra.mxu0 0.0
        %3054 = vmatpush.xpose.msra.mxu0 0.0
        %3055 = vmatpush.xpose.msra.mxu0 0.0
        %3056 = vmatpush.xpose.msra.mxu0 0.0
        %3057 = vmatpush.xpose.msra.mxu0 0.0
        %3058 = vmatpush.xpose.msra.mxu0 0.0
        %3059 = vmatpush.xpose.msra.mxu0 0.0
        %3060 = vmatpush.xpose.msra.mxu0 0.0
        %3061 = vmatpush.xpose.msra.mxu0 0.0
        %3062 = vmatpush.xpose.msra.mxu0 0.0
        %3063 = vmatpush.xpose.msra.mxu0 0.0
        %3064 = vmatpush.xpose.msra.mxu0 0.0
        %3065 = vmatpush.xpose.msra.mxu0 0.0
        %3066 = vmatpush.xpose.msra.mxu0 0.0
        %3067 = vmatpush.xpose.msra.mxu0 %v3050
        %3068 = vmatmul.f32.gmra.mxu0 %v3047
        %v3069 = vpop.f32.mrf.mxu0
        %v3070 = vadd.f32 0.0, %v3069
        %3071 = vdwg.mxu0
        %v3072 = vsel %vm495, %v3070, -inf
        %3073 = vmax.xlane.f32.xlu0 %v3072
        %v3074 = vpop.xlane.xlu0 %3073
        %v3075 = vsub.f32 %v3070, %v3074
        %v3076 = vmul.f32 %v3075, 1.442695
        %v3077 = vpow.pop %v3076
        %v3078 = vsel %vm495, %v3077, 0.0
        %3079 = vadd.xlane.f32.xlu0 %v3078
        %v3080 = vpop.xlane.xlu0 %3079
        %v3081 = vrcp.pop %v3080
        %v3082 = vmul.f32 %v3077, %v3081
        %3083 = vrot.lane.b32.xlu0 %v3044, 96
        %v3084 = vpop.permute.xlu0 %3083
        %v3087 = vsel %vm495, %v3082, 0
        %3089 = vmatpush.msra.mxu0 0.0
        %3090 = vmatpush.msra.mxu0 0.0
        %3091 = vmatpush.msra.mxu0 0.0
        %3092 = vmatpush.msra.mxu0 0.0
        %3093 = vmatpush.msra.mxu0 0.0
        %3094 = vmatpush.msra.mxu0 0.0
        %3095 = vmatpush.msra.mxu0 0.0
        %3096 = vmatpush.msra.mxu0 0.0
        %3097 = vmatpush.msra.mxu0 0.0
        %3098 = vmatpush.msra.mxu0 0.0
        %3099 = vmatpush.msra.mxu0 0.0
        %3100 = vmatpush.msra.mxu0 0.0
        %3101 = vmatpush.msra.mxu0 0.0
        %3102 = vmatpush.msra.mxu0 0.0
        %3103 = vmatpush.msra.mxu0 0.0
        %3104 = vmatpush.msra.mxu0 %v3084
        %3105 = vmatmul.f32.gmra.mxu0 %v3087
        %v3106 = vpop.f32.mrf.mxu0
        %v3107 = vadd.f32 0.0, %v3106
        %3108 = vdwg.mxu0
        %3109 = vrot.lane.b32.xlu0 %v3022, 120
        %v3110 = vpop.permute.xlu0 %3109
        %3111 = vrot.lane.b32.xlu0 %v3044, 120
        %v3112 = vpop.permute.xlu0 %3111
        %v3113 = vsel %vm495, %v3110, 0
        %v3115 = vsel %vm495, %v3112, 0
        %3117 = vmatpush.xpose.msra.mxu0 0.0
        %3118 = vmatpush.xpose.msra.mxu0 0.0
        %3119 = vmatpush.xpose.msra.mxu0 0.0
        %3120 = vmatpush.xpose.msra.mxu0 0.0
        %3121 = vmatpush.xpose.msra.mxu0 0.0
        %3122 = vmatpush.xpose.msra.mxu0 0.0
        %3123 = vmatpush.xpose.msra.mxu0 0.0
        %3124 = vmatpush.xpose.msra.mxu0 0.0
        %3125 = vmatpush.xpose.msra.mxu0 0.0
        %3126 = vmatpush.xpose.msra.mxu0 0.0
        %3127 = vmatpush.xpose.msra.mxu0 0.0
        %3128 = vmatpush.xpose.msra.mxu0 0.0
        %3129 = vmatpush.xpose.msra.mxu0 0.0
        %3130 = vmatpush.xpose.msra.mxu0 0.0
        %3131 = vmatpush.xpose.msra.mxu0 0.0
        %3132 = vmatpush.xpose.msra.mxu0 %v3115
        %3133 = vmatmul.f32.gmra.mxu0 %v3113
        %v3134 = vpop.f32.mrf.mxu0
        %v3135 = vadd.f32 0.0, %v3134
        %3136 = vdwg.mxu0
        %v3137 = vsel %vm495, %v3135, -inf
        %3138 = vmax.xlane.f32.xlu0 %v3137
        %v3139 = vpop.xlane.xlu0 %3138
        %v3140 = vsub.f32 %v3135, %v3139
        %v3141 = vmul.f32 %v3140, 1.442695
        %v3142 = vpow.pop %v3141
        %v3143 = vsel %vm495, %v3142, 0.0
        %3144 = vadd.xlane.f32.xlu0 %v3143
        %v3145 = vpop.xlane.xlu0 %3144
        %v3146 = vrcp.pop %v3145
        %v3147 = vmul.f32 %v3142, %v3146
        %3148 = vrot.lane.b32.xlu0 %v3044, 88
        %v3149 = vpop.permute.xlu0 %3148
        %v3152 = vsel %vm495, %v3147, 0
        %3154 = vmatpush.msra.mxu0 0.0
        %3155 = vmatpush.msra.mxu0 0.0
        %3156 = vmatpush.msra.mxu0 0.0
        %3157 = vmatpush.msra.mxu0 0.0
        %3158 = vmatpush.msra.mxu0 0.0
        %3159 = vmatpush.msra.mxu0 0.0
        %3160 = vmatpush.msra.mxu0 0.0
        %3161 = vmatpush.msra.mxu0 0.0
        %3162 = vmatpush.msra.mxu0 0.0
        %3163 = vmatpush.msra.mxu0 0.0
        %3164 = vmatpush.msra.mxu0 0.0
        %3165 = vmatpush.msra.mxu0 0.0
        %3166 = vmatpush.msra.mxu0 0.0
        %3167 = vmatpush.msra.mxu0 0.0
        %3168 = vmatpush.msra.mxu0 0.0
        %3169 = vmatpush.msra.mxu0 %v3149
        %3170 = vmatmul.f32.gmra.mxu0 %v3152
        %v3171 = vpop.f32.mrf.mxu0
        %v3172 = vadd.f32 0.0, %v3171
        %3173 = vdwg.mxu0
        %v3175 = vsel %vm495, %v3172, 0
        %3177 = vmatpush.msra.mxu0 0.0
        %3178 = vmatpush.msra.mxu0 0.0
        %3179 = vmatpush.msra.mxu0 0.0
        %3180 = vmatpush.msra.mxu0 0.0
        %3181 = vmatpush.msra.mxu0 0.0
        %3182 = vmatpush.msra.mxu0 0.0
        %3183 = vmatpush.msra.mxu0 0.0
        %3184 = vmatpush.msra.mxu0 0.0
        %3185 = vmatpush.msra.mxu0 0.0
        %3186 = vmatpush.msra.mxu0 0.0
        %3187 = vmatpush.msra.mxu0 0.0
        %3188 = vmatpush.msra.mxu0 0.0
        %3189 = vmatpush.msra.mxu0 0.0
        %3190 = vmatpush.msra.mxu0 0.0
        %3191 = vmatpush.msra.mxu0 0.0
        %3192 = vmatpush.msra.mxu0 %v2991
        %3193 = vmatmul.f32.gmra.mxu0 %v3175
        %v3194 = vpop.f32.mrf.mxu0
        %v3195 = vadd.f32 0.0, %v3194
        %3196 = vdwg.mxu0
        %v3198 = vsel %vm495, %v3107, 0
        %3200 = vmatpush.msra.mxu0 0.0
        %3201 = vmatpush.msra.mxu0 0.0
        %3202 = vmatpush.msra.mxu0 0.0
        %3203 = vmatpush.msra.mxu0 0.0
        %3204 = vmatpush.msra.mxu0 0.0
        %3205 = vmatpush.msra.mxu0 0.0
        %3206 = vmatpush.msra.mxu0 0.0
        %3207 = vmatpush.msra.mxu0 0.0
        %3208 = vmatpush.msra.mxu0 0.0
        %3209 = vmatpush.msra.mxu0 0.0
        %3210 = vmatpush.msra.mxu0 0.0
        %3211 = vmatpush.msra.mxu0 0.0
        %3212 = vmatpush.msra.mxu0 0.0
        %3213 = vmatpush.msra.mxu0 0.0
        %3214 = vmatpush.msra.mxu0 0.0
        %3215 = vmatpush.msra.mxu0 %v2990
        %3216 = vmatmul.f32.gmra.mxu0 %v3198
        %v3217 = vpop.f32.mrf.mxu0
        %v3218 = vadd.f32 %v3195, %v3217
        %3219 = vdwg.mxu0
        %3220 = vrot.lane.b32.xlu0 %v3022, 112
        %v3221 = vpop.permute.xlu0 %3220
        %3222 = vrot.lane.b32.xlu0 %v3044, 112
        %v3223 = vpop.permute.xlu0 %3222
        %v3224 = vsel %vm495, %v3221, 0
        %v3226 = vsel %vm495, %v3223, 0
        %3228 = vmatpush.xpose.msra.mxu0 0.0
        %3229 = vmatpush.xpose.msra.mxu0 0.0
        %3230 = vmatpush.xpose.msra.mxu0 0.0
        %3231 = vmatpush.xpose.msra.mxu0 0.0
        %3232 = vmatpush.xpose.msra.mxu0 0.0
        %3233 = vmatpush.xpose.msra.mxu0 0.0
        %3234 = vmatpush.xpose.msra.mxu0 0.0
        %3235 = vmatpush.xpose.msra.mxu0 0.0
        %3236 = vmatpush.xpose.msra.mxu0 0.0
        %3237 = vmatpush.xpose.msra.mxu0 0.0
        %3238 = vmatpush.xpose.msra.mxu0 0.0
        %3239 = vmatpush.xpose.msra.mxu0 0.0
        %3240 = vmatpush.xpose.msra.mxu0 0.0
        %3241 = vmatpush.xpose.msra.mxu0 0.0
        %3242 = vmatpush.xpose.msra.mxu0 0.0
        %3243 = vmatpush.xpose.msra.mxu0 %v3226
        %3244 = vmatmul.f32.gmra.mxu0 %v3224
        %v3245 = vpop.f32.mrf.mxu0
        %v3246 = vadd.f32 0.0, %v3245
        %3247 = vdwg.mxu0
        %v3248 = vsel %vm495, %v3246, -inf
        %3249 = vmax.xlane.f32.xlu0 %v3248
        %v3250 = vpop.xlane.xlu0 %3249
        %v3251 = vsub.f32 %v3246, %v3250
        %v3252 = vmul.f32 %v3251, 1.442695
        %v3253 = vpow.pop %v3252
        %v3254 = vsel %vm495, %v3253, 0.0
        %3255 = vadd.xlane.f32.xlu0 %v3254
        %v3256 = vpop.xlane.xlu0 %3255
        %v3257 = vrcp.pop %v3256
        %v3258 = vmul.f32 %v3253, %v3257
        %3259 = vrot.lane.b32.xlu0 %v3044, 80
        %v3260 = vpop.permute.xlu0 %3259
        %v3263 = vsel %vm495, %v3258, 0
        %3265 = vmatpush.msra.mxu0 0.0
        %3266 = vmatpush.msra.mxu0 0.0
        %3267 = vmatpush.msra.mxu0 0.0
        %3268 = vmatpush.msra.mxu0 0.0
        %3269 = vmatpush.msra.mxu0 0.0
        %3270 = vmatpush.msra.mxu0 0.0
        %3271 = vmatpush.msra.mxu0 0.0
        %3272 = vmatpush.msra.mxu0 0.0
        %3273 = vmatpush.msra.mxu0 0.0
        %3274 = vmatpush.msra.mxu0 0.0
        %3275 = vmatpush.msra.mxu0 0.0
        %3276 = vmatpush.msra.mxu0 0.0
        %3277 = vmatpush.msra.mxu0 0.0
        %3278 = vmatpush.msra.mxu0 0.0
        %3279 = vmatpush.msra.mxu0 0.0
        %3280 = vmatpush.msra.mxu0 %v3260
        %3281 = vmatmul.f32.gmra.mxu0 %v3263
        %v3282 = vpop.f32.mrf.mxu0
        %v3283 = vadd.f32 0.0, %v3282
        %3284 = vdwg.mxu0
        %v3286 = vsel %vm495, %v3283, 0
        %3288 = vmatpush.msra.mxu0 0.0
        %3289 = vmatpush.msra.mxu0 0.0
        %3290 = vmatpush.msra.mxu0 0.0
        %3291 = vmatpush.msra.mxu0 0.0
        %3292 = vmatpush.msra.mxu0 0.0
        %3293 = vmatpush.msra.mxu0 0.0
        %3294 = vmatpush.msra.mxu0 0.0
        %3295 = vmatpush.msra.mxu0 0.0
        %3296 = vmatpush.msra.mxu0 0.0
        %3297 = vmatpush.msra.mxu0 0.0
        %3298 = vmatpush.msra.mxu0 0.0
        %3299 = vmatpush.msra.mxu0 0.0
        %3300 = vmatpush.msra.mxu0 0.0
        %3301 = vmatpush.msra.mxu0 0.0
        %3302 = vmatpush.msra.mxu0 0.0
        %3303 = vmatpush.msra.mxu0 %v2992
        %3304 = vmatmul.f32.gmra.mxu0 %v3286
        %v3305 = vpop.f32.mrf.mxu0
        %v3306 = vadd.f32 0.0, %v3305
        %3307 = vdwg.mxu0
        %v3308 = vadd.f32 %v3218, %v3306
        %3309 = vrot.lane.b32.xlu0 %v3022, 104
        %v3310 = vpop.permute.xlu0 %3309
        %3311 = vrot.lane.b32.xlu0 %v3044, 104
        %v3312 = vpop.permute.xlu0 %3311
        %v3313 = vsel %vm495, %v3310, 0
        %v3315 = vsel %vm495, %v3312, 0
        %3317 = vmatpush.xpose.msra.mxu0 0.0
        %3318 = vmatpush.xpose.msra.mxu0 0.0
        %3319 = vmatpush.xpose.msra.mxu0 0.0
        %3320 = vmatpush.xpose.msra.mxu0 0.0
        %3321 = vmatpush.xpose.msra.mxu0 0.0
        %3322 = vmatpush.xpose.msra.mxu0 0.0
        %3323 = vmatpush.xpose.msra.mxu0 0.0
        %3324 = vmatpush.xpose.msra.mxu0 0.0
        %3325 = vmatpush.xpose.msra.mxu0 0.0
        %3326 = vmatpush.xpose.msra.mxu0 0.0
        %3327 = vmatpush.xpose.msra.mxu0 0.0
        %3328 = vmatpush.xpose.msra.mxu0 0.0
        %3329 = vmatpush.xpose.msra.mxu0 0.0
        %3330 = vmatpush.xpose.msra.mxu0 0.0
        %3331 = vmatpush.xpose.msra.mxu0 0.0
        %3332 = vmatpush.xpose.msra.mxu0 %v3315
        %3333 = vmatmul.f32.gmra.mxu0 %v3313
        %v3334 = vpop.f32.mrf.mxu0
        %v3335 = vadd.f32 0.0, %v3334
        %3336 = vdwg.mxu0
        %v3337 = vsel %vm495, %v3335, -inf
        %3338 = vmax.xlane.f32.xlu0 %v3337
        %v3339 = vpop.xlane.xlu0 %3338
        %v3340 = vsub.f32 %v3335, %v3339
        %v3341 = vmul.f32 %v3340, 1.442695
        %v3342 = vpow.pop %v3341
        %v3343 = vsel %vm495, %v3342, 0.0
        %3344 = vadd.xlane.f32.xlu0 %v3343
        %v3345 = vpop.xlane.xlu0 %3344
        %v3346 = vrcp.pop %v3345
        %v3347 = vmul.f32 %v3342, %v3346
        %3348 = vrot.lane.b32.xlu0 %v3044, 72
        %v3349 = vpop.permute.xlu0 %3348
        %v3352 = vsel %vm495, %v3347, 0
        %3354 = vmatpush.msra.mxu0 0.0
        %3355 = vmatpush.msra.mxu0 0.0
        %3356 = vmatpush.msra.mxu0 0.0
        %3357 = vmatpush.msra.mxu0 0.0
        %3358 = vmatpush.msra.mxu0 0.0
        %3359 = vmatpush.msra.mxu0 0.0
        %3360 = vmatpush.msra.mxu0 0.0
        %3361 = vmatpush.msra.mxu0 0.0
        %3362 = vmatpush.msra.mxu0 0.0
        %3363 = vmatpush.msra.mxu0 0.0
        %3364 = vmatpush.msra.mxu0 0.0
        %3365 = vmatpush.msra.mxu0 0.0
        %3366 = vmatpush.msra.mxu0 0.0
        %3367 = vmatpush.msra.mxu0 0.0
        %3368 = vmatpush.msra.mxu0 0.0
        %3369 = vmatpush.msra.mxu0 %v3349
        %3370 = vmatmul.f32.gmra.mxu0 %v3352
        %v3371 = vpop.f32.mrf.mxu0
        %v3372 = vadd.f32 0.0, %v3371
        %3373 = vdwg.mxu0
        %v3375 = vsel %vm495, %v3372, 0
        %3377 = vmatpush.msra.mxu0 0.0
        %3378 = vmatpush.msra.mxu0 0.0
        %3379 = vmatpush.msra.mxu0 0.0
        %3380 = vmatpush.msra.mxu0 0.0
        %3381 = vmatpush.msra.mxu0 0.0
        %3382 = vmatpush.msra.mxu0 0.0
        %3383 = vmatpush.msra.mxu0 0.0
        %3384 = vmatpush.msra.mxu0 0.0
        %3385 = vmatpush.msra.mxu0 0.0
        %3386 = vmatpush.msra.mxu0 0.0
        %3387 = vmatpush.msra.mxu0 0.0
        %3388 = vmatpush.msra.mxu0 0.0
        %3389 = vmatpush.msra.mxu0 0.0
        %3390 = vmatpush.msra.mxu0 0.0
        %3391 = vmatpush.msra.mxu0 0.0
        %3392 = vmatpush.msra.mxu0 %v2993
        %3393 = vmatmul.f32.gmra.mxu0 %v3375
        %v3394 = vpop.f32.mrf.mxu0
        %v3395 = vadd.f32 0.0, %v3394
        %3396 = vdwg.mxu0
        %v3397 = vadd.f32 %v3308, %v3395
        %v3399 = vperm.slane %v2995, 0
        %v3401 = vadd.f32 %v3397, %v3399
        %s3402 = scalar_lea.vmem %s10, 25
        %v3403 = vld [vmem:[%s3402] sm:$0x1]
        %s3404 = scalar_lea.vmem %s10, 27
        %v3405 = vld [vmem:[%s3404] sm:$0x1]
        %v3406 = vadd.f32 %v2974, %v3401
        %v3407 = vsel %vm467, %v3406, 0.0
        %3408 = vadd.xlane.f32.xlu0 %v3407
        %v3409 = vpop.xlane.xlu0 %3408
        %v3410 = vmul.f32 %v3409, %v865
        %v3411 = vsub.f32 %v3406, %v3410
        %v3412 = vmul.f32 %v3411, %v3411
        %v3413 = vsel %vm467, %v3412, 0.0
        %3414 = vadd.xlane.f32.xlu0 %v3413
        %v3415 = vpop.xlane.xlu0 %3414
        %v3416 = vmul.f32 %v3415, %v865
        %v3417 = vadd.f32 %v3416, 1e-05
        %v3418 = vrsqrt.pop %v3417
        %v3419 = vmul.f32 %v3418, %v3417
        %v3420 = vmul.f32 %v3419, %v3418
        %v3421 = vmul.f32 0.5, %v3420
        %v3422 = vsub.f32 1.5, %v3421
        %v3423 = vmul.f32 %v3418, %v3422
        %vm3424 = vweird.f32 %v3417
        %vm3425 = vweird.f32 %v3418
        %vm3426 = vmor %vm3424, %vm3425
        %v3427 = vsel %vm3426, %v3418, %v3423
        %v3428 = vmul.f32 %v3411, %v3427
        %v3430 = vperm.slane %v3403, 0
        %v3432 = vmul.f32 %v3428, %v3430
        %v3434 = vperm.slane %v3405, 0
        %v3436 = vadd.f32 %v3432, %v3434
        %s3437 = scalar_lea.vmem %s7, 96
        %v3438 = vld [vmem:[%s3437] sm:$0xff]
        %v3439 = vld [vmem:[%s3437 + $0x8] sm:$0xff]
        %v3440 = vld [vmem:[%s3437 + $0x10] sm:$0xff]
        %v3441 = vld [vmem:[%s3437 + $0x18] sm:$0xff]
        %s3442 = scalar_lea.vmem %s8, 3
        %v3443 = vld [vmem:[%s3442] sm:$0x1]
        %s3444 = scalar_lea.vmem %s9, 192
        %v3445 = vld [vmem:[%s3444] sm:$0xff]
        %v3446 = vld [vmem:[%s3444 + $0x8] sm:$0xff]
        %v3447 = vld [vmem:[%s3444 + $0x10] sm:$0xff]
        %v3448 = vld [vmem:[%s3444 + $0x18] sm:$0xff]
        %v3449 = vld [vmem:[%s3444 + $0x20] sm:$0xff]
        %v3450 = vld [vmem:[%s3444 + $0x28] sm:$0xff]
        %v3451 = vld [vmem:[%s3444 + $0x30] sm:$0xff]
        %v3452 = vld [vmem:[%s3444 + $0x38] sm:$0xff]
        %s3453 = scalar_lea.vmem %s10, 19
        %v3454 = vld [vmem:[%s3453] sm:$0x1]
        %v3456 = vperm.slane %v3443, 0
        %v3459 = vsel %vm467, %v3436, 0
        %3461 = vmatpush.msra.mxu0 0.0
        %3462 = vmatpush.msra.mxu0 0.0
        %3463 = vmatpush.msra.mxu0 0.0
        %3464 = vmatpush.msra.mxu0 0.0
        %3465 = vmatpush.msra.mxu0 0.0
        %3466 = vmatpush.msra.mxu0 0.0
        %3467 = vmatpush.msra.mxu0 0.0
        %3468 = vmatpush.msra.mxu0 0.0
        %3469 = vmatpush.msra.mxu0 0.0
        %3470 = vmatpush.msra.mxu0 0.0
        %3471 = vmatpush.msra.mxu0 0.0
        %3472 = vmatpush.msra.mxu0 0.0
        %3473 = vmatpush.msra.mxu0 %v3441
        %3474 = vmatpush.msra.mxu0 %v3440
        %3475 = vmatpush.msra.mxu0 %v3439
        %3476 = vmatpush.msra.mxu0 %v3438
        %3477 = vmatmul.f32.gmra.mxu0 %v3459
        %v3478 = vpop.f32.mrf.mxu0
        %v3479 = vadd.f32 %v3456, %v3478
        %3480 = vdwg.mxu0
        %v3481 = vmax.f32 %v3479, 0.0
        %v3483 = vperm.slane %v3454, 0
        %v3486 = vsel %vm938, %v3481, 0
        %3488 = vmatpush.msra.mxu0 0.0
        %3489 = vmatpush.msra.mxu0 0.0
        %3490 = vmatpush.msra.mxu0 0.0
        %3491 = vmatpush.msra.mxu0 0.0
        %3492 = vmatpush.msra.mxu0 0.0
        %3493 = vmatpush.msra.mxu0 0.0
        %3494 = vmatpush.msra.mxu0 0.0
        %3495 = vmatpush.msra.mxu0 0.0
        %3496 = vmatpush.msra.mxu0 %v3452
        %3497 = vmatpush.msra.mxu0 %v3451
        %3498 = vmatpush.msra.mxu0 %v3450
        %3499 = vmatpush.msra.mxu0 %v3449
        %3500 = vmatpush.msra.mxu0 %v3448
        %3501 = vmatpush.msra.mxu0 %v3447
        %3502 = vmatpush.msra.mxu0 %v3446
        %3503 = vmatpush.msra.mxu0 %v3445
        %3504 = vmatmul.f32.gmra.mxu0 %v3486
        %v3505 = vpop.f32.mrf.mxu0
        %v3506 = vadd.f32 %v3483, %v3505
        %3507 = vdwg.mxu0
        %s3508 = scalar_lea.vmem %s10, 29
        %v3509 = vld [vmem:[%s3508] sm:$0x1]
        %s3510 = scalar_lea.vmem %s10, 31
        %v3511 = vld [vmem:[%s3510] sm:$0x1]
        %v3512 = vadd.f32 %v3436, %v3506
        %v3513 = vsel %vm467, %v3512, 0.0
        %3514 = vadd.xlane.f32.xlu0 %v3513
        %v3515 = vpop.xlane.xlu0 %3514
        %v3516 = vmul.f32 %v3515, %v865
        %v3517 = vsub.f32 %v3512, %v3516
        %v3518 = vmul.f32 %v3517, %v3517
        %v3519 = vsel %vm467, %v3518, 0.0
        %3520 = vadd.xlane.f32.xlu0 %v3519
        %v3521 = vpop.xlane.xlu0 %3520
        %v3522 = vmul.f32 %v3521, %v865
        %v3523 = vadd.f32 %v3522, 1e-05
        %v3524 = vrsqrt.pop %v3523
        %v3525 = vmul.f32 %v3524, %v3523
        %v3526 = vmul.f32 %v3525, %v3524
        %v3527 = vmul.f32 0.5, %v3526
        %v3528 = vsub.f32 1.5, %v3527
        %v3529 = vmul.f32 %v3524, %v3528
        %vm3530 = vweird.f32 %v3523
        %vm3531 = vweird.f32 %v3524
        %vm3532 = vmor %vm3530, %vm3531
        %v3533 = vsel %vm3532, %v3524, %v3529
        %v3534 = vmul.f32 %v3517, %v3533
        %v3536 = vperm.slane %v3509, 0
        %v3538 = vmul.f32 %v3534, %v3536
        %v3540 = vperm.slane %v3511, 0
        %v3542 = vadd.f32 %v3538, %v3540
        %v3543 = vld [vmem:[%s11] sm:$0xff]
        %v3544 = vld [vmem:[%s11 + $0x8] sm:$0xff]
        %v3545 = vld [vmem:[%s11 + $0x10] sm:$0xff]
        %v3546 = vld [vmem:[%s11 + $0x18] sm:$0xff]
        %v3547 = vld [vmem:[%s12] sm:$0x1]
        %v3549 = vperm.slane %v3547, 0
        %v3552 = vsel %vm467, %v3542, 0
        %3554 = vmatpush.msra.mxu0 0.0
        %3555 = vmatpush.msra.mxu0 0.0
        %3556 = vmatpush.msra.mxu0 0.0
        %3557 = vmatpush.msra.mxu0 0.0
        %3558 = vmatpush.msra.mxu0 0.0
        %3559 = vmatpush.msra.mxu0 0.0
        %3560 = vmatpush.msra.mxu0 0.0
        %3561 = vmatpush.msra.mxu0 0.0
        %3562 = vmatpush.msra.mxu0 0.0
        %3563 = vmatpush.msra.mxu0 0.0
        %3564 = vmatpush.msra.mxu0 0.0
        %3565 = vmatpush.msra.mxu0 0.0
        %3566 = vmatpush.msra.mxu0 %v3546
        %3567 = vmatpush.msra.mxu0 %v3545
        %3568 = vmatpush.msra.mxu0 %v3544
        %3569 = vmatpush.msra.mxu0 %v3543
        %3570 = vmatmul.f32.gmra.mxu0 %v3552
        %v3571 = vpop.f32.mrf.mxu0
        %v3572 = vadd.f32 %v3549, %v3571
        %3573 = vdwg.mxu0
        %vm3574 = vcmask 130048
        %3575 = vst.msk [vmem:[%s444] sm:$0xff] %vm3574, %v3572
        %s3576 = sand.u32 %s318, 1
        %s3577 = scalar_lea.sflag [#allocation3], %s3576
        %s3578 = sand.u32 %s318, 1
        %s3579 = smul.addr %s3578, 8
        %s3580 = scalar_lea.vmem [#allocation2], %s3579
        // Predicated region
        $region73: #{transformer_forward.1} parent=71 // pred_check
          %p3581 = pneg %p328
        $region74: #{transformer_forward.1} parent=71 // pred_check_branch
          %3583 = sbr.rel (%p3581) target = $region76
        $region75: #{transformer_forward.1} parent=71 // pred_region
          %3585 = vsyncadd %s3577, 0
          %s3586 = smul.addr %s27, 8
          %s3587 = scalar_lea.hbm %s13, %s3586
          %s3589 = sshll.u32 %s3580, 4
          %s3590 = int_to_ptr.vmem [resolvable:$true] %s3589
          %s3591 = sshll.u32 %s3587, 4
          %s3592 = int_to_ptr.hbm [resolvable:$true] %s3591
          %3594 = dma.vmem_to_hbm [thread:$0]  %s3590, 128, %s3592, %s3577
        $region76: #{transformer_forward.1} parent=71 // pred_fallthru
          _
      $region72: #{transformer_forward.1} parent=5 // pred_fallthru
        _
      %p3595 = scmp.le.s32.totalorder 2, %s22
      // Predicated region
      $region77: #{transformer_forward.1} parent=5 // pred_check
        %p3596 = pneg %p3595
      $region78: #{transformer_forward.1} parent=5 // pred_check_branch
        %3598 = sbr.rel (%p3596) target = $region80
      $region79: #{transformer_forward.1} parent=5 // pred_region
        %s3599 = ssub.s32 %s22, 2
        // Predicated region
        $region81: #{transformer_forward.1} parent=79 // pred_check
          %p3600 = pneg %p334
        $region82: #{transformer_forward.1} parent=79 // pred_check_branch
          %3602 = sbr.rel (%p3600) target = $region84
        $region83: #{transformer_forward.1} parent=79 // pred_region
          %s3603 = sand.u32 %s319, 1
          %s3604 = scalar_lea.sflag [#allocation3], %s3603
          %s3605 = sand.u32 %s319, 1
          %s3606 = smul.addr %s3605, 8
          %s3607 = scalar_lea.vmem [#allocation2], %s3606
          %3609 = dma.done %s3604, 128
        $region84: #{transformer_forward.1} parent=79 // pred_fallthru
          _
      $region80: #{transformer_forward.1} parent=5 // pred_fallthru
        _
    $region6: #{transformer_forward.1} parent=1 // loop_footer
      %s26 = sadd.s32 1, %s22
    $region7: #{transformer_forward.1} parent=1 // loop_footer_branch
      %21 = sbr.rel target = $region3
    $region8: #{transformer_forward.1} parent=1 // loop_exit
      _
    %3610 = vsyncpa [#allocation3], 1
    %s3611 = scalar_lea.sflag [#allocation3], 1
    %3612 = vsyncpa %s3611, 1

</llo_original>
